<compile_context>
chip_gen: v7x
topology: tpu7x:2x2x1
jax: 0.10.0
libtpu: 0.0.40
codegen_flags: <defaults>
</compile_context>

<pallas_src>
import jax
import jax.numpy as jnp
from jax.experimental import pallas as pl
from jax.experimental.pallas import tpu as pltpu

IN_FEATS = 3      # real input features
W1_K = 16         # padded K for the first layer (zero rows beyond 3; bf16 sublane-aligned)
OUT_PAD = 128     # lane-dense output width (col 0 = pressure, col 1 = flow)

# (K, N) of every fused layer, in execution order.
_LAYER_DIMS = (
    (W1_K, 512),   # L1: 3(->16) -> 512
    (512, 512),    # L2
    (512, 256),    # L3
    (256, 256),    # L4
    (256, 256),    # L5
    (256, 384),    # H1: [wp1 | wf1]                    (N-concat, exact)
    (384, 384),    # H2: blockdiag(wp2, wf2)            (exact)
    (384, OUT_PAD) # H3: col0 = [wp3;0], col1 = [0;wf3] (exact)
)
_ROW_OFF = []
_off = 0
for _k, _n in _LAYER_DIMS:
    _ROW_OFF.append(_off)
    _off += _k
_ROW_OFF = tuple(_ROW_OFF)          # (0, 16, 528, 1040, 1296, 1552, 1808, 2192) - all x16
W_ROWS = _off                       # 2576
W_COLS = 512
N_LAYERS = len(_LAYER_DIMS)         # 8


def _round_up(a, m):
    return (a + m - 1) // m * m


def _fan_split_kernel(x_ref, w_ref, b_ref, out_ref):
    """Full forward pass for one batch tile; all weights/biases resident in VMEM."""

    def layer(h, idx, relu=True):
        k, n = _LAYER_DIMS[idx]
        r = _ROW_OFF[idx]
        w = w_ref[r:r + k, :n]                      # static, tile-aligned slice (free view)
        b = b_ref[idx:idx + 1, :n]                  # (1, n) f32 bias row
        y = jnp.dot(h, w, preferred_element_type=jnp.float32) + b
        if relu:
            y = jnp.maximum(y, 0.0)
        return y.astype(jnp.bfloat16)

    h = x_ref[...]                                  # (TILE_B, 16) bf16
    for i in range(5):                              # shared trunk, ReLU each
        h = layer(h, i)
    h = layer(h, 5)                                 # fused head entry   -> [p1 | q1]
    h = layer(h, 6)                                 # fused head mid     -> [p2 | q2]
    out_ref[...] = layer(h, 7, relu=False)          # fused output heads -> (TILE_B, 128)


def init_params(key):
    """Deterministic PyTorch-style (U[-1/sqrt(fan_in), 1/sqrt(fan_in)]) init, f32.

    Weights are stored transposed to [in, out]; order matches the PyTorch module:
    shared (5 linears), pressure head (3), flow head (3).
    """
    dims = [(3, 512), (512, 512), (512, 256), (256, 256), (256, 256),   # shared
            (256, 256), (256, 256), (256, 1),                           # pressure head
            (256, 128), (128, 128), (128, 1)]                           # flow head
    keys = jax.random.split(key, 2 * len(dims))
    params = []
    for i, (fan_in, fan_out) in enumerate(dims):
        bound = 1.0 / (fan_in ** 0.5)
        w = jax.random.uniform(keys[2 * i], (fan_in, fan_out), jnp.float32, -bound, bound)
        b = jax.random.uniform(keys[2 * i + 1], (1, fan_out), jnp.float32, -bound, bound)
        params.append((w, b))
    return params


def pack_params(params):
    """Pack all layers into one resident bf16 weight slab + one f32 bias slab."""
    (w1, b1), (w2, b2), (w3, b3), (w4, b4), (w5, b5) = params[0:5]
    (wp1, bp1), (wp2, bp2), (wp3, bp3) = params[5:8]
    (wf1, bf1), (wf2, bf2), (wf3, bf3) = params[8:11]

    # H1: concat pressure/flow head entry along N -> (256, 384)
    wh1 = jnp.concatenate([wp1, wf1], axis=1)
    bh1 = jnp.concatenate([bp1, bf1], axis=1)
    # H2: block-diagonal fuse of the head-mid layers -> (384, 384)
    wh2 = jnp.zeros((384, 384), jnp.float32)
    wh2 = wh2.at[:256, :256].set(wp2).at[256:, 256:].set(wf2)
    bh2 = jnp.concatenate([bp2, bf2], axis=1)
    # H3: stacked (K,1) output heads -> lane-dense (384, 128)
    wh3 = jnp.zeros((384, OUT_PAD), jnp.float32)
    wh3 = wh3.at[:256, 0].set(wp3[:, 0]).at[256:, 1].set(wf3[:, 0])
    bh3 = jnp.zeros((1, OUT_PAD), jnp.float32)
    bh3 = bh3.at[0, 0].set(bp3[0, 0]).at[0, 1].set(bf3[0, 0])

    w1_pad = jnp.zeros((W1_K, 512), jnp.float32).at[:IN_FEATS, :].set(w1)
    weights = [w1_pad, w2, w3, w4, w5, wh1, wh2, wh3]
    biases = [b1, b2, b3, b4, b5, bh1, bh2, bh3]

    w_slab = jnp.zeros((W_ROWS, W_COLS), jnp.float32)
    for (k, n), r, w in zip(_LAYER_DIMS, _ROW_OFF, weights):
        w_slab = w_slab.at[r:r + k, :n].set(w)
    w_slab = w_slab.astype(jnp.bfloat16)            # ~2.6 MB resident

    b_slab = jnp.zeros((N_LAYERS, W_COLS), jnp.float32)
    for i, b in enumerate(biases):
        b_slab = b_slab.at[i, :b.shape[1]].set(b[0])
    return w_slab, b_slab


def fan_split_net(x, w_slab, b_slab):
    B = x.shape[0]
    B128 = _round_up(B, 128)
    if B128 <= 128:
        tile_b = 128
    else:
        # Up to 512 rows per step, but keep >= 2 steps so v7x's two TCs both work.
        tile_b = min(512, _round_up(pl.cdiv(B128, 2), 128))
    b_pad = _round_up(B, tile_b)

    # Only pad features 3 -> 16 (bf16) and rows -> tile multiple; no 128-wide slab.
    x_pad = jnp.zeros((b_pad, W1_K), jnp.bfloat16).at[:B, :IN_FEATS].set(
        x.astype(jnp.bfloat16))

    out = pl.pallas_call(
        _fan_split_kernel,
        out_shape=jax.ShapeDtypeStruct((b_pad, OUT_PAD), jnp.bfloat16),
        grid=(b_pad // tile_b,),
        in_specs=[
            pl.BlockSpec((tile_b, W1_K), lambda i: (i, 0)),          # per-tile input
            pl.BlockSpec((W_ROWS, W_COLS), lambda i: (0, 0)),        # resident weight slab
            pl.BlockSpec((N_LAYERS, W_COLS), lambda i: (0, 0)),      # resident bias slab
        ],
        out_specs=pl.BlockSpec((tile_b, OUT_PAD), lambda i: (i, 0)),
        compiler_params=pltpu.CompilerParams(
            dimension_semantics=("parallel",),       # megacore split on v7x
            vmem_limit_bytes=32 * 1024 * 1024,       # ~8 MB used; ample headroom
        ),
    )(x_pad, w_slab, b_slab)

    return out[:B, :2].astype(jnp.float32)


def _reference(x, params):
    """Pure-JAX reference mirroring the kernel's bf16-input / f32-accum numerics."""
    def dense(h, w, b):
        y = jnp.dot(h.astype(jnp.bfloat16), w.astype(jnp.bfloat16),
                    preferred_element_type=jnp.float32) + b
        return jnp.maximum(y, 0.0).astype(jnp.bfloat16)

    h = x
    for w, b in params[:5]:
        h = dense(h, w, b)
    p = dense(h, *params[5])
    p = dense(p, *params[6])
    q = dense(h, *params[8])
    q = dense(q, *params[9])
    wp3, bp3 = params[7]
    wf3, bf3 = params[10]
    p_out = jnp.dot(p, wp3.astype(jnp.bfloat16),
                    preferred_element_type=jnp.float32) + bp3
    q_out = jnp.dot(q, wf3.astype(jnp.bfloat16),
                    preferred_element_type=jnp.float32) + bf3
    return jnp.concatenate([p_out, q_out], axis=1)


if __name__ == "__main__":
    key = jax.random.PRNGKey(0)
    pkey, xkey_small, xkey_big = jax.random.split(key, 3)
    params = init_params(pkey)
    w_slab, b_slab = pack_params(params)

    # Test 1: small batch (single grid step).  Test 2: batch > tile and not a
    # multiple of the tile (exercises multi-tile residency, row padding,
    # and the parallel grid axis).
    for B, xkey in ((8, xkey_small), (300, xkey_big)):
        x = jax.random.normal(xkey, (B, IN_FEATS), dtype=jnp.float32)
        out = jax.block_until_ready(fan_split_net(x, w_slab, b_slab))
        ref = _reference(x, params)
        assert out.shape == (B, 2), (B, out.shape)
        assert jnp.allclose(out, ref, atol=1e-2, rtol=1e-2), (B, out, ref)

    print("KERNEL_OK")
</pallas_src>

<mosaic_0001>
module attributes {stable_mosaic.version = 11 : i64} {
  func.func @_fan_split_kernel(%arg0: i32, %arg1: memref<128x16xbf16, #tpu.memory_space<vmem>>, %arg2: memref<2576x512xbf16, #tpu.memory_space<vmem>>, %arg3: memref<8x512xf32, #tpu.memory_space<vmem>>, %arg4: memref<128x128xbf16, #tpu.memory_space<vmem>>) attributes {dimension_semantics = [#tpu.dimension_semantics<parallel>], iteration_bounds = array<i64: 1>, scalar_prefetch = 0 : i64, scratch_operands = 0 : i64, tpu.core_type = #tpu.core_type<tc>, window_params = [{transform_indices = @transform_0, window_bounds = array<i64: 128, 16>}, {pipeline_mode = #tpu.pipeline_mode<synchronous>, transform_indices = @transform_1, window_bounds = array<i64: 2576, 512>}, {pipeline_mode = #tpu.pipeline_mode<synchronous>, transform_indices = @transform_2, window_bounds = array<i64: 8, 512>}, {transform_indices = @transform_3, window_bounds = array<i64: 128, 128>}]} {
    %c0 = arith.constant 0 : index
    %c0_0 = arith.constant 0 : index
    %0 = vector.load %arg1[%c0, %c0_0] : memref<128x16xbf16, #tpu.memory_space<vmem>>, vector<128x16xbf16>
    %c0_1 = arith.constant 0 : index
    %c0_2 = arith.constant 0 : index
    %1 = vector.load %arg2[%c0_1, %c0_2] : memref<2576x512xbf16, #tpu.memory_space<vmem>>, vector<16x512xbf16>
    %c0_3 = arith.constant 0 : index
    %c0_4 = arith.constant 0 : index
    %2 = vector.load %arg3[%c0_3, %c0_4] : memref<8x512xf32, #tpu.memory_space<vmem>>, vector<1x512xf32>
    %cst = arith.constant dense<0.000000e+00> : vector<128x512xf32>
    %3 = tpu.matmul %0, %1, %cst {dimension_numbers = #tpu.dot_dimension_numbers<[1], [0], [0], [1], [0, 0, 1, 1], [], []>} : vector<128x16xbf16>, vector<16x512xbf16>, vector<128x512xf32> -> vector<128x512xf32>
    %4 = vector.broadcast %2 : vector<1x512xf32> to vector<128x512xf32>
    %5 = arith.addf %3, %4 : vector<128x512xf32>
    %cst_5 = arith.constant 0.000000e+00 : f32
    %6 = vector.broadcast %cst_5 : f32 to vector<128x512xf32>
    %7 = arith.maximumf %5, %6 : vector<128x512xf32>
    %8 = arith.truncf %7 : vector<128x512xf32> to vector<128x512xbf16>
    %c16 = arith.constant 16 : index
    %c0_6 = arith.constant 0 : index
    %9 = vector.load %arg2[%c16, %c0_6] : memref<2576x512xbf16, #tpu.memory_space<vmem>>, vector<512x512xbf16>
    %c1 = arith.constant 1 : index
    %c0_7 = arith.constant 0 : index
    %10 = vector.load %arg3[%c1, %c0_7] : memref<8x512xf32, #tpu.memory_space<vmem>>, vector<1x512xf32>
    %cst_8 = arith.constant dense<0.000000e+00> : vector<128x512xf32>
    %11 = tpu.matmul %8, %9, %cst_8 {dimension_numbers = #tpu.dot_dimension_numbers<[1], [0], [0], [1], [0, 0, 1, 1], [], []>} : vector<128x512xbf16>, vector<512x512xbf16>, vector<128x512xf32> -> vector<128x512xf32>
    %12 = vector.broadcast %10 : vector<1x512xf32> to vector<128x512xf32>
    %13 = arith.addf %11, %12 : vector<128x512xf32>
    %cst_9 = arith.constant 0.000000e+00 : f32
    %14 = vector.broadcast %cst_9 : f32 to vector<128x512xf32>
    %15 = arith.maximumf %13, %14 : vector<128x512xf32>
    %16 = arith.truncf %15 : vector<128x512xf32> to vector<128x512xbf16>
    %c528 = arith.constant 528 : index
    %c0_10 = arith.constant 0 : index
    %17 = vector.load %arg2[%c528, %c0_10] : memref<2576x512xbf16, #tpu.memory_space<vmem>>, vector<512x256xbf16>
    %c2 = arith.constant 2 : index
    %c0_11 = arith.constant 0 : index
    %18 = vector.load %arg3[%c2, %c0_11] : memref<8x512xf32, #tpu.memory_space<vmem>>, vector<1x256xf32>
    %cst_12 = arith.constant dense<0.000000e+00> : vector<128x256xf32>
    %19 = tpu.matmul %16, %17, %cst_12 {dimension_numbers = #tpu.dot_dimension_numbers<[1], [0], [0], [1], [0, 0, 1, 1], [], []>} : vector<128x512xbf16>, vector<512x256xbf16>, vector<128x256xf32> -> vector<128x256xf32>
    %20 = vector.broadcast %18 : vector<1x256xf32> to vector<128x256xf32>
    %21 = arith.addf %19, %20 : vector<128x256xf32>
    %cst_13 = arith.constant 0.000000e+00 : f32
    %22 = vector.broadcast %cst_13 : f32 to vector<128x256xf32>
    %23 = arith.maximumf %21, %22 : vector<128x256xf32>
    %24 = arith.truncf %23 : vector<128x256xf32> to vector<128x256xbf16>
    %c1040 = arith.constant 1040 : index
    %c0_14 = arith.constant 0 : index
    %25 = vector.load %arg2[%c1040, %c0_14] : memref<2576x512xbf16, #tpu.memory_space<vmem>>, vector<256x256xbf16>
    %c3 = arith.constant 3 : index
    %c0_15 = arith.constant 0 : index
    %26 = vector.load %arg3[%c3, %c0_15] : memref<8x512xf32, #tpu.memory_space<vmem>>, vector<1x256xf32>
    %cst_16 = arith.constant dense<0.000000e+00> : vector<128x256xf32>
    %27 = tpu.matmul %24, %25, %cst_16 {dimension_numbers = #tpu.dot_dimension_numbers<[1], [0], [0], [1], [0, 0, 1, 1], [], []>} : vector<128x256xbf16>, vector<256x256xbf16>, vector<128x256xf32> -> vector<128x256xf32>
    %28 = vector.broadcast %26 : vector<1x256xf32> to vector<128x256xf32>
    %29 = arith.addf %27, %28 : vector<128x256xf32>
    %cst_17 = arith.constant 0.000000e+00 : f32
    %30 = vector.broadcast %cst_17 : f32 to vector<128x256xf32>
    %31 = arith.maximumf %29, %30 : vector<128x256xf32>
    %32 = arith.truncf %31 : vector<128x256xf32> to vector<128x256xbf16>
    %c1296 = arith.constant 1296 : index
    %c0_18 = arith.constant 0 : index
    %33 = vector.load %arg2[%c1296, %c0_18] : memref<2576x512xbf16, #tpu.memory_space<vmem>>, vector<256x256xbf16>
    %c4 = arith.constant 4 : index
    %c0_19 = arith.constant 0 : index
    %34 = vector.load %arg3[%c4, %c0_19] : memref<8x512xf32, #tpu.memory_space<vmem>>, vector<1x256xf32>
    %cst_20 = arith.constant dense<0.000000e+00> : vector<128x256xf32>
    %35 = tpu.matmul %32, %33, %cst_20 {dimension_numbers = #tpu.dot_dimension_numbers<[1], [0], [0], [1], [0, 0, 1, 1], [], []>} : vector<128x256xbf16>, vector<256x256xbf16>, vector<128x256xf32> -> vector<128x256xf32>
    %36 = vector.broadcast %34 : vector<1x256xf32> to vector<128x256xf32>
    %37 = arith.addf %35, %36 : vector<128x256xf32>
    %cst_21 = arith.constant 0.000000e+00 : f32
    %38 = vector.broadcast %cst_21 : f32 to vector<128x256xf32>
    %39 = arith.maximumf %37, %38 : vector<128x256xf32>
    %40 = arith.truncf %39 : vector<128x256xf32> to vector<128x256xbf16>
    %c1552 = arith.constant 1552 : index
    %c0_22 = arith.constant 0 : index
    %41 = vector.load %arg2[%c1552, %c0_22] : memref<2576x512xbf16, #tpu.memory_space<vmem>>, vector<256x384xbf16>
    %c5 = arith.constant 5 : index
    %c0_23 = arith.constant 0 : index
    %42 = vector.load %arg3[%c5, %c0_23] : memref<8x512xf32, #tpu.memory_space<vmem>>, vector<1x384xf32>
    %cst_24 = arith.constant dense<0.000000e+00> : vector<128x384xf32>
    %43 = tpu.matmul %40, %41, %cst_24 {dimension_numbers = #tpu.dot_dimension_numbers<[1], [0], [0], [1], [0, 0, 1, 1], [], []>} : vector<128x256xbf16>, vector<256x384xbf16>, vector<128x384xf32> -> vector<128x384xf32>
    %44 = vector.broadcast %42 : vector<1x384xf32> to vector<128x384xf32>
    %45 = arith.addf %43, %44 : vector<128x384xf32>
    %cst_25 = arith.constant 0.000000e+00 : f32
    %46 = vector.broadcast %cst_25 : f32 to vector<128x384xf32>
    %47 = arith.maximumf %45, %46 : vector<128x384xf32>
    %48 = arith.truncf %47 : vector<128x384xf32> to vector<128x384xbf16>
    %c1808 = arith.constant 1808 : index
    %c0_26 = arith.constant 0 : index
    %49 = vector.load %arg2[%c1808, %c0_26] : memref<2576x512xbf16, #tpu.memory_space<vmem>>, vector<384x384xbf16>
    %c6 = arith.constant 6 : index
    %c0_27 = arith.constant 0 : index
    %50 = vector.load %arg3[%c6, %c0_27] : memref<8x512xf32, #tpu.memory_space<vmem>>, vector<1x384xf32>
    %cst_28 = arith.constant dense<0.000000e+00> : vector<128x384xf32>
    %51 = tpu.matmul %48, %49, %cst_28 {dimension_numbers = #tpu.dot_dimension_numbers<[1], [0], [0], [1], [0, 0, 1, 1], [], []>} : vector<128x384xbf16>, vector<384x384xbf16>, vector<128x384xf32> -> vector<128x384xf32>
    %52 = vector.broadcast %50 : vector<1x384xf32> to vector<128x384xf32>
    %53 = arith.addf %51, %52 : vector<128x384xf32>
    %cst_29 = arith.constant 0.000000e+00 : f32
    %54 = vector.broadcast %cst_29 : f32 to vector<128x384xf32>
    %55 = arith.maximumf %53, %54 : vector<128x384xf32>
    %56 = arith.truncf %55 : vector<128x384xf32> to vector<128x384xbf16>
    %c2192 = arith.constant 2192 : index
    %c0_30 = arith.constant 0 : index
    %57 = vector.load %arg2[%c2192, %c0_30] : memref<2576x512xbf16, #tpu.memory_space<vmem>>, vector<384x128xbf16>
    %c7 = arith.constant 7 : index
    %c0_31 = arith.constant 0 : index
    %58 = vector.load %arg3[%c7, %c0_31] : memref<8x512xf32, #tpu.memory_space<vmem>>, vector<1x128xf32>
    %cst_32 = arith.constant dense<0.000000e+00> : vector<128x128xf32>
    %59 = tpu.matmul %56, %57, %cst_32 {dimension_numbers = #tpu.dot_dimension_numbers<[1], [0], [0], [1], [0, 0, 1, 1], [], []>} : vector<128x384xbf16>, vector<384x128xbf16>, vector<128x128xf32> -> vector<128x128xf32>
    %60 = vector.broadcast %58 : vector<1x128xf32> to vector<128x128xf32>
    %61 = arith.addf %59, %60 : vector<128x128xf32>
    %62 = arith.truncf %61 : vector<128x128xf32> to vector<128x128xbf16>
    %c0_33 = arith.constant 0 : index
    %c0_34 = arith.constant 0 : index
    %63 = vector.load %arg4[%c0_33, %c0_34] : memref<128x128xbf16, #tpu.memory_space<vmem>>, vector<128x128xbf16>
    tpu.vector_store %arg4[%c0_33, %c0_34], %62 {strides = array<i32>} : memref<128x128xbf16, #tpu.memory_space<vmem>>, vector<128x128xbf16>,
    return
  }
  func.func @transform_0(%arg0: i32) -> (i32, i32) {
    %c0_i32 = arith.constant 0 : i32
    %c0_i32_0 = arith.constant 0 : i32
    return %arg0, %c0_i32 : i32, i32
  }
  func.func @transform_1(%arg0: i32) -> (i32, i32) {
    %c0_i32 = arith.constant 0 : i32
    %c0_i32_0 = arith.constant 0 : i32
    %c0_i32_1 = arith.constant 0 : i32
    return %c0_i32, %c0_i32_0 : i32, i32
  }
  func.func @transform_2(%arg0: i32) -> (i32, i32) {
    %c0_i32 = arith.constant 0 : i32
    %c0_i32_0 = arith.constant 0 : i32
    %c0_i32_1 = arith.constant 0 : i32
    return %c0_i32, %c0_i32_0 : i32, i32
  }
  func.func @transform_3(%arg0: i32) -> (i32, i32) {
    %c0_i32 = arith.constant 0 : i32
    %c0_i32_0 = arith.constant 0 : i32
    return %arg0, %c0_i32 : i32, i32
  }
}

</mosaic_0001>

<llo_original>
// kernel: tpu_custom_call.1
$region0: #{tpu_custom_call.1}
  #allocation0 [shape = 'u32[]', space=smem, size = 0x4, offset = 0x4, fixed_abs, tag = 'smem constant byte address 0x4 - core index']
  #allocation1 [shape = 'u32[144,128]{1,0:T(1,128)}', space=vmem, size = 0x12000, scoped, tag = 'internal scratch']
  %s0 = inlined_call_operand.vmem [shape: bf16[128,16], index: 0, kind: input, shape index: {}]
  %s1 = inlined_call_operand.hbm [shape: bf16[2576,512], index: 1, kind: input, shape index: {}]
  %s2 = inlined_call_operand.hbm [shape: f32[8,512], index: 2, kind: input, shape index: {}]
  %s3 = inlined_call_operand.hbm [shape: bf16[128,128], index: 3, kind: output, shape index: {}]
  %s4 = sld [smem:[#allocation0]]
  $region30: #{tpu_custom_call.1} parent=0
    _
  %s6 = ssub.s32 1, %s4
  %s7 = scalar_select 0, %s6, %s4
  $region1: #{tpu_custom_call.1} parent=0
    #allocation2 [shape = 'u8[2637824]{0}', space=vmem, size = 0x284000, scoped, tag = 'input window, operand 1, single buffered']
    #allocation3 [shape = 's32[1]{0}', space=sflag, size = 0x4, scoped, tag = 'scoped memory for tpu_custom_call.1']
    #allocation4 [shape = 's32[1]{0}', space=sflag, size = 0x4, scoped, tag = 'scoped memory for tpu_custom_call.1']
    #allocation5 [shape = 'u8[16384]{0}', space=vmem, size = 0x4000, scoped, tag = 'input window, operand 2, single buffered']
    #allocation6 [shape = 's32[1]{0}', space=sflag, size = 0x4, scoped, tag = 'scoped memory for tpu_custom_call.1']
    #allocation7 [shape = 'u8[32768]{0}', space=vmem, size = 0x8000, scoped, tag = 'output window, operand 0, single buffered']
    %8 = vsyncpa [#allocation3], 0
    %9 = vsyncpa [#allocation6], 0
    %10 = vsyncpa [#allocation4], 0
    // Predicated region
    $region2: #{tpu_custom_call.1} parent=1 // pred_check
      _
    $region3: #{tpu_custom_call.1} parent=1 // pred_check_branch
      %12 = sbr.rel (0) target = $region5
    $region4: #{tpu_custom_call.1} parent=1 // pred_region
      _
    $region5: #{tpu_custom_call.1} parent=1 // pred_fallthru
      _
    // Predicated region
    $region6: #{tpu_custom_call.1} parent=1 // pred_check
      _
    $region7: #{tpu_custom_call.1} parent=1 // pred_check_branch
      %14 = sbr.rel (0) target = $region9
    $region8: #{tpu_custom_call.1} parent=1 // pred_region
      %s16 = ssub.s32 82432, 82432
      %17 = vsyncadd [#allocation3], %s16
      %s18 = sshll.u32 [#allocation2], 4
      %s19 = int_to_ptr.vmem [resolvable:$true] %s18
      %24 = dma.hbm_to_vmem [thread:$0]  %s1, 82432, %s19, [#allocation3], 256, 256, 16
    $region9: #{tpu_custom_call.1} parent=1 // pred_fallthru
      _
    // Predicated region
    $region10: #{tpu_custom_call.1} parent=1 // pred_check
      _
    $region11: #{tpu_custom_call.1} parent=1 // pred_check_branch
      %26 = sbr.rel (0) target = $region13
    $region12: #{tpu_custom_call.1} parent=1 // pred_region
      %s28 = ssub.s32 512, 512
      %29 = vsyncadd [#allocation6], %s28
      %s31 = sshll.u32 [#allocation5], 4
      %s32 = int_to_ptr.vmem [resolvable:$true] %s31
      %34 = dma.hbm_to_vmem [thread:$0]  %s2, 512, %s32, [#allocation6]
    $region13: #{tpu_custom_call.1} parent=1 // pred_fallthru
      _
    // Predicated region
    $region14: #{tpu_custom_call.1} parent=1 // pred_check
      _
    $region15: #{tpu_custom_call.1} parent=1 // pred_check_branch
      %36 = sbr.rel (0) target = $region17
    $region16: #{tpu_custom_call.1} parent=1 // pred_region
      %37 = dma.done [#allocation3], 82432
    $region17: #{tpu_custom_call.1} parent=1 // pred_fallthru
      _
    // Predicated region
    $region18: #{tpu_custom_call.1} parent=1 // pred_check
      _
    $region19: #{tpu_custom_call.1} parent=1 // pred_check_branch
      %39 = sbr.rel (0) target = $region21
    $region20: #{tpu_custom_call.1} parent=1 // pred_region
      %40 = dma.done [#allocation6], 512
    $region21: #{tpu_custom_call.1} parent=1 // pred_fallthru
      _
    %v42 = vld [vmem:[%s0] sm:$0xf]
    %v43 = vld [vmem:[%s0 + $0x4] sm:$0xf]
    %v44 = vld [vmem:[%s0 + $0x8] sm:$0xf]
    %v45 = vld [vmem:[%s0 + $0xc] sm:$0xf]
    %v46 = vld [vmem:[%s0 + $0x10] sm:$0xf]
    %v47 = vld [vmem:[%s0 + $0x14] sm:$0xf]
    %v48 = vld [vmem:[%s0 + $0x18] sm:$0xf]
    %v49 = vld [vmem:[%s0 + $0x1c] sm:$0xf]
    %v50 = vld [vmem:[%s0 + $0x20] sm:$0xf]
    %v51 = vld [vmem:[%s0 + $0x24] sm:$0xf]
    %v52 = vld [vmem:[%s0 + $0x28] sm:$0xf]
    %v53 = vld [vmem:[%s0 + $0x2c] sm:$0xf]
    %v54 = vld [vmem:[%s0 + $0x30] sm:$0xf]
    %v55 = vld [vmem:[%s0 + $0x34] sm:$0xf]
    %v56 = vld [vmem:[%s0 + $0x38] sm:$0xf]
    %v57 = vld [vmem:[%s0 + $0x3c] sm:$0xf]
    %v58 = vld [vmem:[#allocation2] sm:$0xff]
    %v59 = vld [vmem:[#allocation2 + $0x8] sm:$0xff]
    %v60 = vld [vmem:[#allocation2 + $0x10] sm:$0xff]
    %v61 = vld [vmem:[#allocation2 + $0x18] sm:$0xff]
    %v62 = vld [vmem:[#allocation5] ss:$8 sm:$0xf]
    %v64 = vlaneseq
    %v65 = vshrl.u32 %v64, 7
    %v66 = vsub.s32 0, %v65
    %v67 = vrot.slane %v62, %v66
    %v68 = vlaneseq
    %v69 = vshrl.u32 %v68, 7
    %v70 = vsub.s32 1, %v69
    %v71 = vrot.slane %v62, %v70
    %v72 = vlaneseq
    %v73 = vshrl.u32 %v72, 7
    %v74 = vsub.s32 2, %v73
    %v75 = vrot.slane %v62, %v74
    %v76 = vlaneseq
    %v77 = vshrl.u32 %v76, 7
    %v78 = vsub.s32 3, %v77
    %v79 = vrot.slane %v62, %v78
    %v100 = vunpack.c.l.b16 %v42
    %v101 = vunpack.c.l.b16 %v43
    %v102 = vunpack.c.l.b16 %v44
    %v103 = vunpack.c.l.b16 %v45
    %v104 = vunpack.c.l.b16 %v46
    %v105 = vunpack.c.l.b16 %v47
    %v106 = vunpack.c.l.b16 %v48
    %v107 = vunpack.c.l.b16 %v49
    %v108 = vunpack.c.l.b16 %v50
    %v109 = vunpack.c.l.b16 %v51
    %v110 = vunpack.c.l.b16 %v52
    %v111 = vunpack.c.l.b16 %v53
    %v112 = vunpack.c.l.b16 %v54
    %v113 = vunpack.c.l.b16 %v55
    %v114 = vunpack.c.l.b16 %v56
    %v115 = vunpack.c.l.b16 %v57
    %v116 = vpack.c.b16 %v101, %v100
    %v117 = vpack.c.b16 %v103, %v102
    %v118 = vpack.c.b16 %v105, %v104
    %v119 = vpack.c.b16 %v107, %v106
    %v120 = vpack.c.b16 %v109, %v108
    %v121 = vpack.c.b16 %v111, %v110
    %v122 = vpack.c.b16 %v113, %v112
    %v123 = vpack.c.b16 %v115, %v114
    %v128 = vunpack.c.l.b16 %v58
    %v129 = vunpack.c.h.b16 %v58
    %v130 = vunpack.c.l.b16 %v59
    %v131 = vunpack.c.h.b16 %v59
    %v132 = vunpack.c.l.b16 %v60
    %v133 = vunpack.c.h.b16 %v60
    %v134 = vunpack.c.l.b16 %v61
    %v135 = vunpack.c.h.b16 %v61
    %v136 = vpack.c.b16 %v132, %v128
    %v137 = vpack.c.b16 %v133, %v129
    %v138 = vpack.c.b16 %v134, %v130
    %v139 = vpack.c.b16 %v135, %v131
    %vm144 = vcmask 130048
    %v146 = vsel %vm144, %v116, 0
    %v149 = vsel %vm144, %v117, 0
    %v152 = vsel %vm144, %v118, 0
    %v155 = vsel %vm144, %v119, 0
    %v158 = vsel %vm144, %v120, 0
    %v161 = vsel %vm144, %v121, 0
    %v164 = vsel %vm144, %v122, 0
    %v167 = vsel %vm144, %v123, 0
    %169 = vmatprep.subr.bf16.mxu0 %v137
    %170 = vmatpush1.bf16.msra.mxu0 %v136
    %171 = vmatprep.subr.bf16.mxu0 0
    %172 = vmatpush1.bf16.msra.mxu0 0
    %173 = vmatprep.subr.bf16.mxu0 0
    %174 = vmatpush1.bf16.msra.mxu0 0
    %175 = vmatprep.subr.bf16.mxu0 0
    %176 = vmatpush1.bf16.msra.mxu0 0
    %177 = vmatprep.subr.bf16.mxu0 0
    %178 = vmatpush1.bf16.msra.mxu0 0
    %179 = vmatprep.subr.bf16.mxu0 0
    %180 = vmatpush1.bf16.msra.mxu0 0
    %181 = vmatprep.subr.bf16.mxu0 0
    %182 = vmatpush1.bf16.msra.mxu0 0
    %183 = vmatprep.subr.bf16.mxu0 0
    %184 = vmatpush1.bf16.msra.mxu0 0
    %185 = vmatprep.subr.bf16.mxu0 0
    %186 = vmatpush1.bf16.msra.mxu0 0
    %187 = vmatprep.subr.bf16.mxu0 0
    %188 = vmatpush1.bf16.msra.mxu0 0
    %189 = vmatprep.subr.bf16.mxu0 0
    %190 = vmatpush1.bf16.msra.mxu0 0
    %191 = vmatprep.subr.bf16.mxu0 0
    %192 = vmatpush1.bf16.msra.mxu0 0
    %193 = vmatprep.subr.bf16.mxu0 0
    %194 = vmatpush1.bf16.msra.mxu0 0
    %195 = vmatprep.subr.bf16.mxu0 0
    %196 = vmatpush1.bf16.msra.mxu0 0
    %197 = vmatprep.subr.bf16.mxu0 0
    %198 = vmatpush1.bf16.msra.mxu0 0
    %199 = vmatprep.subr.bf16.mxu0 0
    %200 = vmatpush1.bf16.msra.mxu0 0
    %201 = vmatprep.mubr.bf16.mxu0 0
    %202 = vmatmul.mubr.bf16.gmra.mrb[0].mxu0 %v146
    %v203 = vpop.f32.mrb[0].mxu0
    %v204 = vadd.f32 %v67, %v203
    %v205 = vpop.f32.mrb[0].mxu0
    %v206 = vadd.f32 %v71, %v205
    %v207 = vpop.f32.mrb[0].mxu0
    %v208 = vadd.f32 %v67, %v207
    %v209 = vpop.f32.mrb[0].mxu0
    %v210 = vadd.f32 %v71, %v209
    %211 = vmatprep.mubr.bf16.mxu0 0
    %212 = vmatmul.mubr.bf16.gmra.mrb[0].mxu0 %v149
    %v213 = vpop.f32.mrb[0].mxu0
    %v214 = vadd.f32 %v67, %v213
    %v215 = vpop.f32.mrb[0].mxu0
    %v216 = vadd.f32 %v71, %v215
    %v217 = vpop.f32.mrb[0].mxu0
    %v218 = vadd.f32 %v67, %v217
    %v219 = vpop.f32.mrb[0].mxu0
    %v220 = vadd.f32 %v71, %v219
    %221 = vmatprep.mubr.bf16.mxu0 0
    %222 = vmatmul.mubr.bf16.gmra.mrb[0].mxu0 %v152
    %v223 = vpop.f32.mrb[0].mxu0
    %v224 = vadd.f32 %v67, %v223
    %v225 = vpop.f32.mrb[0].mxu0
    %v226 = vadd.f32 %v71, %v225
    %v227 = vpop.f32.mrb[0].mxu0
    %v228 = vadd.f32 %v67, %v227
    %v229 = vpop.f32.mrb[0].mxu0
    %v230 = vadd.f32 %v71, %v229
    %231 = vmatprep.mubr.bf16.mxu0 0
    %232 = vmatmul.mubr.bf16.gmra.mrb[0].mxu0 %v155
    %v233 = vpop.f32.mrb[0].mxu0
    %v234 = vadd.f32 %v67, %v233
    %v235 = vpop.f32.mrb[0].mxu0
    %v236 = vadd.f32 %v71, %v235
    %v237 = vpop.f32.mrb[0].mxu0
    %v238 = vadd.f32 %v67, %v237
    %v239 = vpop.f32.mrb[0].mxu0
    %v240 = vadd.f32 %v71, %v239
    %241 = vmatprep.mubr.bf16.mxu0 0
    %242 = vmatmul.mubr.bf16.gmra.mrb[0].mxu0 %v158
    %v243 = vpop.f32.mrb[0].mxu0
    %v244 = vadd.f32 %v67, %v243
    %v245 = vpop.f32.mrb[0].mxu0
    %v246 = vadd.f32 %v71, %v245
    %v247 = vpop.f32.mrb[0].mxu0
    %v248 = vadd.f32 %v67, %v247
    %v249 = vpop.f32.mrb[0].mxu0
    %v250 = vadd.f32 %v71, %v249
    %251 = vmatprep.mubr.bf16.mxu0 0
    %252 = vmatmul.mubr.bf16.gmra.mrb[0].mxu0 %v161
    %v253 = vpop.f32.mrb[0].mxu0
    %v254 = vadd.f32 %v67, %v253
    %v255 = vpop.f32.mrb[0].mxu0
    %v256 = vadd.f32 %v71, %v255
    %v257 = vpop.f32.mrb[0].mxu0
    %v258 = vadd.f32 %v67, %v257
    %v259 = vpop.f32.mrb[0].mxu0
    %v260 = vadd.f32 %v71, %v259
    %261 = vmatprep.mubr.bf16.mxu0 0
    %262 = vmatmul.mubr.bf16.gmra.mrb[0].mxu0 %v164
    %v263 = vpop.f32.mrb[0].mxu0
    %v264 = vadd.f32 %v67, %v263
    %v265 = vpop.f32.mrb[0].mxu0
    %v266 = vadd.f32 %v71, %v265
    %v267 = vpop.f32.mrb[0].mxu0
    %v268 = vadd.f32 %v67, %v267
    %v269 = vpop.f32.mrb[0].mxu0
    %v270 = vadd.f32 %v71, %v269
    %271 = vmatprep.mubr.bf16.mxu0 0
    %272 = vmatmul.mubr.bf16.gmra.mrb[0].mxu0 %v167
    %v273 = vpop.f32.mrb[0].mxu0
    %v274 = vadd.f32 %v67, %v273
    %v275 = vpop.f32.mrb[0].mxu0
    %v276 = vadd.f32 %v71, %v275
    %v277 = vpop.f32.mrb[0].mxu0
    %v278 = vadd.f32 %v67, %v277
    %v279 = vpop.f32.mrb[0].mxu0
    %v280 = vadd.f32 %v71, %v279
    %281 = vdwg.mxu0
    %282 = vmatprep.subr.bf16.mxu0 %v139
    %283 = vmatpush1.bf16.msra.mxu0 %v138
    %284 = vmatprep.subr.bf16.mxu0 0
    %285 = vmatpush1.bf16.msra.mxu0 0
    %286 = vmatprep.subr.bf16.mxu0 0
    %287 = vmatpush1.bf16.msra.mxu0 0
    %288 = vmatprep.subr.bf16.mxu0 0
    %289 = vmatpush1.bf16.msra.mxu0 0
    %290 = vmatprep.subr.bf16.mxu0 0
    %291 = vmatpush1.bf16.msra.mxu0 0
    %292 = vmatprep.subr.bf16.mxu0 0
    %293 = vmatpush1.bf16.msra.mxu0 0
    %294 = vmatprep.subr.bf16.mxu0 0
    %295 = vmatpush1.bf16.msra.mxu0 0
    %296 = vmatprep.subr.bf16.mxu0 0
    %297 = vmatpush1.bf16.msra.mxu0 0
    %298 = vmatprep.subr.bf16.mxu0 0
    %299 = vmatpush1.bf16.msra.mxu0 0
    %300 = vmatprep.subr.bf16.mxu0 0
    %301 = vmatpush1.bf16.msra.mxu0 0
    %302 = vmatprep.subr.bf16.mxu0 0
    %303 = vmatpush1.bf16.msra.mxu0 0
    %304 = vmatprep.subr.bf16.mxu0 0
    %305 = vmatpush1.bf16.msra.mxu0 0
    %306 = vmatprep.subr.bf16.mxu0 0
    %307 = vmatpush1.bf16.msra.mxu0 0
    %308 = vmatprep.subr.bf16.mxu0 0
    %309 = vmatpush1.bf16.msra.mxu0 0
    %310 = vmatprep.subr.bf16.mxu0 0
    %311 = vmatpush1.bf16.msra.mxu0 0
    %312 = vmatprep.subr.bf16.mxu0 0
    %313 = vmatpush1.bf16.msra.mxu0 0
    %314 = vmatprep.mubr.bf16.mxu0 0
    %315 = vmatmul.mubr.bf16.gmra.mrb[0].mxu0 %v146
    %v316 = vpop.f32.mrb[0].mxu0
    %v317 = vadd.f32 %v75, %v316
    %v318 = vpop.f32.mrb[0].mxu0
    %v319 = vadd.f32 %v79, %v318
    %v320 = vpop.f32.mrb[0].mxu0
    %v321 = vadd.f32 %v75, %v320
    %v322 = vpop.f32.mrb[0].mxu0
    %v323 = vadd.f32 %v79, %v322
    %324 = vmatprep.mubr.bf16.mxu0 0
    %325 = vmatmul.mubr.bf16.gmra.mrb[0].mxu0 %v149
    %v326 = vpop.f32.mrb[0].mxu0
    %v327 = vadd.f32 %v75, %v326
    %v328 = vpop.f32.mrb[0].mxu0
    %v329 = vadd.f32 %v79, %v328
    %v330 = vpop.f32.mrb[0].mxu0
    %v331 = vadd.f32 %v75, %v330
    %v332 = vpop.f32.mrb[0].mxu0
    %v333 = vadd.f32 %v79, %v332
    %334 = vmatprep.mubr.bf16.mxu0 0
    %335 = vmatmul.mubr.bf16.gmra.mrb[0].mxu0 %v152
    %v336 = vpop.f32.mrb[0].mxu0
    %v337 = vadd.f32 %v75, %v336
    %v338 = vpop.f32.mrb[0].mxu0
    %v339 = vadd.f32 %v79, %v338
    %v340 = vpop.f32.mrb[0].mxu0
    %v341 = vadd.f32 %v75, %v340
    %v342 = vpop.f32.mrb[0].mxu0
    %v343 = vadd.f32 %v79, %v342
    %344 = vmatprep.mubr.bf16.mxu0 0
    %345 = vmatmul.mubr.bf16.gmra.mrb[0].mxu0 %v155
    %v346 = vpop.f32.mrb[0].mxu0
    %v347 = vadd.f32 %v75, %v346
    %v348 = vpop.f32.mrb[0].mxu0
    %v349 = vadd.f32 %v79, %v348
    %v350 = vpop.f32.mrb[0].mxu0
    %v351 = vadd.f32 %v75, %v350
    %v352 = vpop.f32.mrb[0].mxu0
    %v353 = vadd.f32 %v79, %v352
    %354 = vmatprep.mubr.bf16.mxu0 0
    %355 = vmatmul.mubr.bf16.gmra.mrb[0].mxu0 %v158
    %v356 = vpop.f32.mrb[0].mxu0
    %v357 = vadd.f32 %v75, %v356
    %v358 = vpop.f32.mrb[0].mxu0
    %v359 = vadd.f32 %v79, %v358
    %v360 = vpop.f32.mrb[0].mxu0
    %v361 = vadd.f32 %v75, %v360
    %v362 = vpop.f32.mrb[0].mxu0
    %v363 = vadd.f32 %v79, %v362
    %364 = vmatprep.mubr.bf16.mxu0 0
    %365 = vmatmul.mubr.bf16.gmra.mrb[0].mxu0 %v161
    %v366 = vpop.f32.mrb[0].mxu0
    %v367 = vadd.f32 %v75, %v366
    %v368 = vpop.f32.mrb[0].mxu0
    %v369 = vadd.f32 %v79, %v368
    %v370 = vpop.f32.mrb[0].mxu0
    %v371 = vadd.f32 %v75, %v370
    %v372 = vpop.f32.mrb[0].mxu0
    %v373 = vadd.f32 %v79, %v372
    %374 = vmatprep.mubr.bf16.mxu0 0
    %375 = vmatmul.mubr.bf16.gmra.mrb[0].mxu0 %v164
    %v376 = vpop.f32.mrb[0].mxu0
    %v377 = vadd.f32 %v75, %v376
    %v378 = vpop.f32.mrb[0].mxu0
    %v379 = vadd.f32 %v79, %v378
    %v380 = vpop.f32.mrb[0].mxu0
    %v381 = vadd.f32 %v75, %v380
    %v382 = vpop.f32.mrb[0].mxu0
    %v383 = vadd.f32 %v79, %v382
    %384 = vmatprep.mubr.bf16.mxu0 0
    %385 = vmatmul.mubr.bf16.gmra.mrb[0].mxu0 %v167
    %v386 = vpop.f32.mrb[0].mxu0
    %v387 = vadd.f32 %v75, %v386
    %v388 = vpop.f32.mrb[0].mxu0
    %v389 = vadd.f32 %v79, %v388
    %v390 = vpop.f32.mrb[0].mxu0
    %v391 = vadd.f32 %v75, %v390
    %v392 = vpop.f32.mrb[0].mxu0
    %v393 = vadd.f32 %v79, %v392
    %394 = vdwg.mxu0
    %v395 = vmax.f32 %v204, 0.0
    %v396 = vmax.f32 %v206, 0.0
    %v397 = vmax.f32 %v317, 0.0
    %v398 = vmax.f32 %v319, 0.0
    %v399 = vmax.f32 %v208, 0.0
    %v400 = vmax.f32 %v210, 0.0
    %v401 = vmax.f32 %v321, 0.0
    %v402 = vmax.f32 %v323, 0.0
    %v403 = vmax.f32 %v214, 0.0
    %v404 = vmax.f32 %v216, 0.0
    %v405 = vmax.f32 %v327, 0.0
    %v406 = vmax.f32 %v329, 0.0
    %v407 = vmax.f32 %v218, 0.0
    %v408 = vmax.f32 %v220, 0.0
    %v409 = vmax.f32 %v331, 0.0
    %v410 = vmax.f32 %v333, 0.0
    %v411 = vmax.f32 %v224, 0.0
    %v412 = vmax.f32 %v226, 0.0
    %v413 = vmax.f32 %v337, 0.0
    %v414 = vmax.f32 %v339, 0.0
    %v415 = vmax.f32 %v228, 0.0
    %v416 = vmax.f32 %v230, 0.0
    %v417 = vmax.f32 %v341, 0.0
    %v418 = vmax.f32 %v343, 0.0
    %v419 = vmax.f32 %v234, 0.0
    %v420 = vmax.f32 %v236, 0.0
    %v421 = vmax.f32 %v347, 0.0
    %v422 = vmax.f32 %v349, 0.0
    %v423 = vmax.f32 %v238, 0.0
    %v424 = vmax.f32 %v240, 0.0
    %v425 = vmax.f32 %v351, 0.0
    %v426 = vmax.f32 %v353, 0.0
    %v427 = vmax.f32 %v244, 0.0
    %v428 = vmax.f32 %v246, 0.0
    %v429 = vmax.f32 %v357, 0.0
    %v430 = vmax.f32 %v359, 0.0
    %v431 = vmax.f32 %v248, 0.0
    %v432 = vmax.f32 %v250, 0.0
    %v433 = vmax.f32 %v361, 0.0
    %v434 = vmax.f32 %v363, 0.0
    %v435 = vmax.f32 %v254, 0.0
    %v436 = vmax.f32 %v256, 0.0
    %v437 = vmax.f32 %v367, 0.0
    %v438 = vmax.f32 %v369, 0.0
    %v439 = vmax.f32 %v258, 0.0
    %v440 = vmax.f32 %v260, 0.0
    %v441 = vmax.f32 %v371, 0.0
    %v442 = vmax.f32 %v373, 0.0
    %v443 = vmax.f32 %v264, 0.0
    %v444 = vmax.f32 %v266, 0.0
    %v445 = vmax.f32 %v377, 0.0
    %v446 = vmax.f32 %v379, 0.0
    %v447 = vmax.f32 %v268, 0.0
    %v448 = vmax.f32 %v270, 0.0
    %v449 = vmax.f32 %v381, 0.0
    %v450 = vmax.f32 %v383, 0.0
    %v451 = vmax.f32 %v274, 0.0
    %v452 = vmax.f32 %v276, 0.0
    %v453 = vmax.f32 %v387, 0.0
    %v454 = vmax.f32 %v389, 0.0
    %v455 = vmax.f32 %v278, 0.0
    %v456 = vmax.f32 %v280, 0.0
    %v457 = vmax.f32 %v391, 0.0
    %v458 = vmax.f32 %v393, 0.0
    %v459 = vpack.c.bf16 %v399, %v395
    %v460 = vpack.c.bf16 %v400, %v396
    %v461 = vpack.c.bf16 %v401, %v397
    %v462 = vpack.c.bf16 %v402, %v398
    %v463 = vpack.c.bf16 %v407, %v403
    %v464 = vpack.c.bf16 %v408, %v404
    %v465 = vpack.c.bf16 %v409, %v405
    %v466 = vpack.c.bf16 %v410, %v406
    %v467 = vpack.c.bf16 %v415, %v411
    %v468 = vpack.c.bf16 %v416, %v412
    %v469 = vpack.c.bf16 %v417, %v413
    %v470 = vpack.c.bf16 %v418, %v414
    %v471 = vpack.c.bf16 %v423, %v419
    %v472 = vpack.c.bf16 %v424, %v420
    %v473 = vpack.c.bf16 %v425, %v421
    %v474 = vpack.c.bf16 %v426, %v422
    %v475 = vpack.c.bf16 %v431, %v427
    %v476 = vpack.c.bf16 %v432, %v428
    %v477 = vpack.c.bf16 %v433, %v429
    %v478 = vpack.c.bf16 %v434, %v430
    %v479 = vpack.c.bf16 %v439, %v435
    %v480 = vpack.c.bf16 %v440, %v436
    %v481 = vpack.c.bf16 %v441, %v437
    %v482 = vpack.c.bf16 %v442, %v438
    %v483 = vpack.c.bf16 %v447, %v443
    %v484 = vpack.c.bf16 %v448, %v444
    %v485 = vpack.c.bf16 %v449, %v445
    %v486 = vpack.c.bf16 %v450, %v446
    %v487 = vpack.c.bf16 %v455, %v451
    %v488 = vpack.c.bf16 %v456, %v452
    %v489 = vpack.c.bf16 %v457, %v453
    %v490 = vpack.c.bf16 %v458, %v454
    %v491 = vld [vmem:[#allocation2 + $0x20] sm:$0xff]
    %v492 = vld [vmem:[#allocation2 + $0x28] sm:$0xff]
    %v493 = vld [vmem:[#allocation2 + $0x30] sm:$0xff]
    %v494 = vld [vmem:[#allocation2 + $0x38] sm:$0xff]
    %v495 = vld [vmem:[#allocation2 + $0x40] sm:$0xff]
    %v496 = vld [vmem:[#allocation2 + $0x48] sm:$0xff]
    %v497 = vld [vmem:[#allocation2 + $0x50] sm:$0xff]
    %v498 = vld [vmem:[#allocation2 + $0x58] sm:$0xff]
    %v499 = vld [vmem:[#allocation2 + $0x60] sm:$0xff]
    %v500 = vld [vmem:[#allocation2 + $0x68] sm:$0xff]
    %v501 = vld [vmem:[#allocation2 + $0x70] sm:$0xff]
    %v502 = vld [vmem:[#allocation2 + $0x78] sm:$0xff]
    %v503 = vld [vmem:[#allocation2 + $0x80] sm:$0xff]
    %v504 = vld [vmem:[#allocation2 + $0x88] sm:$0xff]
    %v505 = vld [vmem:[#allocation2 + $0x90] sm:$0xff]
    %v506 = vld [vmem:[#allocation2 + $0x98] sm:$0xff]
    %v507 = vld [vmem:[#allocation2 + $0xa0] sm:$0xff]
    %v508 = vld [vmem:[#allocation2 + $0xa8] sm:$0xff]
    %v509 = vld [vmem:[#allocation2 + $0xb0] sm:$0xff]
    %v510 = vld [vmem:[#allocation2 + $0xb8] sm:$0xff]
    %v511 = vld [vmem:[#allocation2 + $0xc0] sm:$0xff]
    %v512 = vld [vmem:[#allocation2 + $0xc8] sm:$0xff]
    %v513 = vld [vmem:[#allocation2 + $0xd0] sm:$0xff]
    %v514 = vld [vmem:[#allocation2 + $0xd8] sm:$0xff]
    %v515 = vld [vmem:[#allocation2 + $0xe0] sm:$0xff]
    %v516 = vld [vmem:[#allocation2 + $0xe8] sm:$0xff]
    %v517 = vld [vmem:[#allocation2 + $0xf0] sm:$0xff]
    %v518 = vld [vmem:[#allocation2 + $0xf8] sm:$0xff]
    %v519 = vld [vmem:[#allocation2 + $0x100] sm:$0xff]
    %v520 = vld [vmem:[#allocation2 + $0x108] sm:$0xff]
    %v521 = vld [vmem:[#allocation2 + $0x110] sm:$0xff]
    %v522 = vld [vmem:[#allocation2 + $0x118] sm:$0xff]
    %v523 = vld [vmem:[#allocation2 + $0x120] sm:$0xff]
    %v524 = vld [vmem:[#allocation2 + $0x128] sm:$0xff]
    %v525 = vld [vmem:[#allocation2 + $0x130] sm:$0xff]
    %v526 = vld [vmem:[#allocation2 + $0x138] sm:$0xff]
    %v527 = vld [vmem:[#allocation2 + $0x140] sm:$0xff]
    %v528 = vld [vmem:[#allocation2 + $0x148] sm:$0xff]
    %v529 = vld [vmem:[#allocation2 + $0x150] sm:$0xff]
    %v530 = vld [vmem:[#allocation2 + $0x158] sm:$0xff]
    %v531 = vld [vmem:[#allocation2 + $0x160] sm:$0xff]
    %v532 = vld [vmem:[#allocation2 + $0x168] sm:$0xff]
    %v533 = vld [vmem:[#allocation2 + $0x170] sm:$0xff]
    %v534 = vld [vmem:[#allocation2 + $0x178] sm:$0xff]
    %v535 = vld [vmem:[#allocation2 + $0x180] sm:$0xff]
    %v536 = vld [vmem:[#allocation2 + $0x188] sm:$0xff]
    %v537 = vld [vmem:[#allocation2 + $0x190] sm:$0xff]
    %v538 = vld [vmem:[#allocation2 + $0x198] sm:$0xff]
    %v539 = vld [vmem:[#allocation2 + $0x1a0] sm:$0xff]
    %v540 = vld [vmem:[#allocation2 + $0x1a8] sm:$0xff]
    %v541 = vld [vmem:[#allocation2 + $0x1b0] sm:$0xff]
    %v542 = vld [vmem:[#allocation2 + $0x1b8] sm:$0xff]
    %v543 = vld [vmem:[#allocation2 + $0x1c0] sm:$0xff]
    %v544 = vld [vmem:[#allocation2 + $0x1c8] sm:$0xff]
    %v545 = vld [vmem:[#allocation2 + $0x1d0] sm:$0xff]
    %v546 = vld [vmem:[#allocation2 + $0x1d8] sm:$0xff]
    %v547 = vld [vmem:[#allocation2 + $0x1e0] sm:$0xff]
    %v548 = vld [vmem:[#allocation2 + $0x1e8] sm:$0xff]
    %v549 = vld [vmem:[#allocation2 + $0x1f0] sm:$0xff]
    %v550 = vld [vmem:[#allocation2 + $0x1f8] sm:$0xff]
    %v551 = vld [vmem:[#allocation2 + $0x200] sm:$0xff]
    %v552 = vld [vmem:[#allocation2 + $0x208] sm:$0xff]
    %v553 = vld [vmem:[#allocation2 + $0x210] sm:$0xff]
    %v554 = vld [vmem:[#allocation2 + $0x218] sm:$0xff]
    %v555 = vld [vmem:[#allocation2 + $0x220] sm:$0xff]
    %v556 = vld [vmem:[#allocation2 + $0x228] sm:$0xff]
    %v557 = vld [vmem:[#allocation2 + $0x230] sm:$0xff]
    %v558 = vld [vmem:[#allocation2 + $0x238] sm:$0xff]
    %v559 = vld [vmem:[#allocation2 + $0x240] sm:$0xff]
    %v560 = vld [vmem:[#allocation2 + $0x248] sm:$0xff]
    %v561 = vld [vmem:[#allocation2 + $0x250] sm:$0xff]
    %v562 = vld [vmem:[#allocation2 + $0x258] sm:$0xff]
    %v563 = vld [vmem:[#allocation2 + $0x260] sm:$0xff]
    %v564 = vld [vmem:[#allocation2 + $0x268] sm:$0xff]
    %v565 = vld [vmem:[#allocation2 + $0x270] sm:$0xff]
    %v566 = vld [vmem:[#allocation2 + $0x278] sm:$0xff]
    %v567 = vld [vmem:[#allocation2 + $0x280] sm:$0xff]
    %v568 = vld [vmem:[#allocation2 + $0x288] sm:$0xff]
    %v569 = vld [vmem:[#allocation2 + $0x290] sm:$0xff]
    %v570 = vld [vmem:[#allocation2 + $0x298] sm:$0xff]
    %v571 = vld [vmem:[#allocation2 + $0x2a0] sm:$0xff]
    %v572 = vld [vmem:[#allocation2 + $0x2a8] sm:$0xff]
    %v573 = vld [vmem:[#allocation2 + $0x2b0] sm:$0xff]
    %v574 = vld [vmem:[#allocation2 + $0x2b8] sm:$0xff]
    %v575 = vld [vmem:[#allocation2 + $0x2c0] sm:$0xff]
    %v576 = vld [vmem:[#allocation2 + $0x2c8] sm:$0xff]
    %v577 = vld [vmem:[#allocation2 + $0x2d0] sm:$0xff]
    %v578 = vld [vmem:[#allocation2 + $0x2d8] sm:$0xff]
    %v579 = vld [vmem:[#allocation2 + $0x2e0] sm:$0xff]
    %v580 = vld [vmem:[#allocation2 + $0x2e8] sm:$0xff]
    %v581 = vld [vmem:[#allocation2 + $0x2f0] sm:$0xff]
    %v582 = vld [vmem:[#allocation2 + $0x2f8] sm:$0xff]
    %v583 = vld [vmem:[#allocation2 + $0x300] sm:$0xff]
    %v584 = vld [vmem:[#allocation2 + $0x308] sm:$0xff]
    %v585 = vld [vmem:[#allocation2 + $0x310] sm:$0xff]
    %v586 = vld [vmem:[#allocation2 + $0x318] sm:$0xff]
    %v587 = vld [vmem:[#allocation2 + $0x320] sm:$0xff]
    %v588 = vld [vmem:[#allocation2 + $0x328] sm:$0xff]
    %v589 = vld [vmem:[#allocation2 + $0x330] sm:$0xff]
    %v590 = vld [vmem:[#allocation2 + $0x338] sm:$0xff]
    %v591 = vld [vmem:[#allocation2 + $0x340] sm:$0xff]
    %v592 = vld [vmem:[#allocation2 + $0x348] sm:$0xff]
    %v593 = vld [vmem:[#allocation2 + $0x350] sm:$0xff]
    %v594 = vld [vmem:[#allocation2 + $0x358] sm:$0xff]
    %v595 = vld [vmem:[#allocation2 + $0x360] sm:$0xff]
    %v596 = vld [vmem:[#allocation2 + $0x368] sm:$0xff]
    %v597 = vld [vmem:[#allocation2 + $0x370] sm:$0xff]
    %v598 = vld [vmem:[#allocation2 + $0x378] sm:$0xff]
    %v599 = vld [vmem:[#allocation2 + $0x380] sm:$0xff]
    %v600 = vld [vmem:[#allocation2 + $0x388] sm:$0xff]
    %v601 = vld [vmem:[#allocation2 + $0x390] sm:$0xff]
    %v602 = vld [vmem:[#allocation2 + $0x398] sm:$0xff]
    %v603 = vld [vmem:[#allocation2 + $0x3a0] sm:$0xff]
    %v604 = vld [vmem:[#allocation2 + $0x3a8] sm:$0xff]
    %v605 = vld [vmem:[#allocation2 + $0x3b0] sm:$0xff]
    %v606 = vld [vmem:[#allocation2 + $0x3b8] sm:$0xff]
    %v607 = vld [vmem:[#allocation2 + $0x3c0] sm:$0xff]
    %v608 = vld [vmem:[#allocation2 + $0x3c8] sm:$0xff]
    %v609 = vld [vmem:[#allocation2 + $0x3d0] sm:$0xff]
    %v610 = vld [vmem:[#allocation2 + $0x3d8] sm:$0xff]
    %v611 = vld [vmem:[#allocation2 + $0x3e0] sm:$0xff]
    %v612 = vld [vmem:[#allocation2 + $0x3e8] sm:$0xff]
    %v613 = vld [vmem:[#allocation2 + $0x3f0] sm:$0xff]
    %v614 = vld [vmem:[#allocation2 + $0x3f8] sm:$0xff]
    %v615 = vld [vmem:[#allocation2 + $0x400] sm:$0xff]
    %v616 = vld [vmem:[#allocation2 + $0x408] sm:$0xff]
    %v617 = vld [vmem:[#allocation2 + $0x410] sm:$0xff]
    %v618 = vld [vmem:[#allocation2 + $0x418] sm:$0xff]
    %s619 = scalar_lea.vmem [#allocation5], 1
    %v620 = vld [vmem:[%s619] ss:$8 sm:$0xf]
    %v622 = vlaneseq
    %v623 = vshrl.u32 %v622, 7
    %v624 = vsub.s32 0, %v623
    %v625 = vrot.slane %v620, %v624
    %v626 = vlaneseq
    %v627 = vshrl.u32 %v626, 7
    %v628 = vsub.s32 1, %v627
    %v629 = vrot.slane %v620, %v628
    %v630 = vlaneseq
    %v631 = vshrl.u32 %v630, 7
    %v632 = vsub.s32 2, %v631
    %v633 = vrot.slane %v620, %v632
    %v634 = vlaneseq
    %v635 = vshrl.u32 %v634, 7
    %v636 = vsub.s32 3, %v635
    %v637 = vrot.slane %v620, %v636
    %v770 = vunpack.c.l.b16 %v491
    %v771 = vunpack.c.h.b16 %v491
    %v772 = vunpack.c.l.b16 %v492
    %v773 = vunpack.c.h.b16 %v492
    %v774 = vunpack.c.l.b16 %v493
    %v775 = vunpack.c.h.b16 %v493
    %v776 = vunpack.c.l.b16 %v494
    %v777 = vunpack.c.h.b16 %v494
    %v778 = vunpack.c.l.b16 %v495
    %v779 = vunpack.c.h.b16 %v495
    %v780 = vunpack.c.l.b16 %v496
    %v781 = vunpack.c.h.b16 %v496
    %v782 = vunpack.c.l.b16 %v497
    %v783 = vunpack.c.h.b16 %v497
    %v784 = vunpack.c.l.b16 %v498
    %v785 = vunpack.c.h.b16 %v498
    %v786 = vunpack.c.l.b16 %v499
    %v787 = vunpack.c.h.b16 %v499
    %v788 = vunpack.c.l.b16 %v500
    %v789 = vunpack.c.h.b16 %v500
    %v790 = vunpack.c.l.b16 %v501
    %v791 = vunpack.c.h.b16 %v501
    %v792 = vunpack.c.l.b16 %v502
    %v793 = vunpack.c.h.b16 %v502
    %v794 = vunpack.c.l.b16 %v503
    %v795 = vunpack.c.h.b16 %v503
    %v796 = vunpack.c.l.b16 %v504
    %v797 = vunpack.c.h.b16 %v504
    %v798 = vunpack.c.l.b16 %v505
    %v799 = vunpack.c.h.b16 %v505
    %v800 = vunpack.c.l.b16 %v506
    %v801 = vunpack.c.h.b16 %v506
    %v802 = vunpack.c.l.b16 %v507
    %v803 = vunpack.c.h.b16 %v507
    %v804 = vunpack.c.l.b16 %v508
    %v805 = vunpack.c.h.b16 %v508
    %v806 = vunpack.c.l.b16 %v509
    %v807 = vunpack.c.h.b16 %v509
    %v808 = vunpack.c.l.b16 %v510
    %v809 = vunpack.c.h.b16 %v510
    %v810 = vunpack.c.l.b16 %v511
    %v811 = vunpack.c.h.b16 %v511
    %v812 = vunpack.c.l.b16 %v512
    %v813 = vunpack.c.h.b16 %v512
    %v814 = vunpack.c.l.b16 %v513
    %v815 = vunpack.c.h.b16 %v513
    %v816 = vunpack.c.l.b16 %v514
    %v817 = vunpack.c.h.b16 %v514
    %v818 = vunpack.c.l.b16 %v515
    %v819 = vunpack.c.h.b16 %v515
    %v820 = vunpack.c.l.b16 %v516
    %v821 = vunpack.c.h.b16 %v516
    %v822 = vunpack.c.l.b16 %v517
    %v823 = vunpack.c.h.b16 %v517
    %v824 = vunpack.c.l.b16 %v518
    %v825 = vunpack.c.h.b16 %v518
    %v826 = vunpack.c.l.b16 %v519
    %v827 = vunpack.c.h.b16 %v519
    %v828 = vunpack.c.l.b16 %v520
    %v829 = vunpack.c.h.b16 %v520
    %v830 = vunpack.c.l.b16 %v521
    %v831 = vunpack.c.h.b16 %v521
    %v832 = vunpack.c.l.b16 %v522
    %v833 = vunpack.c.h.b16 %v522
    %v834 = vunpack.c.l.b16 %v523
    %v835 = vunpack.c.h.b16 %v523
    %v836 = vunpack.c.l.b16 %v524
    %v837 = vunpack.c.h.b16 %v524
    %v838 = vunpack.c.l.b16 %v525
    %v839 = vunpack.c.h.b16 %v525
    %v840 = vunpack.c.l.b16 %v526
    %v841 = vunpack.c.h.b16 %v526
    %v842 = vunpack.c.l.b16 %v527
    %v843 = vunpack.c.h.b16 %v527
    %v844 = vunpack.c.l.b16 %v528
    %v845 = vunpack.c.h.b16 %v528
    %v846 = vunpack.c.l.b16 %v529
    %v847 = vunpack.c.h.b16 %v529
    %v848 = vunpack.c.l.b16 %v530
    %v849 = vunpack.c.h.b16 %v530
    %v850 = vunpack.c.l.b16 %v531
    %v851 = vunpack.c.h.b16 %v531
    %v852 = vunpack.c.l.b16 %v532
    %v853 = vunpack.c.h.b16 %v532
    %v854 = vunpack.c.l.b16 %v533
    %v855 = vunpack.c.h.b16 %v533
    %v856 = vunpack.c.l.b16 %v534
    %v857 = vunpack.c.h.b16 %v534
    %v858 = vunpack.c.l.b16 %v535
    %v859 = vunpack.c.h.b16 %v535
    %v860 = vunpack.c.l.b16 %v536
    %v861 = vunpack.c.h.b16 %v536
    %v862 = vunpack.c.l.b16 %v537
    %v863 = vunpack.c.h.b16 %v537
    %v864 = vunpack.c.l.b16 %v538
    %v865 = vunpack.c.h.b16 %v538
    %v866 = vunpack.c.l.b16 %v539
    %v867 = vunpack.c.h.b16 %v539
    %v868 = vunpack.c.l.b16 %v540
    %v869 = vunpack.c.h.b16 %v540
    %v870 = vunpack.c.l.b16 %v541
    %v871 = vunpack.c.h.b16 %v541
    %v872 = vunpack.c.l.b16 %v542
    %v873 = vunpack.c.h.b16 %v542
    %v874 = vunpack.c.l.b16 %v543
    %v875 = vunpack.c.h.b16 %v543
    %v876 = vunpack.c.l.b16 %v544
    %v877 = vunpack.c.h.b16 %v544
    %v878 = vunpack.c.l.b16 %v545
    %v879 = vunpack.c.h.b16 %v545
    %v880 = vunpack.c.l.b16 %v546
    %v881 = vunpack.c.h.b16 %v546
    %v882 = vunpack.c.l.b16 %v547
    %v883 = vunpack.c.h.b16 %v547
    %v884 = vunpack.c.l.b16 %v548
    %v885 = vunpack.c.h.b16 %v548
    %v886 = vunpack.c.l.b16 %v549
    %v887 = vunpack.c.h.b16 %v549
    %v888 = vunpack.c.l.b16 %v550
    %v889 = vunpack.c.h.b16 %v550
    %v890 = vunpack.c.l.b16 %v551
    %v891 = vunpack.c.h.b16 %v551
    %v892 = vunpack.c.l.b16 %v552
    %v893 = vunpack.c.h.b16 %v552
    %v894 = vunpack.c.l.b16 %v553
    %v895 = vunpack.c.h.b16 %v553
    %v896 = vunpack.c.l.b16 %v554
    %v897 = vunpack.c.h.b16 %v554
    %v898 = vunpack.c.l.b16 %v555
    %v899 = vunpack.c.h.b16 %v555
    %v900 = vunpack.c.l.b16 %v556
    %v901 = vunpack.c.h.b16 %v556
    %v902 = vunpack.c.l.b16 %v557
    %v903 = vunpack.c.h.b16 %v557
    %v904 = vunpack.c.l.b16 %v558
    %v905 = vunpack.c.h.b16 %v558
    %v906 = vunpack.c.l.b16 %v559
    %v907 = vunpack.c.h.b16 %v559
    %v908 = vunpack.c.l.b16 %v560
    %v909 = vunpack.c.h.b16 %v560
    %v910 = vunpack.c.l.b16 %v561
    %v911 = vunpack.c.h.b16 %v561
    %v912 = vunpack.c.l.b16 %v562
    %v913 = vunpack.c.h.b16 %v562
    %v914 = vunpack.c.l.b16 %v563
    %v915 = vunpack.c.h.b16 %v563
    %v916 = vunpack.c.l.b16 %v564
    %v917 = vunpack.c.h.b16 %v564
    %v918 = vunpack.c.l.b16 %v565
    %v919 = vunpack.c.h.b16 %v565
    %v920 = vunpack.c.l.b16 %v566
    %v921 = vunpack.c.h.b16 %v566
    %v922 = vunpack.c.l.b16 %v567
    %v923 = vunpack.c.h.b16 %v567
    %v924 = vunpack.c.l.b16 %v568
    %v925 = vunpack.c.h.b16 %v568
    %v926 = vunpack.c.l.b16 %v569
    %v927 = vunpack.c.h.b16 %v569
    %v928 = vunpack.c.l.b16 %v570
    %v929 = vunpack.c.h.b16 %v570
    %v930 = vunpack.c.l.b16 %v571
    %v931 = vunpack.c.h.b16 %v571
    %v932 = vunpack.c.l.b16 %v572
    %v933 = vunpack.c.h.b16 %v572
    %v934 = vunpack.c.l.b16 %v573
    %v935 = vunpack.c.h.b16 %v573
    %v936 = vunpack.c.l.b16 %v574
    %v937 = vunpack.c.h.b16 %v574
    %v938 = vunpack.c.l.b16 %v575
    %v939 = vunpack.c.h.b16 %v575
    %v940 = vunpack.c.l.b16 %v576
    %v941 = vunpack.c.h.b16 %v576
    %v942 = vunpack.c.l.b16 %v577
    %v943 = vunpack.c.h.b16 %v577
    %v944 = vunpack.c.l.b16 %v578
    %v945 = vunpack.c.h.b16 %v578
    %v946 = vunpack.c.l.b16 %v579
    %v947 = vunpack.c.h.b16 %v579
    %v948 = vunpack.c.l.b16 %v580
    %v949 = vunpack.c.h.b16 %v580
    %v950 = vunpack.c.l.b16 %v581
    %v951 = vunpack.c.h.b16 %v581
    %v952 = vunpack.c.l.b16 %v582
    %v953 = vunpack.c.h.b16 %v582
    %v954 = vunpack.c.l.b16 %v583
    %v955 = vunpack.c.h.b16 %v583
    %v956 = vunpack.c.l.b16 %v584
    %v957 = vunpack.c.h.b16 %v584
    %v958 = vunpack.c.l.b16 %v585
    %v959 = vunpack.c.h.b16 %v585
    %v960 = vunpack.c.l.b16 %v586
    %v961 = vunpack.c.h.b16 %v586
    %v962 = vunpack.c.l.b16 %v587
    %v963 = vunpack.c.h.b16 %v587
    %v964 = vunpack.c.l.b16 %v588
    %v965 = vunpack.c.h.b16 %v588
    %v966 = vunpack.c.l.b16 %v589
    %v967 = vunpack.c.h.b16 %v589
    %v968 = vunpack.c.l.b16 %v590
    %v969 = vunpack.c.h.b16 %v590
    %v970 = vunpack.c.l.b16 %v591
    %v971 = vunpack.c.h.b16 %v591
    %v972 = vunpack.c.l.b16 %v592
    %v973 = vunpack.c.h.b16 %v592
    %v974 = vunpack.c.l.b16 %v593
    %v975 = vunpack.c.h.b16 %v593
    %v976 = vunpack.c.l.b16 %v594
    %v977 = vunpack.c.h.b16 %v594
    %v978 = vunpack.c.l.b16 %v595
    %v979 = vunpack.c.h.b16 %v595
    %v980 = vunpack.c.l.b16 %v596
    %v981 = vunpack.c.h.b16 %v596
    %v982 = vunpack.c.l.b16 %v597
    %v983 = vunpack.c.h.b16 %v597
    %v984 = vunpack.c.l.b16 %v598
    %v985 = vunpack.c.h.b16 %v598
    %v986 = vunpack.c.l.b16 %v599
    %v987 = vunpack.c.h.b16 %v599
    %v988 = vunpack.c.l.b16 %v600
    %v989 = vunpack.c.h.b16 %v600
    %v990 = vunpack.c.l.b16 %v601
    %v991 = vunpack.c.h.b16 %v601
    %v992 = vunpack.c.l.b16 %v602
    %v993 = vunpack.c.h.b16 %v602
    %v994 = vunpack.c.l.b16 %v603
    %v995 = vunpack.c.h.b16 %v603
    %v996 = vunpack.c.l.b16 %v604
    %v997 = vunpack.c.h.b16 %v604
    %v998 = vunpack.c.l.b16 %v605
    %v999 = vunpack.c.h.b16 %v605
    %v1000 = vunpack.c.l.b16 %v606
    %v1001 = vunpack.c.h.b16 %v606
    %v1002 = vunpack.c.l.b16 %v607
    %v1003 = vunpack.c.h.b16 %v607
    %v1004 = vunpack.c.l.b16 %v608
    %v1005 = vunpack.c.h.b16 %v608
    %v1006 = vunpack.c.l.b16 %v609
    %v1007 = vunpack.c.h.b16 %v609
    %v1008 = vunpack.c.l.b16 %v610
    %v1009 = vunpack.c.h.b16 %v610
    %v1010 = vunpack.c.l.b16 %v611
    %v1011 = vunpack.c.h.b16 %v611
    %v1012 = vunpack.c.l.b16 %v612
    %v1013 = vunpack.c.h.b16 %v612
    %v1014 = vunpack.c.l.b16 %v613
    %v1015 = vunpack.c.h.b16 %v613
    %v1016 = vunpack.c.l.b16 %v614
    %v1017 = vunpack.c.h.b16 %v614
    %v1018 = vunpack.c.l.b16 %v615
    %v1019 = vunpack.c.h.b16 %v615
    %v1020 = vunpack.c.l.b16 %v616
    %v1021 = vunpack.c.h.b16 %v616
    %v1022 = vunpack.c.l.b16 %v617
    %v1023 = vunpack.c.h.b16 %v617
    %v1024 = vunpack.c.l.b16 %v618
    %v1025 = vunpack.c.h.b16 %v618
    %v1026 = vpack.c.b16 %v774, %v770
    %v1027 = vpack.c.b16 %v775, %v771
    %v1028 = vpack.c.b16 %v776, %v772
    %v1029 = vpack.c.b16 %v777, %v773
    %v1030 = vpack.c.b16 %v782, %v778
    %v1031 = vpack.c.b16 %v783, %v779
    %v1032 = vpack.c.b16 %v784, %v780
    %v1033 = vpack.c.b16 %v785, %v781
    %v1034 = vpack.c.b16 %v790, %v786
    %v1035 = vpack.c.b16 %v791, %v787
    %v1036 = vpack.c.b16 %v792, %v788
    %v1037 = vpack.c.b16 %v793, %v789
    %v1038 = vpack.c.b16 %v798, %v794
    %v1039 = vpack.c.b16 %v799, %v795
    %v1040 = vpack.c.b16 %v800, %v796
    %v1041 = vpack.c.b16 %v801, %v797
    %v1042 = vpack.c.b16 %v806, %v802
    %v1043 = vpack.c.b16 %v807, %v803
    %v1044 = vpack.c.b16 %v808, %v804
    %v1045 = vpack.c.b16 %v809, %v805
    %v1046 = vpack.c.b16 %v814, %v810
    %v1047 = vpack.c.b16 %v815, %v811
    %v1048 = vpack.c.b16 %v816, %v812
    %v1049 = vpack.c.b16 %v817, %v813
    %v1050 = vpack.c.b16 %v822, %v818
    %v1051 = vpack.c.b16 %v823, %v819
    %v1052 = vpack.c.b16 %v824, %v820
    %v1053 = vpack.c.b16 %v825, %v821
    %v1054 = vpack.c.b16 %v830, %v826
    %v1055 = vpack.c.b16 %v831, %v827
    %v1056 = vpack.c.b16 %v832, %v828
    %v1057 = vpack.c.b16 %v833, %v829
    %v1058 = vpack.c.b16 %v838, %v834
    %v1059 = vpack.c.b16 %v839, %v835
    %v1060 = vpack.c.b16 %v840, %v836
    %v1061 = vpack.c.b16 %v841, %v837
    %v1062 = vpack.c.b16 %v846, %v842
    %v1063 = vpack.c.b16 %v847, %v843
    %v1064 = vpack.c.b16 %v848, %v844
    %v1065 = vpack.c.b16 %v849, %v845
    %v1066 = vpack.c.b16 %v854, %v850
    %v1067 = vpack.c.b16 %v855, %v851
    %v1068 = vpack.c.b16 %v856, %v852
    %v1069 = vpack.c.b16 %v857, %v853
    %v1070 = vpack.c.b16 %v862, %v858
    %v1071 = vpack.c.b16 %v863, %v859
    %v1072 = vpack.c.b16 %v864, %v860
    %v1073 = vpack.c.b16 %v865, %v861
    %v1074 = vpack.c.b16 %v870, %v866
    %v1075 = vpack.c.b16 %v871, %v867
    %v1076 = vpack.c.b16 %v872, %v868
    %v1077 = vpack.c.b16 %v873, %v869
    %v1078 = vpack.c.b16 %v878, %v874
    %v1079 = vpack.c.b16 %v879, %v875
    %v1080 = vpack.c.b16 %v880, %v876
    %v1081 = vpack.c.b16 %v881, %v877
    %v1082 = vpack.c.b16 %v886, %v882
    %v1083 = vpack.c.b16 %v887, %v883
    %v1084 = vpack.c.b16 %v888, %v884
    %v1085 = vpack.c.b16 %v889, %v885
    %v1086 = vpack.c.b16 %v894, %v890
    %v1087 = vpack.c.b16 %v895, %v891
    %v1088 = vpack.c.b16 %v896, %v892
    %v1089 = vpack.c.b16 %v897, %v893
    %v1090 = vpack.c.b16 %v902, %v898
    %v1091 = vpack.c.b16 %v903, %v899
    %v1092 = vpack.c.b16 %v904, %v900
    %v1093 = vpack.c.b16 %v905, %v901
    %v1094 = vpack.c.b16 %v910, %v906
    %v1095 = vpack.c.b16 %v911, %v907
    %v1096 = vpack.c.b16 %v912, %v908
    %v1097 = vpack.c.b16 %v913, %v909
    %v1098 = vpack.c.b16 %v918, %v914
    %v1099 = vpack.c.b16 %v919, %v915
    %v1100 = vpack.c.b16 %v920, %v916
    %v1101 = vpack.c.b16 %v921, %v917
    %v1102 = vpack.c.b16 %v926, %v922
    %v1103 = vpack.c.b16 %v927, %v923
    %v1104 = vpack.c.b16 %v928, %v924
    %v1105 = vpack.c.b16 %v929, %v925
    %v1106 = vpack.c.b16 %v934, %v930
    %v1107 = vpack.c.b16 %v935, %v931
    %v1108 = vpack.c.b16 %v936, %v932
    %v1109 = vpack.c.b16 %v937, %v933
    %v1110 = vpack.c.b16 %v942, %v938
    %v1111 = vpack.c.b16 %v943, %v939
    %v1112 = vpack.c.b16 %v944, %v940
    %v1113 = vpack.c.b16 %v945, %v941
    %v1114 = vpack.c.b16 %v950, %v946
    %v1115 = vpack.c.b16 %v951, %v947
    %v1116 = vpack.c.b16 %v952, %v948
    %v1117 = vpack.c.b16 %v953, %v949
    %v1118 = vpack.c.b16 %v958, %v954
    %v1119 = vpack.c.b16 %v959, %v955
    %v1120 = vpack.c.b16 %v960, %v956
    %v1121 = vpack.c.b16 %v961, %v957
    %v1122 = vpack.c.b16 %v966, %v962
    %v1123 = vpack.c.b16 %v967, %v963
    %v1124 = vpack.c.b16 %v968, %v964
    %v1125 = vpack.c.b16 %v969, %v965
    %v1126 = vpack.c.b16 %v974, %v970
    %v1127 = vpack.c.b16 %v975, %v971
    %v1128 = vpack.c.b16 %v976, %v972
    %v1129 = vpack.c.b16 %v977, %v973
    %v1130 = vpack.c.b16 %v982, %v978
    %v1131 = vpack.c.b16 %v983, %v979
    %v1132 = vpack.c.b16 %v984, %v980
    %v1133 = vpack.c.b16 %v985, %v981
    %v1134 = vpack.c.b16 %v990, %v986
    %v1135 = vpack.c.b16 %v991, %v987
    %v1136 = vpack.c.b16 %v992, %v988
    %v1137 = vpack.c.b16 %v993, %v989
    %v1138 = vpack.c.b16 %v998, %v994
    %v1139 = vpack.c.b16 %v999, %v995
    %v1140 = vpack.c.b16 %v1000, %v996
    %v1141 = vpack.c.b16 %v1001, %v997
    %v1142 = vpack.c.b16 %v1006, %v1002
    %v1143 = vpack.c.b16 %v1007, %v1003
    %v1144 = vpack.c.b16 %v1008, %v1004
    %v1145 = vpack.c.b16 %v1009, %v1005
    %v1146 = vpack.c.b16 %v1014, %v1010
    %v1147 = vpack.c.b16 %v1015, %v1011
    %v1148 = vpack.c.b16 %v1016, %v1012
    %v1149 = vpack.c.b16 %v1017, %v1013
    %v1150 = vpack.c.b16 %v1022, %v1018
    %v1151 = vpack.c.b16 %v1023, %v1019
    %v1152 = vpack.c.b16 %v1024, %v1020
    %v1153 = vpack.c.b16 %v1025, %v1021
    %1282 = vmatprep.subr.bf16.mxu0 %v1027
    %1283 = vmatpush1.bf16.msra.mxu0 %v1026
    %1284 = vmatprep.subr.bf16.mxu0 %v1031
    %1285 = vmatpush1.bf16.msra.mxu0 %v1030
    %1286 = vmatprep.subr.bf16.mxu0 %v1035
    %1287 = vmatpush1.bf16.msra.mxu0 %v1034
    %1288 = vmatprep.subr.bf16.mxu0 %v1039
    %1289 = vmatpush1.bf16.msra.mxu0 %v1038
    %1290 = vmatprep.subr.bf16.mxu0 %v1043
    %1291 = vmatpush1.bf16.msra.mxu0 %v1042
    %1292 = vmatprep.subr.bf16.mxu0 %v1047
    %1293 = vmatpush1.bf16.msra.mxu0 %v1046
    %1294 = vmatprep.subr.bf16.mxu0 %v1051
    %1295 = vmatpush1.bf16.msra.mxu0 %v1050
    %1296 = vmatprep.subr.bf16.mxu0 %v1055
    %1297 = vmatpush1.bf16.msra.mxu0 %v1054
    %1298 = vmatprep.subr.bf16.mxu0 %v1059
    %1299 = vmatpush1.bf16.msra.mxu0 %v1058
    %1300 = vmatprep.subr.bf16.mxu0 %v1063
    %1301 = vmatpush1.bf16.msra.mxu0 %v1062
    %1302 = vmatprep.subr.bf16.mxu0 %v1067
    %1303 = vmatpush1.bf16.msra.mxu0 %v1066
    %1304 = vmatprep.subr.bf16.mxu0 %v1071
    %1305 = vmatpush1.bf16.msra.mxu0 %v1070
    %1306 = vmatprep.subr.bf16.mxu0 %v1075
    %1307 = vmatpush1.bf16.msra.mxu0 %v1074
    %1308 = vmatprep.subr.bf16.mxu0 %v1079
    %1309 = vmatpush1.bf16.msra.mxu0 %v1078
    %1310 = vmatprep.subr.bf16.mxu0 %v1083
    %1311 = vmatpush1.bf16.msra.mxu0 %v1082
    %1312 = vmatprep.subr.bf16.mxu0 %v1087
    %1313 = vmatpush1.bf16.msra.mxu0 %v1086
    %1314 = vmatprep.mubr.bf16.mxu0 %v460
    %1315 = vmatmul.mubr.bf16.gmra.mrb[0].mxu0 %v459
    %v1316 = vpop.f32.mrb[0].mxu0
    %v1317 = vadd.f32 %v625, %v1316
    %v1318 = vpop.f32.mrb[0].mxu0
    %v1319 = vadd.f32 %v629, %v1318
    %v1320 = vpop.f32.mrb[0].mxu0
    %v1321 = vadd.f32 %v625, %v1320
    %v1322 = vpop.f32.mrb[0].mxu0
    %v1323 = vadd.f32 %v629, %v1322
    %1324 = vmatprep.mubr.bf16.mxu0 %v464
    %1325 = vmatmul.mubr.bf16.gmra.mrb[0].mxu0 %v463
    %v1326 = vpop.f32.mrb[0].mxu0
    %v1327 = vadd.f32 %v625, %v1326
    %v1328 = vpop.f32.mrb[0].mxu0
    %v1329 = vadd.f32 %v629, %v1328
    %v1330 = vpop.f32.mrb[0].mxu0
    %v1331 = vadd.f32 %v625, %v1330
    %v1332 = vpop.f32.mrb[0].mxu0
    %v1333 = vadd.f32 %v629, %v1332
    %1334 = vmatprep.mubr.bf16.mxu0 %v468
    %1335 = vmatmul.mubr.bf16.gmra.mrb[0].mxu0 %v467
    %v1336 = vpop.f32.mrb[0].mxu0
    %v1337 = vadd.f32 %v625, %v1336
    %v1338 = vpop.f32.mrb[0].mxu0
    %v1339 = vadd.f32 %v629, %v1338
    %v1340 = vpop.f32.mrb[0].mxu0
    %v1341 = vadd.f32 %v625, %v1340
    %v1342 = vpop.f32.mrb[0].mxu0
    %v1343 = vadd.f32 %v629, %v1342
    %1344 = vmatprep.mubr.bf16.mxu0 %v472
    %1345 = vmatmul.mubr.bf16.gmra.mrb[0].mxu0 %v471
    %v1346 = vpop.f32.mrb[0].mxu0
    %v1347 = vadd.f32 %v625, %v1346
    %v1348 = vpop.f32.mrb[0].mxu0
    %v1349 = vadd.f32 %v629, %v1348
    %v1350 = vpop.f32.mrb[0].mxu0
    %v1351 = vadd.f32 %v625, %v1350
    %v1352 = vpop.f32.mrb[0].mxu0
    %v1353 = vadd.f32 %v629, %v1352
    %1354 = vmatprep.mubr.bf16.mxu0 %v476
    %1355 = vmatmul.mubr.bf16.gmra.mrb[0].mxu0 %v475
    %v1356 = vpop.f32.mrb[0].mxu0
    %v1357 = vadd.f32 %v625, %v1356
    %v1358 = vpop.f32.mrb[0].mxu0
    %v1359 = vadd.f32 %v629, %v1358
    %v1360 = vpop.f32.mrb[0].mxu0
    %v1361 = vadd.f32 %v625, %v1360
    %v1362 = vpop.f32.mrb[0].mxu0
    %v1363 = vadd.f32 %v629, %v1362
    %1364 = vmatprep.mubr.bf16.mxu0 %v480
    %1365 = vmatmul.mubr.bf16.gmra.mrb[0].mxu0 %v479
    %v1366 = vpop.f32.mrb[0].mxu0
    %v1367 = vadd.f32 %v625, %v1366
    %v1368 = vpop.f32.mrb[0].mxu0
    %v1369 = vadd.f32 %v629, %v1368
    %v1370 = vpop.f32.mrb[0].mxu0
    %v1371 = vadd.f32 %v625, %v1370
    %v1372 = vpop.f32.mrb[0].mxu0
    %v1373 = vadd.f32 %v629, %v1372
    %1374 = vmatprep.mubr.bf16.mxu0 %v484
    %1375 = vmatmul.mubr.bf16.gmra.mrb[0].mxu0 %v483
    %v1376 = vpop.f32.mrb[0].mxu0
    %v1377 = vadd.f32 %v625, %v1376
    %v1378 = vpop.f32.mrb[0].mxu0
    %v1379 = vadd.f32 %v629, %v1378
    %v1380 = vpop.f32.mrb[0].mxu0
    %v1381 = vadd.f32 %v625, %v1380
    %v1382 = vpop.f32.mrb[0].mxu0
    %v1383 = vadd.f32 %v629, %v1382
    %1384 = vmatprep.mubr.bf16.mxu0 %v488
    %1385 = vmatmul.mubr.bf16.gmra.mrb[0].mxu0 %v487
    %v1386 = vpop.f32.mrb[0].mxu0
    %v1387 = vadd.f32 %v625, %v1386
    %v1388 = vpop.f32.mrb[0].mxu0
    %v1389 = vadd.f32 %v629, %v1388
    %v1390 = vpop.f32.mrb[0].mxu0
    %v1391 = vadd.f32 %v625, %v1390
    %v1392 = vpop.f32.mrb[0].mxu0
    %v1393 = vadd.f32 %v629, %v1392
    %1394 = vdwg.mxu0
    %1395 = vmatprep.subr.bf16.mxu0 %v1091
    %1396 = vmatpush1.bf16.msra.mxu0 %v1090
    %1397 = vmatprep.subr.bf16.mxu0 %v1095
    %1398 = vmatpush1.bf16.msra.mxu0 %v1094
    %1399 = vmatprep.subr.bf16.mxu0 %v1099
    %1400 = vmatpush1.bf16.msra.mxu0 %v1098
    %1401 = vmatprep.subr.bf16.mxu0 %v1103
    %1402 = vmatpush1.bf16.msra.mxu0 %v1102
    %1403 = vmatprep.subr.bf16.mxu0 %v1107
    %1404 = vmatpush1.bf16.msra.mxu0 %v1106
    %1405 = vmatprep.subr.bf16.mxu0 %v1111
    %1406 = vmatpush1.bf16.msra.mxu0 %v1110
    %1407 = vmatprep.subr.bf16.mxu0 %v1115
    %1408 = vmatpush1.bf16.msra.mxu0 %v1114
    %1409 = vmatprep.subr.bf16.mxu0 %v1119
    %1410 = vmatpush1.bf16.msra.mxu0 %v1118
    %1411 = vmatprep.subr.bf16.mxu0 %v1123
    %1412 = vmatpush1.bf16.msra.mxu0 %v1122
    %1413 = vmatprep.subr.bf16.mxu0 %v1127
    %1414 = vmatpush1.bf16.msra.mxu0 %v1126
    %1415 = vmatprep.subr.bf16.mxu0 %v1131
    %1416 = vmatpush1.bf16.msra.mxu0 %v1130
    %1417 = vmatprep.subr.bf16.mxu0 %v1135
    %1418 = vmatpush1.bf16.msra.mxu0 %v1134
    %1419 = vmatprep.subr.bf16.mxu0 %v1139
    %1420 = vmatpush1.bf16.msra.mxu0 %v1138
    %1421 = vmatprep.subr.bf16.mxu0 %v1143
    %1422 = vmatpush1.bf16.msra.mxu0 %v1142
    %1423 = vmatprep.subr.bf16.mxu0 %v1147
    %1424 = vmatpush1.bf16.msra.mxu0 %v1146
    %1425 = vmatprep.subr.bf16.mxu0 %v1151
    %1426 = vmatpush1.bf16.msra.mxu0 %v1150
    %1427 = vmatprep.mubr.bf16.mxu0 %v462
    %1428 = vmatmul.mubr.bf16.gmra.mrb[0].mxu0 %v461
    %v1429 = vpop.f32.mrb[0].mxu0
    %v1430 = vadd.f32 %v1317, %v1429
    %v1431 = vpop.f32.mrb[0].mxu0
    %v1432 = vadd.f32 %v1319, %v1431
    %v1433 = vpop.f32.mrb[0].mxu0
    %v1434 = vadd.f32 %v1321, %v1433
    %v1435 = vpop.f32.mrb[0].mxu0
    %v1436 = vadd.f32 %v1323, %v1435
    %1437 = vmatprep.mubr.bf16.mxu0 %v466
    %1438 = vmatmul.mubr.bf16.gmra.mrb[0].mxu0 %v465
    %v1439 = vpop.f32.mrb[0].mxu0
    %v1440 = vadd.f32 %v1327, %v1439
    %v1441 = vpop.f32.mrb[0].mxu0
    %v1442 = vadd.f32 %v1329, %v1441
    %v1443 = vpop.f32.mrb[0].mxu0
    %v1444 = vadd.f32 %v1331, %v1443
    %v1445 = vpop.f32.mrb[0].mxu0
    %v1446 = vadd.f32 %v1333, %v1445
    %1447 = vmatprep.mubr.bf16.mxu0 %v470
    %1448 = vmatmul.mubr.bf16.gmra.mrb[0].mxu0 %v469
    %v1449 = vpop.f32.mrb[0].mxu0
    %v1450 = vadd.f32 %v1337, %v1449
    %v1451 = vpop.f32.mrb[0].mxu0
    %v1452 = vadd.f32 %v1339, %v1451
    %v1453 = vpop.f32.mrb[0].mxu0
    %v1454 = vadd.f32 %v1341, %v1453
    %v1455 = vpop.f32.mrb[0].mxu0
    %v1456 = vadd.f32 %v1343, %v1455
    %1457 = vmatprep.mubr.bf16.mxu0 %v474
    %1458 = vmatmul.mubr.bf16.gmra.mrb[0].mxu0 %v473
    %v1459 = vpop.f32.mrb[0].mxu0
    %v1460 = vadd.f32 %v1347, %v1459
    %v1461 = vpop.f32.mrb[0].mxu0
    %v1462 = vadd.f32 %v1349, %v1461
    %v1463 = vpop.f32.mrb[0].mxu0
    %v1464 = vadd.f32 %v1351, %v1463
    %v1465 = vpop.f32.mrb[0].mxu0
    %v1466 = vadd.f32 %v1353, %v1465
    %1467 = vmatprep.mubr.bf16.mxu0 %v478
    %1468 = vmatmul.mubr.bf16.gmra.mrb[0].mxu0 %v477
    %v1469 = vpop.f32.mrb[0].mxu0
    %v1470 = vadd.f32 %v1357, %v1469
    %v1471 = vpop.f32.mrb[0].mxu0
    %v1472 = vadd.f32 %v1359, %v1471
    %v1473 = vpop.f32.mrb[0].mxu0
    %v1474 = vadd.f32 %v1361, %v1473
    %v1475 = vpop.f32.mrb[0].mxu0
    %v1476 = vadd.f32 %v1363, %v1475
    %1477 = vmatprep.mubr.bf16.mxu0 %v482
    %1478 = vmatmul.mubr.bf16.gmra.mrb[0].mxu0 %v481
    %v1479 = vpop.f32.mrb[0].mxu0
    %v1480 = vadd.f32 %v1367, %v1479
    %v1481 = vpop.f32.mrb[0].mxu0
    %v1482 = vadd.f32 %v1369, %v1481
    %v1483 = vpop.f32.mrb[0].mxu0
    %v1484 = vadd.f32 %v1371, %v1483
    %v1485 = vpop.f32.mrb[0].mxu0
    %v1486 = vadd.f32 %v1373, %v1485
    %1487 = vmatprep.mubr.bf16.mxu0 %v486
    %1488 = vmatmul.mubr.bf16.gmra.mrb[0].mxu0 %v485
    %v1489 = vpop.f32.mrb[0].mxu0
    %v1490 = vadd.f32 %v1377, %v1489
    %v1491 = vpop.f32.mrb[0].mxu0
    %v1492 = vadd.f32 %v1379, %v1491
    %v1493 = vpop.f32.mrb[0].mxu0
    %v1494 = vadd.f32 %v1381, %v1493
    %v1495 = vpop.f32.mrb[0].mxu0
    %v1496 = vadd.f32 %v1383, %v1495
    %1497 = vmatprep.mubr.bf16.mxu0 %v490
    %1498 = vmatmul.mubr.bf16.gmra.mrb[0].mxu0 %v489
    %v1499 = vpop.f32.mrb[0].mxu0
    %v1500 = vadd.f32 %v1387, %v1499
    %v1501 = vpop.f32.mrb[0].mxu0
    %v1502 = vadd.f32 %v1389, %v1501
    %v1503 = vpop.f32.mrb[0].mxu0
    %v1504 = vadd.f32 %v1391, %v1503
    %v1505 = vpop.f32.mrb[0].mxu0
    %v1506 = vadd.f32 %v1393, %v1505
    %1507 = vdwg.mxu0
    %1508 = vmatprep.subr.bf16.mxu0 %v1029
    %1509 = vmatpush1.bf16.msra.mxu0 %v1028
    %1510 = vmatprep.subr.bf16.mxu0 %v1033
    %1511 = vmatpush1.bf16.msra.mxu0 %v1032
    %1512 = vmatprep.subr.bf16.mxu0 %v1037
    %1513 = vmatpush1.bf16.msra.mxu0 %v1036
    %1514 = vmatprep.subr.bf16.mxu0 %v1041
    %1515 = vmatpush1.bf16.msra.mxu0 %v1040
    %1516 = vmatprep.subr.bf16.mxu0 %v1045
    %1517 = vmatpush1.bf16.msra.mxu0 %v1044
    %1518 = vmatprep.subr.bf16.mxu0 %v1049
    %1519 = vmatpush1.bf16.msra.mxu0 %v1048
    %1520 = vmatprep.subr.bf16.mxu0 %v1053
    %1521 = vmatpush1.bf16.msra.mxu0 %v1052
    %1522 = vmatprep.subr.bf16.mxu0 %v1057
    %1523 = vmatpush1.bf16.msra.mxu0 %v1056
    %1524 = vmatprep.subr.bf16.mxu0 %v1061
    %1525 = vmatpush1.bf16.msra.mxu0 %v1060
    %1526 = vmatprep.subr.bf16.mxu0 %v1065
    %1527 = vmatpush1.bf16.msra.mxu0 %v1064
    %1528 = vmatprep.subr.bf16.mxu0 %v1069
    %1529 = vmatpush1.bf16.msra.mxu0 %v1068
    %1530 = vmatprep.subr.bf16.mxu0 %v1073
    %1531 = vmatpush1.bf16.msra.mxu0 %v1072
    %1532 = vmatprep.subr.bf16.mxu0 %v1077
    %1533 = vmatpush1.bf16.msra.mxu0 %v1076
    %1534 = vmatprep.subr.bf16.mxu0 %v1081
    %1535 = vmatpush1.bf16.msra.mxu0 %v1080
    %1536 = vmatprep.subr.bf16.mxu0 %v1085
    %1537 = vmatpush1.bf16.msra.mxu0 %v1084
    %1538 = vmatprep.subr.bf16.mxu0 %v1089
    %1539 = vmatpush1.bf16.msra.mxu0 %v1088
    %1540 = vmatprep.mubr.bf16.mxu0 %v460
    %1541 = vmatmul.mubr.bf16.gmra.mrb[0].mxu0 %v459
    %v1542 = vpop.f32.mrb[0].mxu0
    %v1543 = vadd.f32 %v633, %v1542
    %v1544 = vpop.f32.mrb[0].mxu0
    %v1545 = vadd.f32 %v637, %v1544
    %v1546 = vpop.f32.mrb[0].mxu0
    %v1547 = vadd.f32 %v633, %v1546
    %v1548 = vpop.f32.mrb[0].mxu0
    %v1549 = vadd.f32 %v637, %v1548
    %1550 = vmatprep.mubr.bf16.mxu0 %v464
    %1551 = vmatmul.mubr.bf16.gmra.mrb[0].mxu0 %v463
    %v1552 = vpop.f32.mrb[0].mxu0
    %v1553 = vadd.f32 %v633, %v1552
    %v1554 = vpop.f32.mrb[0].mxu0
    %v1555 = vadd.f32 %v637, %v1554
    %v1556 = vpop.f32.mrb[0].mxu0
    %v1557 = vadd.f32 %v633, %v1556
    %v1558 = vpop.f32.mrb[0].mxu0
    %v1559 = vadd.f32 %v637, %v1558
    %1560 = vmatprep.mubr.bf16.mxu0 %v468
    %1561 = vmatmul.mubr.bf16.gmra.mrb[0].mxu0 %v467
    %v1562 = vpop.f32.mrb[0].mxu0
    %v1563 = vadd.f32 %v633, %v1562
    %v1564 = vpop.f32.mrb[0].mxu0
    %v1565 = vadd.f32 %v637, %v1564
    %v1566 = vpop.f32.mrb[0].mxu0
    %v1567 = vadd.f32 %v633, %v1566
    %v1568 = vpop.f32.mrb[0].mxu0
    %v1569 = vadd.f32 %v637, %v1568
    %1570 = vmatprep.mubr.bf16.mxu0 %v472
    %1571 = vmatmul.mubr.bf16.gmra.mrb[0].mxu0 %v471
    %v1572 = vpop.f32.mrb[0].mxu0
    %v1573 = vadd.f32 %v633, %v1572
    %v1574 = vpop.f32.mrb[0].mxu0
    %v1575 = vadd.f32 %v637, %v1574
    %v1576 = vpop.f32.mrb[0].mxu0
    %v1577 = vadd.f32 %v633, %v1576
    %v1578 = vpop.f32.mrb[0].mxu0
    %v1579 = vadd.f32 %v637, %v1578
    %1580 = vmatprep.mubr.bf16.mxu0 %v476
    %1581 = vmatmul.mubr.bf16.gmra.mrb[0].mxu0 %v475
    %v1582 = vpop.f32.mrb[0].mxu0
    %v1583 = vadd.f32 %v633, %v1582
    %v1584 = vpop.f32.mrb[0].mxu0
    %v1585 = vadd.f32 %v637, %v1584
    %v1586 = vpop.f32.mrb[0].mxu0
    %v1587 = vadd.f32 %v633, %v1586
    %v1588 = vpop.f32.mrb[0].mxu0
    %v1589 = vadd.f32 %v637, %v1588
    %1590 = vmatprep.mubr.bf16.mxu0 %v480
    %1591 = vmatmul.mubr.bf16.gmra.mrb[0].mxu0 %v479
    %v1592 = vpop.f32.mrb[0].mxu0
    %v1593 = vadd.f32 %v633, %v1592
    %v1594 = vpop.f32.mrb[0].mxu0
    %v1595 = vadd.f32 %v637, %v1594
    %v1596 = vpop.f32.mrb[0].mxu0
    %v1597 = vadd.f32 %v633, %v1596
    %v1598 = vpop.f32.mrb[0].mxu0
    %v1599 = vadd.f32 %v637, %v1598
    %1600 = vmatprep.mubr.bf16.mxu0 %v484
    %1601 = vmatmul.mubr.bf16.gmra.mrb[0].mxu0 %v483
    %v1602 = vpop.f32.mrb[0].mxu0
    %v1603 = vadd.f32 %v633, %v1602
    %v1604 = vpop.f32.mrb[0].mxu0
    %v1605 = vadd.f32 %v637, %v1604
    %v1606 = vpop.f32.mrb[0].mxu0
    %v1607 = vadd.f32 %v633, %v1606
    %v1608 = vpop.f32.mrb[0].mxu0
    %v1609 = vadd.f32 %v637, %v1608
    %1610 = vmatprep.mubr.bf16.mxu0 %v488
    %1611 = vmatmul.mubr.bf16.gmra.mrb[0].mxu0 %v487
    %v1612 = vpop.f32.mrb[0].mxu0
    %v1613 = vadd.f32 %v633, %v1612
    %v1614 = vpop.f32.mrb[0].mxu0
    %v1615 = vadd.f32 %v637, %v1614
    %v1616 = vpop.f32.mrb[0].mxu0
    %v1617 = vadd.f32 %v633, %v1616
    %v1618 = vpop.f32.mrb[0].mxu0
    %v1619 = vadd.f32 %v637, %v1618
    %1620 = vdwg.mxu0
    %1621 = vmatprep.subr.bf16.mxu0 %v1093
    %1622 = vmatpush1.bf16.msra.mxu0 %v1092
    %1623 = vmatprep.subr.bf16.mxu0 %v1097
    %1624 = vmatpush1.bf16.msra.mxu0 %v1096
    %1625 = vmatprep.subr.bf16.mxu0 %v1101
    %1626 = vmatpush1.bf16.msra.mxu0 %v1100
    %1627 = vmatprep.subr.bf16.mxu0 %v1105
    %1628 = vmatpush1.bf16.msra.mxu0 %v1104
    %1629 = vmatprep.subr.bf16.mxu0 %v1109
    %1630 = vmatpush1.bf16.msra.mxu0 %v1108
    %1631 = vmatprep.subr.bf16.mxu0 %v1113
    %1632 = vmatpush1.bf16.msra.mxu0 %v1112
    %1633 = vmatprep.subr.bf16.mxu0 %v1117
    %1634 = vmatpush1.bf16.msra.mxu0 %v1116
    %1635 = vmatprep.subr.bf16.mxu0 %v1121
    %1636 = vmatpush1.bf16.msra.mxu0 %v1120
    %1637 = vmatprep.subr.bf16.mxu0 %v1125
    %1638 = vmatpush1.bf16.msra.mxu0 %v1124
    %1639 = vmatprep.subr.bf16.mxu0 %v1129
    %1640 = vmatpush1.bf16.msra.mxu0 %v1128
    %1641 = vmatprep.subr.bf16.mxu0 %v1133
    %1642 = vmatpush1.bf16.msra.mxu0 %v1132
    %1643 = vmatprep.subr.bf16.mxu0 %v1137
    %1644 = vmatpush1.bf16.msra.mxu0 %v1136
    %1645 = vmatprep.subr.bf16.mxu0 %v1141
    %1646 = vmatpush1.bf16.msra.mxu0 %v1140
    %1647 = vmatprep.subr.bf16.mxu0 %v1145
    %1648 = vmatpush1.bf16.msra.mxu0 %v1144
    %1649 = vmatprep.subr.bf16.mxu0 %v1149
    %1650 = vmatpush1.bf16.msra.mxu0 %v1148
    %1651 = vmatprep.subr.bf16.mxu0 %v1153
    %1652 = vmatpush1.bf16.msra.mxu0 %v1152
    %1653 = vmatprep.mubr.bf16.mxu0 %v462
    %1654 = vmatmul.mubr.bf16.gmra.mrb[0].mxu0 %v461
    %v1655 = vpop.f32.mrb[0].mxu0
    %v1656 = vadd.f32 %v1543, %v1655
    %v1657 = vpop.f32.mrb[0].mxu0
    %v1658 = vadd.f32 %v1545, %v1657
    %v1659 = vpop.f32.mrb[0].mxu0
    %v1660 = vadd.f32 %v1547, %v1659
    %v1661 = vpop.f32.mrb[0].mxu0
    %v1662 = vadd.f32 %v1549, %v1661
    %1663 = vmatprep.mubr.bf16.mxu0 %v466
    %1664 = vmatmul.mubr.bf16.gmra.mrb[0].mxu0 %v465
    %v1665 = vpop.f32.mrb[0].mxu0
    %v1666 = vadd.f32 %v1553, %v1665
    %v1667 = vpop.f32.mrb[0].mxu0
    %v1668 = vadd.f32 %v1555, %v1667
    %v1669 = vpop.f32.mrb[0].mxu0
    %v1670 = vadd.f32 %v1557, %v1669
    %v1671 = vpop.f32.mrb[0].mxu0
    %v1672 = vadd.f32 %v1559, %v1671
    %1673 = vmatprep.mubr.bf16.mxu0 %v470
    %1674 = vmatmul.mubr.bf16.gmra.mrb[0].mxu0 %v469
    %v1675 = vpop.f32.mrb[0].mxu0
    %v1676 = vadd.f32 %v1563, %v1675
    %v1677 = vpop.f32.mrb[0].mxu0
    %v1678 = vadd.f32 %v1565, %v1677
    %v1679 = vpop.f32.mrb[0].mxu0
    %v1680 = vadd.f32 %v1567, %v1679
    %v1681 = vpop.f32.mrb[0].mxu0
    %v1682 = vadd.f32 %v1569, %v1681
    %1683 = vmatprep.mubr.bf16.mxu0 %v474
    %1684 = vmatmul.mubr.bf16.gmra.mrb[0].mxu0 %v473
    %v1685 = vpop.f32.mrb[0].mxu0
    %v1686 = vadd.f32 %v1573, %v1685
    %v1687 = vpop.f32.mrb[0].mxu0
    %v1688 = vadd.f32 %v1575, %v1687
    %v1689 = vpop.f32.mrb[0].mxu0
    %v1690 = vadd.f32 %v1577, %v1689
    %v1691 = vpop.f32.mrb[0].mxu0
    %v1692 = vadd.f32 %v1579, %v1691
    %1693 = vmatprep.mubr.bf16.mxu0 %v478
    %1694 = vmatmul.mubr.bf16.gmra.mrb[0].mxu0 %v477
    %v1695 = vpop.f32.mrb[0].mxu0
    %v1696 = vadd.f32 %v1583, %v1695
    %v1697 = vpop.f32.mrb[0].mxu0
    %v1698 = vadd.f32 %v1585, %v1697
    %v1699 = vpop.f32.mrb[0].mxu0
    %v1700 = vadd.f32 %v1587, %v1699
    %v1701 = vpop.f32.mrb[0].mxu0
    %v1702 = vadd.f32 %v1589, %v1701
    %1703 = vmatprep.mubr.bf16.mxu0 %v482
    %1704 = vmatmul.mubr.bf16.gmra.mrb[0].mxu0 %v481
    %v1705 = vpop.f32.mrb[0].mxu0
    %v1706 = vadd.f32 %v1593, %v1705
    %v1707 = vpop.f32.mrb[0].mxu0
    %v1708 = vadd.f32 %v1595, %v1707
    %v1709 = vpop.f32.mrb[0].mxu0
    %v1710 = vadd.f32 %v1597, %v1709
    %v1711 = vpop.f32.mrb[0].mxu0
    %v1712 = vadd.f32 %v1599, %v1711
    %1713 = vmatprep.mubr.bf16.mxu0 %v486
    %1714 = vmatmul.mubr.bf16.gmra.mrb[0].mxu0 %v485
    %v1715 = vpop.f32.mrb[0].mxu0
    %v1716 = vadd.f32 %v1603, %v1715
    %v1717 = vpop.f32.mrb[0].mxu0
    %v1718 = vadd.f32 %v1605, %v1717
    %v1719 = vpop.f32.mrb[0].mxu0
    %v1720 = vadd.f32 %v1607, %v1719
    %v1721 = vpop.f32.mrb[0].mxu0
    %v1722 = vadd.f32 %v1609, %v1721
    %1723 = vmatprep.mubr.bf16.mxu0 %v490
    %1724 = vmatmul.mubr.bf16.gmra.mrb[0].mxu0 %v489
    %v1725 = vpop.f32.mrb[0].mxu0
    %v1726 = vadd.f32 %v1613, %v1725
    %v1727 = vpop.f32.mrb[0].mxu0
    %v1728 = vadd.f32 %v1615, %v1727
    %v1729 = vpop.f32.mrb[0].mxu0
    %v1730 = vadd.f32 %v1617, %v1729
    %v1731 = vpop.f32.mrb[0].mxu0
    %v1732 = vadd.f32 %v1619, %v1731
    %1733 = vdwg.mxu0
    %v1734 = vmax.f32 %v1430, 0.0
    %v1735 = vmax.f32 %v1432, 0.0
    %v1736 = vmax.f32 %v1656, 0.0
    %v1737 = vmax.f32 %v1658, 0.0
    %v1738 = vmax.f32 %v1434, 0.0
    %v1739 = vmax.f32 %v1436, 0.0
    %v1740 = vmax.f32 %v1660, 0.0
    %v1741 = vmax.f32 %v1662, 0.0
    %v1742 = vmax.f32 %v1440, 0.0
    %v1743 = vmax.f32 %v1442, 0.0
    %v1744 = vmax.f32 %v1666, 0.0
    %v1745 = vmax.f32 %v1668, 0.0
    %v1746 = vmax.f32 %v1444, 0.0
    %v1747 = vmax.f32 %v1446, 0.0
    %v1748 = vmax.f32 %v1670, 0.0
    %v1749 = vmax.f32 %v1672, 0.0
    %v1750 = vmax.f32 %v1450, 0.0
    %v1751 = vmax.f32 %v1452, 0.0
    %v1752 = vmax.f32 %v1676, 0.0
    %v1753 = vmax.f32 %v1678, 0.0
    %v1754 = vmax.f32 %v1454, 0.0
    %v1755 = vmax.f32 %v1456, 0.0
    %v1756 = vmax.f32 %v1680, 0.0
    %v1757 = vmax.f32 %v1682, 0.0
    %v1758 = vmax.f32 %v1460, 0.0
    %v1759 = vmax.f32 %v1462, 0.0
    %v1760 = vmax.f32 %v1686, 0.0
    %v1761 = vmax.f32 %v1688, 0.0
    %v1762 = vmax.f32 %v1464, 0.0
    %v1763 = vmax.f32 %v1466, 0.0
    %v1764 = vmax.f32 %v1690, 0.0
    %v1765 = vmax.f32 %v1692, 0.0
    %v1766 = vmax.f32 %v1470, 0.0
    %v1767 = vmax.f32 %v1472, 0.0
    %v1768 = vmax.f32 %v1696, 0.0
    %v1769 = vmax.f32 %v1698, 0.0
    %v1770 = vmax.f32 %v1474, 0.0
    %v1771 = vmax.f32 %v1476, 0.0
    %v1772 = vmax.f32 %v1700, 0.0
    %v1773 = vmax.f32 %v1702, 0.0
    %v1774 = vmax.f32 %v1480, 0.0
    %v1775 = vmax.f32 %v1482, 0.0
    %v1776 = vmax.f32 %v1706, 0.0
    %v1777 = vmax.f32 %v1708, 0.0
    %v1778 = vmax.f32 %v1484, 0.0
    %v1779 = vmax.f32 %v1486, 0.0
    %v1780 = vmax.f32 %v1710, 0.0
    %v1781 = vmax.f32 %v1712, 0.0
    %v1782 = vmax.f32 %v1490, 0.0
    %v1783 = vmax.f32 %v1492, 0.0
    %v1784 = vmax.f32 %v1716, 0.0
    %v1785 = vmax.f32 %v1718, 0.0
    %v1786 = vmax.f32 %v1494, 0.0
    %v1787 = vmax.f32 %v1496, 0.0
    %v1788 = vmax.f32 %v1720, 0.0
    %v1789 = vmax.f32 %v1722, 0.0
    %v1790 = vmax.f32 %v1500, 0.0
    %v1791 = vmax.f32 %v1502, 0.0
    %v1792 = vmax.f32 %v1726, 0.0
    %v1793 = vmax.f32 %v1728, 0.0
    %v1794 = vmax.f32 %v1504, 0.0
    %v1795 = vmax.f32 %v1506, 0.0
    %v1796 = vmax.f32 %v1730, 0.0
    %v1797 = vmax.f32 %v1732, 0.0
    %v1798 = vpack.c.bf16 %v1738, %v1734
    %v1799 = vpack.c.bf16 %v1739, %v1735
    %v1800 = vpack.c.bf16 %v1740, %v1736
    %v1801 = vpack.c.bf16 %v1741, %v1737
    %v1802 = vpack.c.bf16 %v1746, %v1742
    %v1803 = vpack.c.bf16 %v1747, %v1743
    %v1804 = vpack.c.bf16 %v1748, %v1744
    %v1805 = vpack.c.bf16 %v1749, %v1745
    %v1806 = vpack.c.bf16 %v1754, %v1750
    %v1807 = vpack.c.bf16 %v1755, %v1751
    %v1808 = vpack.c.bf16 %v1756, %v1752
    %v1809 = vpack.c.bf16 %v1757, %v1753
    %v1810 = vpack.c.bf16 %v1762, %v1758
    %v1811 = vpack.c.bf16 %v1763, %v1759
    %v1812 = vpack.c.bf16 %v1764, %v1760
    %v1813 = vpack.c.bf16 %v1765, %v1761
    %v1814 = vpack.c.bf16 %v1770, %v1766
    %v1815 = vpack.c.bf16 %v1771, %v1767
    %v1816 = vpack.c.bf16 %v1772, %v1768
    %v1817 = vpack.c.bf16 %v1773, %v1769
    %v1818 = vpack.c.bf16 %v1778, %v1774
    %v1819 = vpack.c.bf16 %v1779, %v1775
    %v1820 = vpack.c.bf16 %v1780, %v1776
    %v1821 = vpack.c.bf16 %v1781, %v1777
    %v1822 = vpack.c.bf16 %v1786, %v1782
    %v1823 = vpack.c.bf16 %v1787, %v1783
    %v1824 = vpack.c.bf16 %v1788, %v1784
    %v1825 = vpack.c.bf16 %v1789, %v1785
    %v1826 = vpack.c.bf16 %v1794, %v1790
    %v1827 = vpack.c.bf16 %v1795, %v1791
    %v1828 = vpack.c.bf16 %v1796, %v1792
    %v1829 = vpack.c.bf16 %v1797, %v1793
    %v1830 = vld [vmem:[#allocation2 + $0x420] sm:$0xff]
    %v1831 = vld [vmem:[#allocation2 + $0x430] sm:$0xff]
    %v1832 = vld [vmem:[#allocation2 + $0x440] sm:$0xff]
    %v1833 = vld [vmem:[#allocation2 + $0x450] sm:$0xff]
    %v1834 = vld [vmem:[#allocation2 + $0x460] sm:$0xff]
    %v1835 = vld [vmem:[#allocation2 + $0x470] sm:$0xff]
    %v1836 = vld [vmem:[#allocation2 + $0x480] sm:$0xff]
    %v1837 = vld [vmem:[#allocation2 + $0x490] sm:$0xff]
    %v1838 = vld [vmem:[#allocation2 + $0x4a0] sm:$0xff]
    %v1839 = vld [vmem:[#allocation2 + $0x4b0] sm:$0xff]
    %v1840 = vld [vmem:[#allocation2 + $0x4c0] sm:$0xff]
    %v1841 = vld [vmem:[#allocation2 + $0x4d0] sm:$0xff]
    %v1842 = vld [vmem:[#allocation2 + $0x4e0] sm:$0xff]
    %v1843 = vld [vmem:[#allocation2 + $0x4f0] sm:$0xff]
    %v1844 = vld [vmem:[#allocation2 + $0x500] sm:$0xff]
    %v1845 = vld [vmem:[#allocation2 + $0x510] sm:$0xff]
    %v1846 = vld [vmem:[#allocation2 + $0x520] sm:$0xff]
    %v1847 = vld [vmem:[#allocation2 + $0x530] sm:$0xff]
    %v1848 = vld [vmem:[#allocation2 + $0x540] sm:$0xff]
    %v1849 = vld [vmem:[#allocation2 + $0x550] sm:$0xff]
    %v1850 = vld [vmem:[#allocation2 + $0x560] sm:$0xff]
    %v1851 = vld [vmem:[#allocation2 + $0x570] sm:$0xff]
    %v1852 = vld [vmem:[#allocation2 + $0x580] sm:$0xff]
    %v1853 = vld [vmem:[#allocation2 + $0x590] sm:$0xff]
    %v1854 = vld [vmem:[#allocation2 + $0x5a0] sm:$0xff]
    %v1855 = vld [vmem:[#allocation2 + $0x5b0] sm:$0xff]
    %v1856 = vld [vmem:[#allocation2 + $0x5c0] sm:$0xff]
    %v1857 = vld [vmem:[#allocation2 + $0x5d0] sm:$0xff]
    %v1858 = vld [vmem:[#allocation2 + $0x5e0] sm:$0xff]
    %v1859 = vld [vmem:[#allocation2 + $0x5f0] sm:$0xff]
    %v1860 = vld [vmem:[#allocation2 + $0x600] sm:$0xff]
    %v1861 = vld [vmem:[#allocation2 + $0x610] sm:$0xff]
    %v1862 = vld [vmem:[#allocation2 + $0x620] sm:$0xff]
    %v1863 = vld [vmem:[#allocation2 + $0x630] sm:$0xff]
    %v1864 = vld [vmem:[#allocation2 + $0x640] sm:$0xff]
    %v1865 = vld [vmem:[#allocation2 + $0x650] sm:$0xff]
    %v1866 = vld [vmem:[#allocation2 + $0x660] sm:$0xff]
    %v1867 = vld [vmem:[#allocation2 + $0x670] sm:$0xff]
    %v1868 = vld [vmem:[#allocation2 + $0x680] sm:$0xff]
    %v1869 = vld [vmem:[#allocation2 + $0x690] sm:$0xff]
    %v1870 = vld [vmem:[#allocation2 + $0x6a0] sm:$0xff]
    %v1871 = vld [vmem:[#allocation2 + $0x6b0] sm:$0xff]
    %v1872 = vld [vmem:[#allocation2 + $0x6c0] sm:$0xff]
    %v1873 = vld [vmem:[#allocation2 + $0x6d0] sm:$0xff]
    %v1874 = vld [vmem:[#allocation2 + $0x6e0] sm:$0xff]
    %v1875 = vld [vmem:[#allocation2 + $0x6f0] sm:$0xff]
    %v1876 = vld [vmem:[#allocation2 + $0x700] sm:$0xff]
    %v1877 = vld [vmem:[#allocation2 + $0x710] sm:$0xff]
    %v1878 = vld [vmem:[#allocation2 + $0x720] sm:$0xff]
    %v1879 = vld [vmem:[#allocation2 + $0x730] sm:$0xff]
    %v1880 = vld [vmem:[#allocation2 + $0x740] sm:$0xff]
    %v1881 = vld [vmem:[#allocation2 + $0x750] sm:$0xff]
    %v1882 = vld [vmem:[#allocation2 + $0x760] sm:$0xff]
    %v1883 = vld [vmem:[#allocation2 + $0x770] sm:$0xff]
    %v1884 = vld [vmem:[#allocation2 + $0x780] sm:$0xff]
    %v1885 = vld [vmem:[#allocation2 + $0x790] sm:$0xff]
    %v1886 = vld [vmem:[#allocation2 + $0x7a0] sm:$0xff]
    %v1887 = vld [vmem:[#allocation2 + $0x7b0] sm:$0xff]
    %v1888 = vld [vmem:[#allocation2 + $0x7c0] sm:$0xff]
    %v1889 = vld [vmem:[#allocation2 + $0x7d0] sm:$0xff]
    %v1890 = vld [vmem:[#allocation2 + $0x7e0] sm:$0xff]
    %v1891 = vld [vmem:[#allocation2 + $0x7f0] sm:$0xff]
    %v1892 = vld [vmem:[#allocation2 + $0x800] sm:$0xff]
    %v1893 = vld [vmem:[#allocation2 + $0x810] sm:$0xff]
    %s1894 = scalar_lea.vmem [#allocation5], 2
    %v1895 = vld [vmem:[%s1894] ss:$8 sm:$0x3]
    %v1897 = vlaneseq
    %v1898 = vshrl.u32 %v1897, 7
    %v1899 = vsub.s32 0, %v1898
    %v1900 = vrot.slane %v1895, %v1899
    %v1901 = vlaneseq
    %v1902 = vshrl.u32 %v1901, 7
    %v1903 = vsub.s32 1, %v1902
    %v1904 = vrot.slane %v1895, %v1903
    %v1971 = vunpack.c.l.b16 %v1830
    %v1972 = vunpack.c.h.b16 %v1830
    %v1973 = vunpack.c.l.b16 %v1831
    %v1974 = vunpack.c.h.b16 %v1831
    %v1975 = vunpack.c.l.b16 %v1832
    %v1976 = vunpack.c.h.b16 %v1832
    %v1977 = vunpack.c.l.b16 %v1833
    %v1978 = vunpack.c.h.b16 %v1833
    %v1979 = vunpack.c.l.b16 %v1834
    %v1980 = vunpack.c.h.b16 %v1834
    %v1981 = vunpack.c.l.b16 %v1835
    %v1982 = vunpack.c.h.b16 %v1835
    %v1983 = vunpack.c.l.b16 %v1836
    %v1984 = vunpack.c.h.b16 %v1836
    %v1985 = vunpack.c.l.b16 %v1837
    %v1986 = vunpack.c.h.b16 %v1837
    %v1987 = vunpack.c.l.b16 %v1838
    %v1988 = vunpack.c.h.b16 %v1838
    %v1989 = vunpack.c.l.b16 %v1839
    %v1990 = vunpack.c.h.b16 %v1839
    %v1991 = vunpack.c.l.b16 %v1840
    %v1992 = vunpack.c.h.b16 %v1840
    %v1993 = vunpack.c.l.b16 %v1841
    %v1994 = vunpack.c.h.b16 %v1841
    %v1995 = vunpack.c.l.b16 %v1842
    %v1996 = vunpack.c.h.b16 %v1842
    %v1997 = vunpack.c.l.b16 %v1843
    %v1998 = vunpack.c.h.b16 %v1843
    %v1999 = vunpack.c.l.b16 %v1844
    %v2000 = vunpack.c.h.b16 %v1844
    %v2001 = vunpack.c.l.b16 %v1845
    %v2002 = vunpack.c.h.b16 %v1845
    %v2003 = vunpack.c.l.b16 %v1846
    %v2004 = vunpack.c.h.b16 %v1846
    %v2005 = vunpack.c.l.b16 %v1847
    %v2006 = vunpack.c.h.b16 %v1847
    %v2007 = vunpack.c.l.b16 %v1848
    %v2008 = vunpack.c.h.b16 %v1848
    %v2009 = vunpack.c.l.b16 %v1849
    %v2010 = vunpack.c.h.b16 %v1849
    %v2011 = vunpack.c.l.b16 %v1850
    %v2012 = vunpack.c.h.b16 %v1850
    %v2013 = vunpack.c.l.b16 %v1851
    %v2014 = vunpack.c.h.b16 %v1851
    %v2015 = vunpack.c.l.b16 %v1852
    %v2016 = vunpack.c.h.b16 %v1852
    %v2017 = vunpack.c.l.b16 %v1853
    %v2018 = vunpack.c.h.b16 %v1853
    %v2019 = vunpack.c.l.b16 %v1854
    %v2020 = vunpack.c.h.b16 %v1854
    %v2021 = vunpack.c.l.b16 %v1855
    %v2022 = vunpack.c.h.b16 %v1855
    %v2023 = vunpack.c.l.b16 %v1856
    %v2024 = vunpack.c.h.b16 %v1856
    %v2025 = vunpack.c.l.b16 %v1857
    %v2026 = vunpack.c.h.b16 %v1857
    %v2027 = vunpack.c.l.b16 %v1858
    %v2028 = vunpack.c.h.b16 %v1858
    %v2029 = vunpack.c.l.b16 %v1859
    %v2030 = vunpack.c.h.b16 %v1859
    %v2031 = vunpack.c.l.b16 %v1860
    %v2032 = vunpack.c.h.b16 %v1860
    %v2033 = vunpack.c.l.b16 %v1861
    %v2034 = vunpack.c.h.b16 %v1861
    %v2035 = vunpack.c.l.b16 %v1862
    %v2036 = vunpack.c.h.b16 %v1862
    %v2037 = vunpack.c.l.b16 %v1863
    %v2038 = vunpack.c.h.b16 %v1863
    %v2039 = vunpack.c.l.b16 %v1864
    %v2040 = vunpack.c.h.b16 %v1864
    %v2041 = vunpack.c.l.b16 %v1865
    %v2042 = vunpack.c.h.b16 %v1865
    %v2043 = vunpack.c.l.b16 %v1866
    %v2044 = vunpack.c.h.b16 %v1866
    %v2045 = vunpack.c.l.b16 %v1867
    %v2046 = vunpack.c.h.b16 %v1867
    %v2047 = vunpack.c.l.b16 %v1868
    %v2048 = vunpack.c.h.b16 %v1868
    %v2049 = vunpack.c.l.b16 %v1869
    %v2050 = vunpack.c.h.b16 %v1869
    %v2051 = vunpack.c.l.b16 %v1870
    %v2052 = vunpack.c.h.b16 %v1870
    %v2053 = vunpack.c.l.b16 %v1871
    %v2054 = vunpack.c.h.b16 %v1871
    %v2055 = vunpack.c.l.b16 %v1872
    %v2056 = vunpack.c.h.b16 %v1872
    %v2057 = vunpack.c.l.b16 %v1873
    %v2058 = vunpack.c.h.b16 %v1873
    %v2059 = vunpack.c.l.b16 %v1874
    %v2060 = vunpack.c.h.b16 %v1874
    %v2061 = vunpack.c.l.b16 %v1875
    %v2062 = vunpack.c.h.b16 %v1875
    %v2063 = vunpack.c.l.b16 %v1876
    %v2064 = vunpack.c.h.b16 %v1876
    %v2065 = vunpack.c.l.b16 %v1877
    %v2066 = vunpack.c.h.b16 %v1877
    %v2067 = vunpack.c.l.b16 %v1878
    %v2068 = vunpack.c.h.b16 %v1878
    %v2069 = vunpack.c.l.b16 %v1879
    %v2070 = vunpack.c.h.b16 %v1879
    %v2071 = vunpack.c.l.b16 %v1880
    %v2072 = vunpack.c.h.b16 %v1880
    %v2073 = vunpack.c.l.b16 %v1881
    %v2074 = vunpack.c.h.b16 %v1881
    %v2075 = vunpack.c.l.b16 %v1882
    %v2076 = vunpack.c.h.b16 %v1882
    %v2077 = vunpack.c.l.b16 %v1883
    %v2078 = vunpack.c.h.b16 %v1883
    %v2079 = vunpack.c.l.b16 %v1884
    %v2080 = vunpack.c.h.b16 %v1884
    %v2081 = vunpack.c.l.b16 %v1885
    %v2082 = vunpack.c.h.b16 %v1885
    %v2083 = vunpack.c.l.b16 %v1886
    %v2084 = vunpack.c.h.b16 %v1886
    %v2085 = vunpack.c.l.b16 %v1887
    %v2086 = vunpack.c.h.b16 %v1887
    %v2087 = vunpack.c.l.b16 %v1888
    %v2088 = vunpack.c.h.b16 %v1888
    %v2089 = vunpack.c.l.b16 %v1889
    %v2090 = vunpack.c.h.b16 %v1889
    %v2091 = vunpack.c.l.b16 %v1890
    %v2092 = vunpack.c.h.b16 %v1890
    %v2093 = vunpack.c.l.b16 %v1891
    %v2094 = vunpack.c.h.b16 %v1891
    %v2095 = vunpack.c.l.b16 %v1892
    %v2096 = vunpack.c.h.b16 %v1892
    %v2097 = vunpack.c.l.b16 %v1893
    %v2098 = vunpack.c.h.b16 %v1893
    %v2099 = vpack.c.b16 %v1973, %v1971
    %v2100 = vpack.c.b16 %v1974, %v1972
    %v2101 = vpack.c.b16 %v1977, %v1975
    %v2102 = vpack.c.b16 %v1978, %v1976
    %v2103 = vpack.c.b16 %v1981, %v1979
    %v2104 = vpack.c.b16 %v1982, %v1980
    %v2105 = vpack.c.b16 %v1985, %v1983
    %v2106 = vpack.c.b16 %v1986, %v1984
    %v2107 = vpack.c.b16 %v1989, %v1987
    %v2108 = vpack.c.b16 %v1990, %v1988
    %v2109 = vpack.c.b16 %v1993, %v1991
    %v2110 = vpack.c.b16 %v1994, %v1992
    %v2111 = vpack.c.b16 %v1997, %v1995
    %v2112 = vpack.c.b16 %v1998, %v1996
    %v2113 = vpack.c.b16 %v2001, %v1999
    %v2114 = vpack.c.b16 %v2002, %v2000
    %v2115 = vpack.c.b16 %v2005, %v2003
    %v2116 = vpack.c.b16 %v2006, %v2004
    %v2117 = vpack.c.b16 %v2009, %v2007
    %v2118 = vpack.c.b16 %v2010, %v2008
    %v2119 = vpack.c.b16 %v2013, %v2011
    %v2120 = vpack.c.b16 %v2014, %v2012
    %v2121 = vpack.c.b16 %v2017, %v2015
    %v2122 = vpack.c.b16 %v2018, %v2016
    %v2123 = vpack.c.b16 %v2021, %v2019
    %v2124 = vpack.c.b16 %v2022, %v2020
    %v2125 = vpack.c.b16 %v2025, %v2023
    %v2126 = vpack.c.b16 %v2026, %v2024
    %v2127 = vpack.c.b16 %v2029, %v2027
    %v2128 = vpack.c.b16 %v2030, %v2028
    %v2129 = vpack.c.b16 %v2033, %v2031
    %v2130 = vpack.c.b16 %v2034, %v2032
    %v2131 = vpack.c.b16 %v2037, %v2035
    %v2132 = vpack.c.b16 %v2038, %v2036
    %v2133 = vpack.c.b16 %v2041, %v2039
    %v2134 = vpack.c.b16 %v2042, %v2040
    %v2135 = vpack.c.b16 %v2045, %v2043
    %v2136 = vpack.c.b16 %v2046, %v2044
    %v2137 = vpack.c.b16 %v2049, %v2047
    %v2138 = vpack.c.b16 %v2050, %v2048
    %v2139 = vpack.c.b16 %v2053, %v2051
    %v2140 = vpack.c.b16 %v2054, %v2052
    %v2141 = vpack.c.b16 %v2057, %v2055
    %v2142 = vpack.c.b16 %v2058, %v2056
    %v2143 = vpack.c.b16 %v2061, %v2059
    %v2144 = vpack.c.b16 %v2062, %v2060
    %v2145 = vpack.c.b16 %v2065, %v2063
    %v2146 = vpack.c.b16 %v2066, %v2064
    %v2147 = vpack.c.b16 %v2069, %v2067
    %v2148 = vpack.c.b16 %v2070, %v2068
    %v2149 = vpack.c.b16 %v2073, %v2071
    %v2150 = vpack.c.b16 %v2074, %v2072
    %v2151 = vpack.c.b16 %v2077, %v2075
    %v2152 = vpack.c.b16 %v2078, %v2076
    %v2153 = vpack.c.b16 %v2081, %v2079
    %v2154 = vpack.c.b16 %v2082, %v2080
    %v2155 = vpack.c.b16 %v2085, %v2083
    %v2156 = vpack.c.b16 %v2086, %v2084
    %v2157 = vpack.c.b16 %v2089, %v2087
    %v2158 = vpack.c.b16 %v2090, %v2088
    %v2159 = vpack.c.b16 %v2093, %v2091
    %v2160 = vpack.c.b16 %v2094, %v2092
    %v2161 = vpack.c.b16 %v2097, %v2095
    %v2162 = vpack.c.b16 %v2098, %v2096
    %2227 = vmatprep.subr.bf16.mxu0 %v2100
    %2228 = vmatpush1.bf16.msra.mxu0 %v2099
    %2229 = vmatprep.subr.bf16.mxu0 %v2102
    %2230 = vmatpush1.bf16.msra.mxu0 %v2101
    %2231 = vmatprep.subr.bf16.mxu0 %v2104
    %2232 = vmatpush1.bf16.msra.mxu0 %v2103
    %2233 = vmatprep.subr.bf16.mxu0 %v2106
    %2234 = vmatpush1.bf16.msra.mxu0 %v2105
    %2235 = vmatprep.subr.bf16.mxu0 %v2108
    %2236 = vmatpush1.bf16.msra.mxu0 %v2107
    %2237 = vmatprep.subr.bf16.mxu0 %v2110
    %2238 = vmatpush1.bf16.msra.mxu0 %v2109
    %2239 = vmatprep.subr.bf16.mxu0 %v2112
    %2240 = vmatpush1.bf16.msra.mxu0 %v2111
    %2241 = vmatprep.subr.bf16.mxu0 %v2114
    %2242 = vmatpush1.bf16.msra.mxu0 %v2113
    %2243 = vmatprep.subr.bf16.mxu0 %v2116
    %2244 = vmatpush1.bf16.msra.mxu0 %v2115
    %2245 = vmatprep.subr.bf16.mxu0 %v2118
    %2246 = vmatpush1.bf16.msra.mxu0 %v2117
    %2247 = vmatprep.subr.bf16.mxu0 %v2120
    %2248 = vmatpush1.bf16.msra.mxu0 %v2119
    %2249 = vmatprep.subr.bf16.mxu0 %v2122
    %2250 = vmatpush1.bf16.msra.mxu0 %v2121
    %2251 = vmatprep.subr.bf16.mxu0 %v2124
    %2252 = vmatpush1.bf16.msra.mxu0 %v2123
    %2253 = vmatprep.subr.bf16.mxu0 %v2126
    %2254 = vmatpush1.bf16.msra.mxu0 %v2125
    %2255 = vmatprep.subr.bf16.mxu0 %v2128
    %2256 = vmatpush1.bf16.msra.mxu0 %v2127
    %2257 = vmatprep.subr.bf16.mxu0 %v2130
    %2258 = vmatpush1.bf16.msra.mxu0 %v2129
    %2259 = vmatprep.mubr.bf16.mxu0 %v1799
    %2260 = vmatmul.mubr.bf16.gmra.mrb[0].mxu0 %v1798
    %v2261 = vpop.f32.mrb[0].mxu0
    %v2262 = vadd.f32 %v1900, %v2261
    %v2263 = vpop.f32.mrb[0].mxu0
    %v2264 = vadd.f32 %v1904, %v2263
    %v2265 = vpop.f32.mrb[0].mxu0
    %v2266 = vadd.f32 %v1900, %v2265
    %v2267 = vpop.f32.mrb[0].mxu0
    %v2268 = vadd.f32 %v1904, %v2267
    %2269 = vmatprep.mubr.bf16.mxu0 %v1803
    %2270 = vmatmul.mubr.bf16.gmra.mrb[0].mxu0 %v1802
    %v2271 = vpop.f32.mrb[0].mxu0
    %v2272 = vadd.f32 %v1900, %v2271
    %v2273 = vpop.f32.mrb[0].mxu0
    %v2274 = vadd.f32 %v1904, %v2273
    %v2275 = vpop.f32.mrb[0].mxu0
    %v2276 = vadd.f32 %v1900, %v2275
    %v2277 = vpop.f32.mrb[0].mxu0
    %v2278 = vadd.f32 %v1904, %v2277
    %2279 = vmatprep.mubr.bf16.mxu0 %v1807
    %2280 = vmatmul.mubr.bf16.gmra.mrb[0].mxu0 %v1806
    %v2281 = vpop.f32.mrb[0].mxu0
    %v2282 = vadd.f32 %v1900, %v2281
    %v2283 = vpop.f32.mrb[0].mxu0
    %v2284 = vadd.f32 %v1904, %v2283
    %v2285 = vpop.f32.mrb[0].mxu0
    %v2286 = vadd.f32 %v1900, %v2285
    %v2287 = vpop.f32.mrb[0].mxu0
    %v2288 = vadd.f32 %v1904, %v2287
    %2289 = vmatprep.mubr.bf16.mxu0 %v1811
    %2290 = vmatmul.mubr.bf16.gmra.mrb[0].mxu0 %v1810
    %v2291 = vpop.f32.mrb[0].mxu0
    %v2292 = vadd.f32 %v1900, %v2291
    %v2293 = vpop.f32.mrb[0].mxu0
    %v2294 = vadd.f32 %v1904, %v2293
    %v2295 = vpop.f32.mrb[0].mxu0
    %v2296 = vadd.f32 %v1900, %v2295
    %v2297 = vpop.f32.mrb[0].mxu0
    %v2298 = vadd.f32 %v1904, %v2297
    %2299 = vmatprep.mubr.bf16.mxu0 %v1815
    %2300 = vmatmul.mubr.bf16.gmra.mrb[0].mxu0 %v1814
    %v2301 = vpop.f32.mrb[0].mxu0
    %v2302 = vadd.f32 %v1900, %v2301
    %v2303 = vpop.f32.mrb[0].mxu0
    %v2304 = vadd.f32 %v1904, %v2303
    %v2305 = vpop.f32.mrb[0].mxu0
    %v2306 = vadd.f32 %v1900, %v2305
    %v2307 = vpop.f32.mrb[0].mxu0
    %v2308 = vadd.f32 %v1904, %v2307
    %2309 = vmatprep.mubr.bf16.mxu0 %v1819
    %2310 = vmatmul.mubr.bf16.gmra.mrb[0].mxu0 %v1818
    %v2311 = vpop.f32.mrb[0].mxu0
    %v2312 = vadd.f32 %v1900, %v2311
    %v2313 = vpop.f32.mrb[0].mxu0
    %v2314 = vadd.f32 %v1904, %v2313
    %v2315 = vpop.f32.mrb[0].mxu0
    %v2316 = vadd.f32 %v1900, %v2315
    %v2317 = vpop.f32.mrb[0].mxu0
    %v2318 = vadd.f32 %v1904, %v2317
    %2319 = vmatprep.mubr.bf16.mxu0 %v1823
    %2320 = vmatmul.mubr.bf16.gmra.mrb[0].mxu0 %v1822
    %v2321 = vpop.f32.mrb[0].mxu0
    %v2322 = vadd.f32 %v1900, %v2321
    %v2323 = vpop.f32.mrb[0].mxu0
    %v2324 = vadd.f32 %v1904, %v2323
    %v2325 = vpop.f32.mrb[0].mxu0
    %v2326 = vadd.f32 %v1900, %v2325
    %v2327 = vpop.f32.mrb[0].mxu0
    %v2328 = vadd.f32 %v1904, %v2327
    %2329 = vmatprep.mubr.bf16.mxu0 %v1827
    %2330 = vmatmul.mubr.bf16.gmra.mrb[0].mxu0 %v1826
    %v2331 = vpop.f32.mrb[0].mxu0
    %v2332 = vadd.f32 %v1900, %v2331
    %v2333 = vpop.f32.mrb[0].mxu0
    %v2334 = vadd.f32 %v1904, %v2333
    %v2335 = vpop.f32.mrb[0].mxu0
    %v2336 = vadd.f32 %v1900, %v2335
    %v2337 = vpop.f32.mrb[0].mxu0
    %v2338 = vadd.f32 %v1904, %v2337
    %2339 = vdwg.mxu0
    %2340 = vmatprep.subr.bf16.mxu0 %v2132
    %2341 = vmatpush1.bf16.msra.mxu0 %v2131
    %2342 = vmatprep.subr.bf16.mxu0 %v2134
    %2343 = vmatpush1.bf16.msra.mxu0 %v2133
    %2344 = vmatprep.subr.bf16.mxu0 %v2136
    %2345 = vmatpush1.bf16.msra.mxu0 %v2135
    %2346 = vmatprep.subr.bf16.mxu0 %v2138
    %2347 = vmatpush1.bf16.msra.mxu0 %v2137
    %2348 = vmatprep.subr.bf16.mxu0 %v2140
    %2349 = vmatpush1.bf16.msra.mxu0 %v2139
    %2350 = vmatprep.subr.bf16.mxu0 %v2142
    %2351 = vmatpush1.bf16.msra.mxu0 %v2141
    %2352 = vmatprep.subr.bf16.mxu0 %v2144
    %2353 = vmatpush1.bf16.msra.mxu0 %v2143
    %2354 = vmatprep.subr.bf16.mxu0 %v2146
    %2355 = vmatpush1.bf16.msra.mxu0 %v2145
    %2356 = vmatprep.subr.bf16.mxu0 %v2148
    %2357 = vmatpush1.bf16.msra.mxu0 %v2147
    %2358 = vmatprep.subr.bf16.mxu0 %v2150
    %2359 = vmatpush1.bf16.msra.mxu0 %v2149
    %2360 = vmatprep.subr.bf16.mxu0 %v2152
    %2361 = vmatpush1.bf16.msra.mxu0 %v2151
    %2362 = vmatprep.subr.bf16.mxu0 %v2154
    %2363 = vmatpush1.bf16.msra.mxu0 %v2153
    %2364 = vmatprep.subr.bf16.mxu0 %v2156
    %2365 = vmatpush1.bf16.msra.mxu0 %v2155
    %2366 = vmatprep.subr.bf16.mxu0 %v2158
    %2367 = vmatpush1.bf16.msra.mxu0 %v2157
    %2368 = vmatprep.subr.bf16.mxu0 %v2160
    %2369 = vmatpush1.bf16.msra.mxu0 %v2159
    %2370 = vmatprep.subr.bf16.mxu0 %v2162
    %2371 = vmatpush1.bf16.msra.mxu0 %v2161
    %2372 = vmatprep.mubr.bf16.mxu0 %v1801
    %2373 = vmatmul.mubr.bf16.gmra.mrb[0].mxu0 %v1800
    %v2374 = vpop.f32.mrb[0].mxu0
    %v2375 = vadd.f32 %v2262, %v2374
    %v2376 = vpop.f32.mrb[0].mxu0
    %v2377 = vadd.f32 %v2264, %v2376
    %v2378 = vpop.f32.mrb[0].mxu0
    %v2379 = vadd.f32 %v2266, %v2378
    %v2380 = vpop.f32.mrb[0].mxu0
    %v2381 = vadd.f32 %v2268, %v2380
    %2382 = vmatprep.mubr.bf16.mxu0 %v1805
    %2383 = vmatmul.mubr.bf16.gmra.mrb[0].mxu0 %v1804
    %v2384 = vpop.f32.mrb[0].mxu0
    %v2385 = vadd.f32 %v2272, %v2384
    %v2386 = vpop.f32.mrb[0].mxu0
    %v2387 = vadd.f32 %v2274, %v2386
    %v2388 = vpop.f32.mrb[0].mxu0
    %v2389 = vadd.f32 %v2276, %v2388
    %v2390 = vpop.f32.mrb[0].mxu0
    %v2391 = vadd.f32 %v2278, %v2390
    %2392 = vmatprep.mubr.bf16.mxu0 %v1809
    %2393 = vmatmul.mubr.bf16.gmra.mrb[0].mxu0 %v1808
    %v2394 = vpop.f32.mrb[0].mxu0
    %v2395 = vadd.f32 %v2282, %v2394
    %v2396 = vpop.f32.mrb[0].mxu0
    %v2397 = vadd.f32 %v2284, %v2396
    %v2398 = vpop.f32.mrb[0].mxu0
    %v2399 = vadd.f32 %v2286, %v2398
    %v2400 = vpop.f32.mrb[0].mxu0
    %v2401 = vadd.f32 %v2288, %v2400
    %2402 = vmatprep.mubr.bf16.mxu0 %v1813
    %2403 = vmatmul.mubr.bf16.gmra.mrb[0].mxu0 %v1812
    %v2404 = vpop.f32.mrb[0].mxu0
    %v2405 = vadd.f32 %v2292, %v2404
    %v2406 = vpop.f32.mrb[0].mxu0
    %v2407 = vadd.f32 %v2294, %v2406
    %v2408 = vpop.f32.mrb[0].mxu0
    %v2409 = vadd.f32 %v2296, %v2408
    %v2410 = vpop.f32.mrb[0].mxu0
    %v2411 = vadd.f32 %v2298, %v2410
    %2412 = vmatprep.mubr.bf16.mxu0 %v1817
    %2413 = vmatmul.mubr.bf16.gmra.mrb[0].mxu0 %v1816
    %v2414 = vpop.f32.mrb[0].mxu0
    %v2415 = vadd.f32 %v2302, %v2414
    %v2416 = vpop.f32.mrb[0].mxu0
    %v2417 = vadd.f32 %v2304, %v2416
    %v2418 = vpop.f32.mrb[0].mxu0
    %v2419 = vadd.f32 %v2306, %v2418
    %v2420 = vpop.f32.mrb[0].mxu0
    %v2421 = vadd.f32 %v2308, %v2420
    %2422 = vmatprep.mubr.bf16.mxu0 %v1821
    %2423 = vmatmul.mubr.bf16.gmra.mrb[0].mxu0 %v1820
    %v2424 = vpop.f32.mrb[0].mxu0
    %v2425 = vadd.f32 %v2312, %v2424
    %v2426 = vpop.f32.mrb[0].mxu0
    %v2427 = vadd.f32 %v2314, %v2426
    %v2428 = vpop.f32.mrb[0].mxu0
    %v2429 = vadd.f32 %v2316, %v2428
    %v2430 = vpop.f32.mrb[0].mxu0
    %v2431 = vadd.f32 %v2318, %v2430
    %2432 = vmatprep.mubr.bf16.mxu0 %v1825
    %2433 = vmatmul.mubr.bf16.gmra.mrb[0].mxu0 %v1824
    %v2434 = vpop.f32.mrb[0].mxu0
    %v2435 = vadd.f32 %v2322, %v2434
    %v2436 = vpop.f32.mrb[0].mxu0
    %v2437 = vadd.f32 %v2324, %v2436
    %v2438 = vpop.f32.mrb[0].mxu0
    %v2439 = vadd.f32 %v2326, %v2438
    %v2440 = vpop.f32.mrb[0].mxu0
    %v2441 = vadd.f32 %v2328, %v2440
    %2442 = vmatprep.mubr.bf16.mxu0 %v1829
    %2443 = vmatmul.mubr.bf16.gmra.mrb[0].mxu0 %v1828
    %v2444 = vpop.f32.mrb[0].mxu0
    %v2445 = vadd.f32 %v2332, %v2444
    %v2446 = vpop.f32.mrb[0].mxu0
    %v2447 = vadd.f32 %v2334, %v2446
    %v2448 = vpop.f32.mrb[0].mxu0
    %v2449 = vadd.f32 %v2336, %v2448
    %v2450 = vpop.f32.mrb[0].mxu0
    %v2451 = vadd.f32 %v2338, %v2450
    %2452 = vdwg.mxu0
    %v2453 = vmax.f32 %v2375, 0.0
    %v2454 = vmax.f32 %v2377, 0.0
    %v2455 = vmax.f32 %v2379, 0.0
    %v2456 = vmax.f32 %v2381, 0.0
    %v2457 = vmax.f32 %v2385, 0.0
    %v2458 = vmax.f32 %v2387, 0.0
    %v2459 = vmax.f32 %v2389, 0.0
    %v2460 = vmax.f32 %v2391, 0.0
    %v2461 = vmax.f32 %v2395, 0.0
    %v2462 = vmax.f32 %v2397, 0.0
    %v2463 = vmax.f32 %v2399, 0.0
    %v2464 = vmax.f32 %v2401, 0.0
    %v2465 = vmax.f32 %v2405, 0.0
    %v2466 = vmax.f32 %v2407, 0.0
    %v2467 = vmax.f32 %v2409, 0.0
    %v2468 = vmax.f32 %v2411, 0.0
    %v2469 = vmax.f32 %v2415, 0.0
    %v2470 = vmax.f32 %v2417, 0.0
    %v2471 = vmax.f32 %v2419, 0.0
    %v2472 = vmax.f32 %v2421, 0.0
    %v2473 = vmax.f32 %v2425, 0.0
    %v2474 = vmax.f32 %v2427, 0.0
    %v2475 = vmax.f32 %v2429, 0.0
    %v2476 = vmax.f32 %v2431, 0.0
    %v2477 = vmax.f32 %v2435, 0.0
    %v2478 = vmax.f32 %v2437, 0.0
    %v2479 = vmax.f32 %v2439, 0.0
    %v2480 = vmax.f32 %v2441, 0.0
    %v2481 = vmax.f32 %v2445, 0.0
    %v2482 = vmax.f32 %v2447, 0.0
    %v2483 = vmax.f32 %v2449, 0.0
    %v2484 = vmax.f32 %v2451, 0.0
    %v2485 = vpack.c.bf16 %v2455, %v2453
    %v2486 = vpack.c.bf16 %v2456, %v2454
    %v2487 = vpack.c.bf16 %v2459, %v2457
    %v2488 = vpack.c.bf16 %v2460, %v2458
    %v2489 = vpack.c.bf16 %v2463, %v2461
    %v2490 = vpack.c.bf16 %v2464, %v2462
    %v2491 = vpack.c.bf16 %v2467, %v2465
    %v2492 = vpack.c.bf16 %v2468, %v2466
    %v2493 = vpack.c.bf16 %v2471, %v2469
    %v2494 = vpack.c.bf16 %v2472, %v2470
    %v2495 = vpack.c.bf16 %v2475, %v2473
    %v2496 = vpack.c.bf16 %v2476, %v2474
    %v2497 = vpack.c.bf16 %v2479, %v2477
    %v2498 = vpack.c.bf16 %v2480, %v2478
    %v2499 = vpack.c.bf16 %v2483, %v2481
    %v2500 = vpack.c.bf16 %v2484, %v2482
    %v2501 = vld [vmem:[#allocation2 + $0x820] sm:$0xff]
    %v2502 = vld [vmem:[#allocation2 + $0x830] sm:$0xff]
    %v2503 = vld [vmem:[#allocation2 + $0x840] sm:$0xff]
    %v2504 = vld [vmem:[#allocation2 + $0x850] sm:$0xff]
    %v2505 = vld [vmem:[#allocation2 + $0x860] sm:$0xff]
    %v2506 = vld [vmem:[#allocation2 + $0x870] sm:$0xff]
    %v2507 = vld [vmem:[#allocation2 + $0x880] sm:$0xff]
    %v2508 = vld [vmem:[#allocation2 + $0x890] sm:$0xff]
    %v2509 = vld [vmem:[#allocation2 + $0x8a0] sm:$0xff]
    %v2510 = vld [vmem:[#allocation2 + $0x8b0] sm:$0xff]
    %v2511 = vld [vmem:[#allocation2 + $0x8c0] sm:$0xff]
    %v2512 = vld [vmem:[#allocation2 + $0x8d0] sm:$0xff]
    %v2513 = vld [vmem:[#allocation2 + $0x8e0] sm:$0xff]
    %v2514 = vld [vmem:[#allocation2 + $0x8f0] sm:$0xff]
    %v2515 = vld [vmem:[#allocation2 + $0x900] sm:$0xff]
    %v2516 = vld [vmem:[#allocation2 + $0x910] sm:$0xff]
    %v2517 = vld [vmem:[#allocation2 + $0x920] sm:$0xff]
    %v2518 = vld [vmem:[#allocation2 + $0x930] sm:$0xff]
    %v2519 = vld [vmem:[#allocation2 + $0x940] sm:$0xff]
    %v2520 = vld [vmem:[#allocation2 + $0x950] sm:$0xff]
    %v2521 = vld [vmem:[#allocation2 + $0x960] sm:$0xff]
    %v2522 = vld [vmem:[#allocation2 + $0x970] sm:$0xff]
    %v2523 = vld [vmem:[#allocation2 + $0x980] sm:$0xff]
    %v2524 = vld [vmem:[#allocation2 + $0x990] sm:$0xff]
    %v2525 = vld [vmem:[#allocation2 + $0x9a0] sm:$0xff]
    %v2526 = vld [vmem:[#allocation2 + $0x9b0] sm:$0xff]
    %v2527 = vld [vmem:[#allocation2 + $0x9c0] sm:$0xff]
    %v2528 = vld [vmem:[#allocation2 + $0x9d0] sm:$0xff]
    %v2529 = vld [vmem:[#allocation2 + $0x9e0] sm:$0xff]
    %v2530 = vld [vmem:[#allocation2 + $0x9f0] sm:$0xff]
    %v2531 = vld [vmem:[#allocation2 + $0xa00] sm:$0xff]
    %v2532 = vld [vmem:[#allocation2 + $0xa10] sm:$0xff]
    %s2533 = scalar_lea.vmem [#allocation5], 3
    %v2534 = vld [vmem:[%s2533] ss:$8 sm:$0x3]
    %v2536 = vlaneseq
    %v2537 = vshrl.u32 %v2536, 7
    %v2538 = vsub.s32 0, %v2537
    %v2539 = vrot.slane %v2534, %v2538
    %v2540 = vlaneseq
    %v2541 = vshrl.u32 %v2540, 7
    %v2542 = vsub.s32 1, %v2541
    %v2543 = vrot.slane %v2534, %v2542
    %v2578 = vunpack.c.l.b16 %v2501
    %v2579 = vunpack.c.h.b16 %v2501
    %v2580 = vunpack.c.l.b16 %v2502
    %v2581 = vunpack.c.h.b16 %v2502
    %v2582 = vunpack.c.l.b16 %v2503
    %v2583 = vunpack.c.h.b16 %v2503
    %v2584 = vunpack.c.l.b16 %v2504
    %v2585 = vunpack.c.h.b16 %v2504
    %v2586 = vunpack.c.l.b16 %v2505
    %v2587 = vunpack.c.h.b16 %v2505
    %v2588 = vunpack.c.l.b16 %v2506
    %v2589 = vunpack.c.h.b16 %v2506
    %v2590 = vunpack.c.l.b16 %v2507
    %v2591 = vunpack.c.h.b16 %v2507
    %v2592 = vunpack.c.l.b16 %v2508
    %v2593 = vunpack.c.h.b16 %v2508
    %v2594 = vunpack.c.l.b16 %v2509
    %v2595 = vunpack.c.h.b16 %v2509
    %v2596 = vunpack.c.l.b16 %v2510
    %v2597 = vunpack.c.h.b16 %v2510
    %v2598 = vunpack.c.l.b16 %v2511
    %v2599 = vunpack.c.h.b16 %v2511
    %v2600 = vunpack.c.l.b16 %v2512
    %v2601 = vunpack.c.h.b16 %v2512
    %v2602 = vunpack.c.l.b16 %v2513
    %v2603 = vunpack.c.h.b16 %v2513
    %v2604 = vunpack.c.l.b16 %v2514
    %v2605 = vunpack.c.h.b16 %v2514
    %v2606 = vunpack.c.l.b16 %v2515
    %v2607 = vunpack.c.h.b16 %v2515
    %v2608 = vunpack.c.l.b16 %v2516
    %v2609 = vunpack.c.h.b16 %v2516
    %v2610 = vunpack.c.l.b16 %v2517
    %v2611 = vunpack.c.h.b16 %v2517
    %v2612 = vunpack.c.l.b16 %v2518
    %v2613 = vunpack.c.h.b16 %v2518
    %v2614 = vunpack.c.l.b16 %v2519
    %v2615 = vunpack.c.h.b16 %v2519
    %v2616 = vunpack.c.l.b16 %v2520
    %v2617 = vunpack.c.h.b16 %v2520
    %v2618 = vunpack.c.l.b16 %v2521
    %v2619 = vunpack.c.h.b16 %v2521
    %v2620 = vunpack.c.l.b16 %v2522
    %v2621 = vunpack.c.h.b16 %v2522
    %v2622 = vunpack.c.l.b16 %v2523
    %v2623 = vunpack.c.h.b16 %v2523
    %v2624 = vunpack.c.l.b16 %v2524
    %v2625 = vunpack.c.h.b16 %v2524
    %v2626 = vunpack.c.l.b16 %v2525
    %v2627 = vunpack.c.h.b16 %v2525
    %v2628 = vunpack.c.l.b16 %v2526
    %v2629 = vunpack.c.h.b16 %v2526
    %v2630 = vunpack.c.l.b16 %v2527
    %v2631 = vunpack.c.h.b16 %v2527
    %v2632 = vunpack.c.l.b16 %v2528
    %v2633 = vunpack.c.h.b16 %v2528
    %v2634 = vunpack.c.l.b16 %v2529
    %v2635 = vunpack.c.h.b16 %v2529
    %v2636 = vunpack.c.l.b16 %v2530
    %v2637 = vunpack.c.h.b16 %v2530
    %v2638 = vunpack.c.l.b16 %v2531
    %v2639 = vunpack.c.h.b16 %v2531
    %v2640 = vunpack.c.l.b16 %v2532
    %v2641 = vunpack.c.h.b16 %v2532
    %v2642 = vpack.c.b16 %v2580, %v2578
    %v2643 = vpack.c.b16 %v2581, %v2579
    %v2644 = vpack.c.b16 %v2584, %v2582
    %v2645 = vpack.c.b16 %v2585, %v2583
    %v2646 = vpack.c.b16 %v2588, %v2586
    %v2647 = vpack.c.b16 %v2589, %v2587
    %v2648 = vpack.c.b16 %v2592, %v2590
    %v2649 = vpack.c.b16 %v2593, %v2591
    %v2650 = vpack.c.b16 %v2596, %v2594
    %v2651 = vpack.c.b16 %v2597, %v2595
    %v2652 = vpack.c.b16 %v2600, %v2598
    %v2653 = vpack.c.b16 %v2601, %v2599
    %v2654 = vpack.c.b16 %v2604, %v2602
    %v2655 = vpack.c.b16 %v2605, %v2603
    %v2656 = vpack.c.b16 %v2608, %v2606
    %v2657 = vpack.c.b16 %v2609, %v2607
    %v2658 = vpack.c.b16 %v2612, %v2610
    %v2659 = vpack.c.b16 %v2613, %v2611
    %v2660 = vpack.c.b16 %v2616, %v2614
    %v2661 = vpack.c.b16 %v2617, %v2615
    %v2662 = vpack.c.b16 %v2620, %v2618
    %v2663 = vpack.c.b16 %v2621, %v2619
    %v2664 = vpack.c.b16 %v2624, %v2622
    %v2665 = vpack.c.b16 %v2625, %v2623
    %v2666 = vpack.c.b16 %v2628, %v2626
    %v2667 = vpack.c.b16 %v2629, %v2627
    %v2668 = vpack.c.b16 %v2632, %v2630
    %v2669 = vpack.c.b16 %v2633, %v2631
    %v2670 = vpack.c.b16 %v2636, %v2634
    %v2671 = vpack.c.b16 %v2637, %v2635
    %v2672 = vpack.c.b16 %v2640, %v2638
    %v2673 = vpack.c.b16 %v2641, %v2639
    %2706 = vmatprep.subr.bf16.mxu0 %v2643
    %2707 = vmatpush1.bf16.msra.mxu0 %v2642
    %2708 = vmatprep.subr.bf16.mxu0 %v2645
    %2709 = vmatpush1.bf16.msra.mxu0 %v2644
    %2710 = vmatprep.subr.bf16.mxu0 %v2647
    %2711 = vmatpush1.bf16.msra.mxu0 %v2646
    %2712 = vmatprep.subr.bf16.mxu0 %v2649
    %2713 = vmatpush1.bf16.msra.mxu0 %v2648
    %2714 = vmatprep.subr.bf16.mxu0 %v2651
    %2715 = vmatpush1.bf16.msra.mxu0 %v2650
    %2716 = vmatprep.subr.bf16.mxu0 %v2653
    %2717 = vmatpush1.bf16.msra.mxu0 %v2652
    %2718 = vmatprep.subr.bf16.mxu0 %v2655
    %2719 = vmatpush1.bf16.msra.mxu0 %v2654
    %2720 = vmatprep.subr.bf16.mxu0 %v2657
    %2721 = vmatpush1.bf16.msra.mxu0 %v2656
    %2722 = vmatprep.subr.bf16.mxu0 %v2659
    %2723 = vmatpush1.bf16.msra.mxu0 %v2658
    %2724 = vmatprep.subr.bf16.mxu0 %v2661
    %2725 = vmatpush1.bf16.msra.mxu0 %v2660
    %2726 = vmatprep.subr.bf16.mxu0 %v2663
    %2727 = vmatpush1.bf16.msra.mxu0 %v2662
    %2728 = vmatprep.subr.bf16.mxu0 %v2665
    %2729 = vmatpush1.bf16.msra.mxu0 %v2664
    %2730 = vmatprep.subr.bf16.mxu0 %v2667
    %2731 = vmatpush1.bf16.msra.mxu0 %v2666
    %2732 = vmatprep.subr.bf16.mxu0 %v2669
    %2733 = vmatpush1.bf16.msra.mxu0 %v2668
    %2734 = vmatprep.subr.bf16.mxu0 %v2671
    %2735 = vmatpush1.bf16.msra.mxu0 %v2670
    %2736 = vmatprep.subr.bf16.mxu0 %v2673
    %2737 = vmatpush1.bf16.msra.mxu0 %v2672
    %2738 = vmatprep.mubr.bf16.mxu0 %v2486
    %2739 = vmatmul.mubr.bf16.gmra.mrb[0].mxu0 %v2485
    %v2740 = vpop.f32.mrb[0].mxu0
    %v2741 = vadd.f32 %v2539, %v2740
    %v2742 = vpop.f32.mrb[0].mxu0
    %v2743 = vadd.f32 %v2543, %v2742
    %v2744 = vpop.f32.mrb[0].mxu0
    %v2745 = vadd.f32 %v2539, %v2744
    %v2746 = vpop.f32.mrb[0].mxu0
    %v2747 = vadd.f32 %v2543, %v2746
    %2748 = vmatprep.mubr.bf16.mxu0 %v2488
    %2749 = vmatmul.mubr.bf16.gmra.mrb[0].mxu0 %v2487
    %v2750 = vpop.f32.mrb[0].mxu0
    %v2751 = vadd.f32 %v2539, %v2750
    %v2752 = vpop.f32.mrb[0].mxu0
    %v2753 = vadd.f32 %v2543, %v2752
    %v2754 = vpop.f32.mrb[0].mxu0
    %v2755 = vadd.f32 %v2539, %v2754
    %v2756 = vpop.f32.mrb[0].mxu0
    %v2757 = vadd.f32 %v2543, %v2756
    %2758 = vmatprep.mubr.bf16.mxu0 %v2490
    %2759 = vmatmul.mubr.bf16.gmra.mrb[0].mxu0 %v2489
    %v2760 = vpop.f32.mrb[0].mxu0
    %v2761 = vadd.f32 %v2539, %v2760
    %v2762 = vpop.f32.mrb[0].mxu0
    %v2763 = vadd.f32 %v2543, %v2762
    %v2764 = vpop.f32.mrb[0].mxu0
    %v2765 = vadd.f32 %v2539, %v2764
    %v2766 = vpop.f32.mrb[0].mxu0
    %v2767 = vadd.f32 %v2543, %v2766
    %2768 = vmatprep.mubr.bf16.mxu0 %v2492
    %2769 = vmatmul.mubr.bf16.gmra.mrb[0].mxu0 %v2491
    %v2770 = vpop.f32.mrb[0].mxu0
    %v2771 = vadd.f32 %v2539, %v2770
    %v2772 = vpop.f32.mrb[0].mxu0
    %v2773 = vadd.f32 %v2543, %v2772
    %v2774 = vpop.f32.mrb[0].mxu0
    %v2775 = vadd.f32 %v2539, %v2774
    %v2776 = vpop.f32.mrb[0].mxu0
    %v2777 = vadd.f32 %v2543, %v2776
    %2778 = vmatprep.mubr.bf16.mxu0 %v2494
    %2779 = vmatmul.mubr.bf16.gmra.mrb[0].mxu0 %v2493
    %v2780 = vpop.f32.mrb[0].mxu0
    %v2781 = vadd.f32 %v2539, %v2780
    %v2782 = vpop.f32.mrb[0].mxu0
    %v2783 = vadd.f32 %v2543, %v2782
    %v2784 = vpop.f32.mrb[0].mxu0
    %v2785 = vadd.f32 %v2539, %v2784
    %v2786 = vpop.f32.mrb[0].mxu0
    %v2787 = vadd.f32 %v2543, %v2786
    %2788 = vmatprep.mubr.bf16.mxu0 %v2496
    %2789 = vmatmul.mubr.bf16.gmra.mrb[0].mxu0 %v2495
    %v2790 = vpop.f32.mrb[0].mxu0
    %v2791 = vadd.f32 %v2539, %v2790
    %v2792 = vpop.f32.mrb[0].mxu0
    %v2793 = vadd.f32 %v2543, %v2792
    %v2794 = vpop.f32.mrb[0].mxu0
    %v2795 = vadd.f32 %v2539, %v2794
    %v2796 = vpop.f32.mrb[0].mxu0
    %v2797 = vadd.f32 %v2543, %v2796
    %2798 = vmatprep.mubr.bf16.mxu0 %v2498
    %2799 = vmatmul.mubr.bf16.gmra.mrb[0].mxu0 %v2497
    %v2800 = vpop.f32.mrb[0].mxu0
    %v2801 = vadd.f32 %v2539, %v2800
    %v2802 = vpop.f32.mrb[0].mxu0
    %v2803 = vadd.f32 %v2543, %v2802
    %v2804 = vpop.f32.mrb[0].mxu0
    %v2805 = vadd.f32 %v2539, %v2804
    %v2806 = vpop.f32.mrb[0].mxu0
    %v2807 = vadd.f32 %v2543, %v2806
    %2808 = vmatprep.mubr.bf16.mxu0 %v2500
    %2809 = vmatmul.mubr.bf16.gmra.mrb[0].mxu0 %v2499
    %v2810 = vpop.f32.mrb[0].mxu0
    %v2811 = vadd.f32 %v2539, %v2810
    %v2812 = vpop.f32.mrb[0].mxu0
    %v2813 = vadd.f32 %v2543, %v2812
    %v2814 = vpop.f32.mrb[0].mxu0
    %v2815 = vadd.f32 %v2539, %v2814
    %v2816 = vpop.f32.mrb[0].mxu0
    %v2817 = vadd.f32 %v2543, %v2816
    %2818 = vdwg.mxu0
    %v2819 = vmax.f32 %v2741, 0.0
    %v2820 = vmax.f32 %v2743, 0.0
    %v2821 = vmax.f32 %v2745, 0.0
    %v2822 = vmax.f32 %v2747, 0.0
    %v2823 = vmax.f32 %v2751, 0.0
    %v2824 = vmax.f32 %v2753, 0.0
    %v2825 = vmax.f32 %v2755, 0.0
    %v2826 = vmax.f32 %v2757, 0.0
    %v2827 = vmax.f32 %v2761, 0.0
    %v2828 = vmax.f32 %v2763, 0.0
    %v2829 = vmax.f32 %v2765, 0.0
    %v2830 = vmax.f32 %v2767, 0.0
    %v2831 = vmax.f32 %v2771, 0.0
    %v2832 = vmax.f32 %v2773, 0.0
    %v2833 = vmax.f32 %v2775, 0.0
    %v2834 = vmax.f32 %v2777, 0.0
    %v2835 = vmax.f32 %v2781, 0.0
    %v2836 = vmax.f32 %v2783, 0.0
    %v2837 = vmax.f32 %v2785, 0.0
    %v2838 = vmax.f32 %v2787, 0.0
    %v2839 = vmax.f32 %v2791, 0.0
    %v2840 = vmax.f32 %v2793, 0.0
    %v2841 = vmax.f32 %v2795, 0.0
    %v2842 = vmax.f32 %v2797, 0.0
    %v2843 = vmax.f32 %v2801, 0.0
    %v2844 = vmax.f32 %v2803, 0.0
    %v2845 = vmax.f32 %v2805, 0.0
    %v2846 = vmax.f32 %v2807, 0.0
    %v2847 = vmax.f32 %v2811, 0.0
    %v2848 = vmax.f32 %v2813, 0.0
    %v2849 = vmax.f32 %v2815, 0.0
    %v2850 = vmax.f32 %v2817, 0.0
    %v2851 = vpack.c.bf16 %v2821, %v2819
    %v2852 = vpack.c.bf16 %v2822, %v2820
    %v2853 = vpack.c.bf16 %v2825, %v2823
    %v2854 = vpack.c.bf16 %v2826, %v2824
    %v2855 = vpack.c.bf16 %v2829, %v2827
    %v2856 = vpack.c.bf16 %v2830, %v2828
    %v2857 = vpack.c.bf16 %v2833, %v2831
    %v2858 = vpack.c.bf16 %v2834, %v2832
    %v2859 = vpack.c.bf16 %v2837, %v2835
    %v2860 = vpack.c.bf16 %v2838, %v2836
    %v2861 = vpack.c.bf16 %v2841, %v2839
    %v2862 = vpack.c.bf16 %v2842, %v2840
    %v2863 = vpack.c.bf16 %v2845, %v2843
    %v2864 = vpack.c.bf16 %v2846, %v2844
    %v2865 = vpack.c.bf16 %v2849, %v2847
    %v2866 = vpack.c.bf16 %v2850, %v2848
    %v2867 = vld [vmem:[#allocation2 + $0xa20] sm:$0xff]
    %v2868 = vld [vmem:[#allocation2 + $0xa30] sm:$0xff]
    %v2869 = vld [vmem:[#allocation2 + $0xa40] sm:$0xff]
    %v2870 = vld [vmem:[#allocation2 + $0xa50] sm:$0xff]
    %v2871 = vld [vmem:[#allocation2 + $0xa60] sm:$0xff]
    %v2872 = vld [vmem:[#allocation2 + $0xa70] sm:$0xff]
    %v2873 = vld [vmem:[#allocation2 + $0xa80] sm:$0xff]
    %v2874 = vld [vmem:[#allocation2 + $0xa90] sm:$0xff]
    %v2875 = vld [vmem:[#allocation2 + $0xaa0] sm:$0xff]
    %v2876 = vld [vmem:[#allocation2 + $0xab0] sm:$0xff]
    %v2877 = vld [vmem:[#allocation2 + $0xac0] sm:$0xff]
    %v2878 = vld [vmem:[#allocation2 + $0xad0] sm:$0xff]
    %v2879 = vld [vmem:[#allocation2 + $0xae0] sm:$0xff]
    %v2880 = vld [vmem:[#allocation2 + $0xaf0] sm:$0xff]
    %v2881 = vld [vmem:[#allocation2 + $0xb00] sm:$0xff]
    %v2882 = vld [vmem:[#allocation2 + $0xb10] sm:$0xff]
    %v2883 = vld [vmem:[#allocation2 + $0xb20] sm:$0xff]
    %v2884 = vld [vmem:[#allocation2 + $0xb30] sm:$0xff]
    %v2885 = vld [vmem:[#allocation2 + $0xb40] sm:$0xff]
    %v2886 = vld [vmem:[#allocation2 + $0xb50] sm:$0xff]
    %v2887 = vld [vmem:[#allocation2 + $0xb60] sm:$0xff]
    %v2888 = vld [vmem:[#allocation2 + $0xb70] sm:$0xff]
    %v2889 = vld [vmem:[#allocation2 + $0xb80] sm:$0xff]
    %v2890 = vld [vmem:[#allocation2 + $0xb90] sm:$0xff]
    %v2891 = vld [vmem:[#allocation2 + $0xba0] sm:$0xff]
    %v2892 = vld [vmem:[#allocation2 + $0xbb0] sm:$0xff]
    %v2893 = vld [vmem:[#allocation2 + $0xbc0] sm:$0xff]
    %v2894 = vld [vmem:[#allocation2 + $0xbd0] sm:$0xff]
    %v2895 = vld [vmem:[#allocation2 + $0xbe0] sm:$0xff]
    %v2896 = vld [vmem:[#allocation2 + $0xbf0] sm:$0xff]
    %v2897 = vld [vmem:[#allocation2 + $0xc00] sm:$0xff]
    %v2898 = vld [vmem:[#allocation2 + $0xc10] sm:$0xff]
    %s2899 = scalar_lea.vmem [#allocation5], 4
    %v2900 = vld [vmem:[%s2899] ss:$8 sm:$0x3]
    %v2902 = vlaneseq
    %v2903 = vshrl.u32 %v2902, 7
    %v2904 = vsub.s32 0, %v2903
    %v2905 = vrot.slane %v2900, %v2904
    %v2906 = vlaneseq
    %v2907 = vshrl.u32 %v2906, 7
    %v2908 = vsub.s32 1, %v2907
    %v2909 = vrot.slane %v2900, %v2908
    %v2944 = vunpack.c.l.b16 %v2867
    %v2945 = vunpack.c.h.b16 %v2867
    %v2946 = vunpack.c.l.b16 %v2868
    %v2947 = vunpack.c.h.b16 %v2868
    %v2948 = vunpack.c.l.b16 %v2869
    %v2949 = vunpack.c.h.b16 %v2869
    %v2950 = vunpack.c.l.b16 %v2870
    %v2951 = vunpack.c.h.b16 %v2870
    %v2952 = vunpack.c.l.b16 %v2871
    %v2953 = vunpack.c.h.b16 %v2871
    %v2954 = vunpack.c.l.b16 %v2872
    %v2955 = vunpack.c.h.b16 %v2872
    %v2956 = vunpack.c.l.b16 %v2873
    %v2957 = vunpack.c.h.b16 %v2873
    %v2958 = vunpack.c.l.b16 %v2874
    %v2959 = vunpack.c.h.b16 %v2874
    %v2960 = vunpack.c.l.b16 %v2875
    %v2961 = vunpack.c.h.b16 %v2875
    %v2962 = vunpack.c.l.b16 %v2876
    %v2963 = vunpack.c.h.b16 %v2876
    %v2964 = vunpack.c.l.b16 %v2877
    %v2965 = vunpack.c.h.b16 %v2877
    %v2966 = vunpack.c.l.b16 %v2878
    %v2967 = vunpack.c.h.b16 %v2878
    %v2968 = vunpack.c.l.b16 %v2879
    %v2969 = vunpack.c.h.b16 %v2879
    %v2970 = vunpack.c.l.b16 %v2880
    %v2971 = vunpack.c.h.b16 %v2880
    %v2972 = vunpack.c.l.b16 %v2881
    %v2973 = vunpack.c.h.b16 %v2881
    %v2974 = vunpack.c.l.b16 %v2882
    %v2975 = vunpack.c.h.b16 %v2882
    %v2976 = vunpack.c.l.b16 %v2883
    %v2977 = vunpack.c.h.b16 %v2883
    %v2978 = vunpack.c.l.b16 %v2884
    %v2979 = vunpack.c.h.b16 %v2884
    %v2980 = vunpack.c.l.b16 %v2885
    %v2981 = vunpack.c.h.b16 %v2885
    %v2982 = vunpack.c.l.b16 %v2886
    %v2983 = vunpack.c.h.b16 %v2886
    %v2984 = vunpack.c.l.b16 %v2887
    %v2985 = vunpack.c.h.b16 %v2887
    %v2986 = vunpack.c.l.b16 %v2888
    %v2987 = vunpack.c.h.b16 %v2888
    %v2988 = vunpack.c.l.b16 %v2889
    %v2989 = vunpack.c.h.b16 %v2889
    %v2990 = vunpack.c.l.b16 %v2890
    %v2991 = vunpack.c.h.b16 %v2890
    %v2992 = vunpack.c.l.b16 %v2891
    %v2993 = vunpack.c.h.b16 %v2891
    %v2994 = vunpack.c.l.b16 %v2892
    %v2995 = vunpack.c.h.b16 %v2892
    %v2996 = vunpack.c.l.b16 %v2893
    %v2997 = vunpack.c.h.b16 %v2893
    %v2998 = vunpack.c.l.b16 %v2894
    %v2999 = vunpack.c.h.b16 %v2894
    %v3000 = vunpack.c.l.b16 %v2895
    %v3001 = vunpack.c.h.b16 %v2895
    %v3002 = vunpack.c.l.b16 %v2896
    %v3003 = vunpack.c.h.b16 %v2896
    %v3004 = vunpack.c.l.b16 %v2897
    %v3005 = vunpack.c.h.b16 %v2897
    %v3006 = vunpack.c.l.b16 %v2898
    %v3007 = vunpack.c.h.b16 %v2898
    %v3008 = vpack.c.b16 %v2946, %v2944
    %v3009 = vpack.c.b16 %v2947, %v2945
    %v3010 = vpack.c.b16 %v2950, %v2948
    %v3011 = vpack.c.b16 %v2951, %v2949
    %v3012 = vpack.c.b16 %v2954, %v2952
    %v3013 = vpack.c.b16 %v2955, %v2953
    %v3014 = vpack.c.b16 %v2958, %v2956
    %v3015 = vpack.c.b16 %v2959, %v2957
    %v3016 = vpack.c.b16 %v2962, %v2960
    %v3017 = vpack.c.b16 %v2963, %v2961
    %v3018 = vpack.c.b16 %v2966, %v2964
    %v3019 = vpack.c.b16 %v2967, %v2965
    %v3020 = vpack.c.b16 %v2970, %v2968
    %v3021 = vpack.c.b16 %v2971, %v2969
    %v3022 = vpack.c.b16 %v2974, %v2972
    %v3023 = vpack.c.b16 %v2975, %v2973
    %v3024 = vpack.c.b16 %v2978, %v2976
    %v3025 = vpack.c.b16 %v2979, %v2977
    %v3026 = vpack.c.b16 %v2982, %v2980
    %v3027 = vpack.c.b16 %v2983, %v2981
    %v3028 = vpack.c.b16 %v2986, %v2984
    %v3029 = vpack.c.b16 %v2987, %v2985
    %v3030 = vpack.c.b16 %v2990, %v2988
    %v3031 = vpack.c.b16 %v2991, %v2989
    %v3032 = vpack.c.b16 %v2994, %v2992
    %v3033 = vpack.c.b16 %v2995, %v2993
    %v3034 = vpack.c.b16 %v2998, %v2996
    %v3035 = vpack.c.b16 %v2999, %v2997
    %v3036 = vpack.c.b16 %v3002, %v3000
    %v3037 = vpack.c.b16 %v3003, %v3001
    %v3038 = vpack.c.b16 %v3006, %v3004
    %v3039 = vpack.c.b16 %v3007, %v3005
    %3072 = vmatprep.subr.bf16.mxu0 %v3009
    %3073 = vmatpush1.bf16.msra.mxu0 %v3008
    %3074 = vmatprep.subr.bf16.mxu0 %v3011
    %3075 = vmatpush1.bf16.msra.mxu0 %v3010
    %3076 = vmatprep.subr.bf16.mxu0 %v3013
    %3077 = vmatpush1.bf16.msra.mxu0 %v3012
    %3078 = vmatprep.subr.bf16.mxu0 %v3015
    %3079 = vmatpush1.bf16.msra.mxu0 %v3014
    %3080 = vmatprep.subr.bf16.mxu0 %v3017
    %3081 = vmatpush1.bf16.msra.mxu0 %v3016
    %3082 = vmatprep.subr.bf16.mxu0 %v3019
    %3083 = vmatpush1.bf16.msra.mxu0 %v3018
    %3084 = vmatprep.subr.bf16.mxu0 %v3021
    %3085 = vmatpush1.bf16.msra.mxu0 %v3020
    %3086 = vmatprep.subr.bf16.mxu0 %v3023
    %3087 = vmatpush1.bf16.msra.mxu0 %v3022
    %3088 = vmatprep.subr.bf16.mxu0 %v3025
    %3089 = vmatpush1.bf16.msra.mxu0 %v3024
    %3090 = vmatprep.subr.bf16.mxu0 %v3027
    %3091 = vmatpush1.bf16.msra.mxu0 %v3026
    %3092 = vmatprep.subr.bf16.mxu0 %v3029
    %3093 = vmatpush1.bf16.msra.mxu0 %v3028
    %3094 = vmatprep.subr.bf16.mxu0 %v3031
    %3095 = vmatpush1.bf16.msra.mxu0 %v3030
    %3096 = vmatprep.subr.bf16.mxu0 %v3033
    %3097 = vmatpush1.bf16.msra.mxu0 %v3032
    %3098 = vmatprep.subr.bf16.mxu0 %v3035
    %3099 = vmatpush1.bf16.msra.mxu0 %v3034
    %3100 = vmatprep.subr.bf16.mxu0 %v3037
    %3101 = vmatpush1.bf16.msra.mxu0 %v3036
    %3102 = vmatprep.subr.bf16.mxu0 %v3039
    %3103 = vmatpush1.bf16.msra.mxu0 %v3038
    %3104 = vmatprep.mubr.bf16.mxu0 %v2852
    %3105 = vmatmul.mubr.bf16.gmra.mrb[0].mxu0 %v2851
    %v3106 = vpop.f32.mrb[0].mxu0
    %v3107 = vadd.f32 %v2905, %v3106
    %v3108 = vpop.f32.mrb[0].mxu0
    %v3109 = vadd.f32 %v2909, %v3108
    %v3110 = vpop.f32.mrb[0].mxu0
    %v3111 = vadd.f32 %v2905, %v3110
    %v3112 = vpop.f32.mrb[0].mxu0
    %v3113 = vadd.f32 %v2909, %v3112
    %3114 = vmatprep.mubr.bf16.mxu0 %v2854
    %3115 = vmatmul.mubr.bf16.gmra.mrb[0].mxu0 %v2853
    %v3116 = vpop.f32.mrb[0].mxu0
    %v3117 = vadd.f32 %v2905, %v3116
    %v3118 = vpop.f32.mrb[0].mxu0
    %v3119 = vadd.f32 %v2909, %v3118
    %v3120 = vpop.f32.mrb[0].mxu0
    %v3121 = vadd.f32 %v2905, %v3120
    %v3122 = vpop.f32.mrb[0].mxu0
    %v3123 = vadd.f32 %v2909, %v3122
    %3124 = vmatprep.mubr.bf16.mxu0 %v2856
    %3125 = vmatmul.mubr.bf16.gmra.mrb[0].mxu0 %v2855
    %v3126 = vpop.f32.mrb[0].mxu0
    %v3127 = vadd.f32 %v2905, %v3126
    %v3128 = vpop.f32.mrb[0].mxu0
    %v3129 = vadd.f32 %v2909, %v3128
    %v3130 = vpop.f32.mrb[0].mxu0
    %v3131 = vadd.f32 %v2905, %v3130
    %v3132 = vpop.f32.mrb[0].mxu0
    %v3133 = vadd.f32 %v2909, %v3132
    %3134 = vmatprep.mubr.bf16.mxu0 %v2858
    %3135 = vmatmul.mubr.bf16.gmra.mrb[0].mxu0 %v2857
    %v3136 = vpop.f32.mrb[0].mxu0
    %v3137 = vadd.f32 %v2905, %v3136
    %v3138 = vpop.f32.mrb[0].mxu0
    %v3139 = vadd.f32 %v2909, %v3138
    %v3140 = vpop.f32.mrb[0].mxu0
    %v3141 = vadd.f32 %v2905, %v3140
    %v3142 = vpop.f32.mrb[0].mxu0
    %v3143 = vadd.f32 %v2909, %v3142
    %3144 = vmatprep.mubr.bf16.mxu0 %v2860
    %3145 = vmatmul.mubr.bf16.gmra.mrb[0].mxu0 %v2859
    %v3146 = vpop.f32.mrb[0].mxu0
    %v3147 = vadd.f32 %v2905, %v3146
    %v3148 = vpop.f32.mrb[0].mxu0
    %v3149 = vadd.f32 %v2909, %v3148
    %v3150 = vpop.f32.mrb[0].mxu0
    %v3151 = vadd.f32 %v2905, %v3150
    %v3152 = vpop.f32.mrb[0].mxu0
    %v3153 = vadd.f32 %v2909, %v3152
    %3154 = vmatprep.mubr.bf16.mxu0 %v2862
    %3155 = vmatmul.mubr.bf16.gmra.mrb[0].mxu0 %v2861
    %v3156 = vpop.f32.mrb[0].mxu0
    %v3157 = vadd.f32 %v2905, %v3156
    %v3158 = vpop.f32.mrb[0].mxu0
    %v3159 = vadd.f32 %v2909, %v3158
    %v3160 = vpop.f32.mrb[0].mxu0
    %v3161 = vadd.f32 %v2905, %v3160
    %v3162 = vpop.f32.mrb[0].mxu0
    %v3163 = vadd.f32 %v2909, %v3162
    %3164 = vmatprep.mubr.bf16.mxu0 %v2864
    %3165 = vmatmul.mubr.bf16.gmra.mrb[0].mxu0 %v2863
    %v3166 = vpop.f32.mrb[0].mxu0
    %v3167 = vadd.f32 %v2905, %v3166
    %v3168 = vpop.f32.mrb[0].mxu0
    %v3169 = vadd.f32 %v2909, %v3168
    %v3170 = vpop.f32.mrb[0].mxu0
    %v3171 = vadd.f32 %v2905, %v3170
    %v3172 = vpop.f32.mrb[0].mxu0
    %v3173 = vadd.f32 %v2909, %v3172
    %3174 = vmatprep.mubr.bf16.mxu0 %v2866
    %3175 = vmatmul.mubr.bf16.gmra.mrb[0].mxu0 %v2865
    %v3176 = vpop.f32.mrb[0].mxu0
    %v3177 = vadd.f32 %v2905, %v3176
    %v3178 = vpop.f32.mrb[0].mxu0
    %v3179 = vadd.f32 %v2909, %v3178
    %v3180 = vpop.f32.mrb[0].mxu0
    %v3181 = vadd.f32 %v2905, %v3180
    %v3182 = vpop.f32.mrb[0].mxu0
    %v3183 = vadd.f32 %v2909, %v3182
    %3184 = vdwg.mxu0
    %v3185 = vmax.f32 %v3107, 0.0
    %v3186 = vmax.f32 %v3109, 0.0
    %v3187 = vmax.f32 %v3111, 0.0
    %v3188 = vmax.f32 %v3113, 0.0
    %v3189 = vmax.f32 %v3117, 0.0
    %v3190 = vmax.f32 %v3119, 0.0
    %v3191 = vmax.f32 %v3121, 0.0
    %v3192 = vmax.f32 %v3123, 0.0
    %v3193 = vmax.f32 %v3127, 0.0
    %v3194 = vmax.f32 %v3129, 0.0
    %v3195 = vmax.f32 %v3131, 0.0
    %v3196 = vmax.f32 %v3133, 0.0
    %v3197 = vmax.f32 %v3137, 0.0
    %v3198 = vmax.f32 %v3139, 0.0
    %v3199 = vmax.f32 %v3141, 0.0
    %v3200 = vmax.f32 %v3143, 0.0
    %v3201 = vmax.f32 %v3147, 0.0
    %v3202 = vmax.f32 %v3149, 0.0
    %v3203 = vmax.f32 %v3151, 0.0
    %v3204 = vmax.f32 %v3153, 0.0
    %v3205 = vmax.f32 %v3157, 0.0
    %v3206 = vmax.f32 %v3159, 0.0
    %v3207 = vmax.f32 %v3161, 0.0
    %v3208 = vmax.f32 %v3163, 0.0
    %v3209 = vmax.f32 %v3167, 0.0
    %v3210 = vmax.f32 %v3169, 0.0
    %v3211 = vmax.f32 %v3171, 0.0
    %v3212 = vmax.f32 %v3173, 0.0
    %v3213 = vmax.f32 %v3177, 0.0
    %v3214 = vmax.f32 %v3179, 0.0
    %v3215 = vmax.f32 %v3181, 0.0
    %v3216 = vmax.f32 %v3183, 0.0
    %v3217 = vpack.c.bf16 %v3187, %v3185
    %v3218 = vpack.c.bf16 %v3188, %v3186
    %v3219 = vpack.c.bf16 %v3191, %v3189
    %v3220 = vpack.c.bf16 %v3192, %v3190
    %v3221 = vpack.c.bf16 %v3195, %v3193
    %v3222 = vpack.c.bf16 %v3196, %v3194
    %v3223 = vpack.c.bf16 %v3199, %v3197
    %v3224 = vpack.c.bf16 %v3200, %v3198
    %v3225 = vpack.c.bf16 %v3203, %v3201
    %v3226 = vpack.c.bf16 %v3204, %v3202
    %v3227 = vpack.c.bf16 %v3207, %v3205
    %v3228 = vpack.c.bf16 %v3208, %v3206
    %v3229 = vpack.c.bf16 %v3211, %v3209
    %v3230 = vpack.c.bf16 %v3212, %v3210
    %v3231 = vpack.c.bf16 %v3215, %v3213
    %v3232 = vpack.c.bf16 %v3216, %v3214
    %v3233 = vld [vmem:[#allocation2 + $0xc20] sm:$0xff]
    %v3234 = vld [vmem:[#allocation2 + $0xc28] sm:$0xf]
    %v3235 = vld [vmem:[#allocation2 + $0xc30] sm:$0xff]
    %v3236 = vld [vmem:[#allocation2 + $0xc38] sm:$0xf]
    %v3237 = vld [vmem:[#allocation2 + $0xc40] sm:$0xff]
    %v3238 = vld [vmem:[#allocation2 + $0xc48] sm:$0xf]
    %v3239 = vld [vmem:[#allocation2 + $0xc50] sm:$0xff]
    %v3240 = vld [vmem:[#allocation2 + $0xc58] sm:$0xf]
    %v3241 = vld [vmem:[#allocation2 + $0xc60] sm:$0xff]
    %v3242 = vld [vmem:[#allocation2 + $0xc68] sm:$0xf]
    %v3243 = vld [vmem:[#allocation2 + $0xc70] sm:$0xff]
    %v3244 = vld [vmem:[#allocation2 + $0xc78] sm:$0xf]
    %v3245 = vld [vmem:[#allocation2 + $0xc80] sm:$0xff]
    %v3246 = vld [vmem:[#allocation2 + $0xc88] sm:$0xf]
    %v3247 = vld [vmem:[#allocation2 + $0xc90] sm:$0xff]
    %v3248 = vld [vmem:[#allocation2 + $0xc98] sm:$0xf]
    %v3249 = vld [vmem:[#allocation2 + $0xca0] sm:$0xff]
    %v3250 = vld [vmem:[#allocation2 + $0xca8] sm:$0xf]
    %v3251 = vld [vmem:[#allocation2 + $0xcb0] sm:$0xff]
    %v3252 = vld [vmem:[#allocation2 + $0xcb8] sm:$0xf]
    %v3253 = vld [vmem:[#allocation2 + $0xcc0] sm:$0xff]
    %v3254 = vld [vmem:[#allocation2 + $0xcc8] sm:$0xf]
    %v3255 = vld [vmem:[#allocation2 + $0xcd0] sm:$0xff]
    %v3256 = vld [vmem:[#allocation2 + $0xcd8] sm:$0xf]
    %v3257 = vld [vmem:[#allocation2 + $0xce0] sm:$0xff]
    %v3258 = vld [vmem:[#allocation2 + $0xce8] sm:$0xf]
    %v3259 = vld [vmem:[#allocation2 + $0xcf0] sm:$0xff]
    %v3260 = vld [vmem:[#allocation2 + $0xcf8] sm:$0xf]
    %v3261 = vld [vmem:[#allocation2 + $0xd00] sm:$0xff]
    %v3262 = vld [vmem:[#allocation2 + $0xd08] sm:$0xf]
    %v3263 = vld [vmem:[#allocation2 + $0xd10] sm:$0xff]
    %v3264 = vld [vmem:[#allocation2 + $0xd18] sm:$0xf]
    %v3265 = vld [vmem:[#allocation2 + $0xd20] sm:$0xff]
    %v3266 = vld [vmem:[#allocation2 + $0xd28] sm:$0xf]
    %v3267 = vld [vmem:[#allocation2 + $0xd30] sm:$0xff]
    %v3268 = vld [vmem:[#allocation2 + $0xd38] sm:$0xf]
    %v3269 = vld [vmem:[#allocation2 + $0xd40] sm:$0xff]
    %v3270 = vld [vmem:[#allocation2 + $0xd48] sm:$0xf]
    %v3271 = vld [vmem:[#allocation2 + $0xd50] sm:$0xff]
    %v3272 = vld [vmem:[#allocation2 + $0xd58] sm:$0xf]
    %v3273 = vld [vmem:[#allocation2 + $0xd60] sm:$0xff]
    %v3274 = vld [vmem:[#allocation2 + $0xd68] sm:$0xf]
    %v3275 = vld [vmem:[#allocation2 + $0xd70] sm:$0xff]
    %v3276 = vld [vmem:[#allocation2 + $0xd78] sm:$0xf]
    %v3277 = vld [vmem:[#allocation2 + $0xd80] sm:$0xff]
    %v3278 = vld [vmem:[#allocation2 + $0xd88] sm:$0xf]
    %v3279 = vld [vmem:[#allocation2 + $0xd90] sm:$0xff]
    %v3280 = vld [vmem:[#allocation2 + $0xd98] sm:$0xf]
    %v3281 = vld [vmem:[#allocation2 + $0xda0] sm:$0xff]
    %v3282 = vld [vmem:[#allocation2 + $0xda8] sm:$0xf]
    %v3283 = vld [vmem:[#allocation2 + $0xdb0] sm:$0xff]
    %v3284 = vld [vmem:[#allocation2 + $0xdb8] sm:$0xf]
    %v3285 = vld [vmem:[#allocation2 + $0xdc0] sm:$0xff]
    %v3286 = vld [vmem:[#allocation2 + $0xdc8] sm:$0xf]
    %v3287 = vld [vmem:[#allocation2 + $0xdd0] sm:$0xff]
    %v3288 = vld [vmem:[#allocation2 + $0xdd8] sm:$0xf]
    %v3289 = vld [vmem:[#allocation2 + $0xde0] sm:$0xff]
    %v3290 = vld [vmem:[#allocation2 + $0xde8] sm:$0xf]
    %v3291 = vld [vmem:[#allocation2 + $0xdf0] sm:$0xff]
    %v3292 = vld [vmem:[#allocation2 + $0xdf8] sm:$0xf]
    %v3293 = vld [vmem:[#allocation2 + $0xe00] sm:$0xff]
    %v3294 = vld [vmem:[#allocation2 + $0xe08] sm:$0xf]
    %v3295 = vld [vmem:[#allocation2 + $0xe10] sm:$0xff]
    %v3296 = vld [vmem:[#allocation2 + $0xe18] sm:$0xf]
    %s3297 = scalar_lea.vmem [#allocation5], 5
    %v3298 = vld [vmem:[%s3297] ss:$8 sm:$0x7]
    %v3300 = vlaneseq
    %v3301 = vshrl.u32 %v3300, 7
    %v3302 = vsub.s32 0, %v3301
    %v3303 = vrot.slane %v3298, %v3302
    %v3304 = vlaneseq
    %v3305 = vshrl.u32 %v3304, 7
    %v3306 = vsub.s32 1, %v3305
    %v3307 = vrot.slane %v3298, %v3306
    %v3308 = vlaneseq
    %v3309 = vshrl.u32 %v3308, 7
    %v3310 = vsub.s32 2, %v3309
    %v3311 = vrot.slane %v3298, %v3310
    %v3379 = vunpack.c.l.b16 %v3233
    %v3380 = vunpack.c.h.b16 %v3233
    %v3381 = vunpack.c.l.b16 %v3234
    %v3382 = vunpack.c.l.b16 %v3235
    %v3383 = vunpack.c.h.b16 %v3235
    %v3384 = vunpack.c.l.b16 %v3236
    %v3385 = vunpack.c.l.b16 %v3237
    %v3386 = vunpack.c.h.b16 %v3237
    %v3387 = vunpack.c.l.b16 %v3238
    %v3388 = vunpack.c.l.b16 %v3239
    %v3389 = vunpack.c.h.b16 %v3239
    %v3390 = vunpack.c.l.b16 %v3240
    %v3391 = vunpack.c.l.b16 %v3241
    %v3392 = vunpack.c.h.b16 %v3241
    %v3393 = vunpack.c.l.b16 %v3242
    %v3394 = vunpack.c.l.b16 %v3243
    %v3395 = vunpack.c.h.b16 %v3243
    %v3396 = vunpack.c.l.b16 %v3244
    %v3397 = vunpack.c.l.b16 %v3245
    %v3398 = vunpack.c.h.b16 %v3245
    %v3399 = vunpack.c.l.b16 %v3246
    %v3400 = vunpack.c.l.b16 %v3247
    %v3401 = vunpack.c.h.b16 %v3247
    %v3402 = vunpack.c.l.b16 %v3248
    %v3403 = vunpack.c.l.b16 %v3249
    %v3404 = vunpack.c.h.b16 %v3249
    %v3405 = vunpack.c.l.b16 %v3250
    %v3406 = vunpack.c.l.b16 %v3251
    %v3407 = vunpack.c.h.b16 %v3251
    %v3408 = vunpack.c.l.b16 %v3252
    %v3409 = vunpack.c.l.b16 %v3253
    %v3410 = vunpack.c.h.b16 %v3253
    %v3411 = vunpack.c.l.b16 %v3254
    %v3412 = vunpack.c.l.b16 %v3255
    %v3413 = vunpack.c.h.b16 %v3255
    %v3414 = vunpack.c.l.b16 %v3256
    %v3415 = vunpack.c.l.b16 %v3257
    %v3416 = vunpack.c.h.b16 %v3257
    %v3417 = vunpack.c.l.b16 %v3258
    %v3418 = vunpack.c.l.b16 %v3259
    %v3419 = vunpack.c.h.b16 %v3259
    %v3420 = vunpack.c.l.b16 %v3260
    %v3421 = vunpack.c.l.b16 %v3261
    %v3422 = vunpack.c.h.b16 %v3261
    %v3423 = vunpack.c.l.b16 %v3262
    %v3424 = vunpack.c.l.b16 %v3263
    %v3425 = vunpack.c.h.b16 %v3263
    %v3426 = vunpack.c.l.b16 %v3264
    %v3427 = vunpack.c.l.b16 %v3265
    %v3428 = vunpack.c.h.b16 %v3265
    %v3429 = vunpack.c.l.b16 %v3266
    %v3430 = vunpack.c.l.b16 %v3267
    %v3431 = vunpack.c.h.b16 %v3267
    %v3432 = vunpack.c.l.b16 %v3268
    %v3433 = vunpack.c.l.b16 %v3269
    %v3434 = vunpack.c.h.b16 %v3269
    %v3435 = vunpack.c.l.b16 %v3270
    %v3436 = vunpack.c.l.b16 %v3271
    %v3437 = vunpack.c.h.b16 %v3271
    %v3438 = vunpack.c.l.b16 %v3272
    %v3439 = vunpack.c.l.b16 %v3273
    %v3440 = vunpack.c.h.b16 %v3273
    %v3441 = vunpack.c.l.b16 %v3274
    %v3442 = vunpack.c.l.b16 %v3275
    %v3443 = vunpack.c.h.b16 %v3275
    %v3444 = vunpack.c.l.b16 %v3276
    %v3445 = vunpack.c.l.b16 %v3277
    %v3446 = vunpack.c.h.b16 %v3277
    %v3447 = vunpack.c.l.b16 %v3278
    %v3448 = vunpack.c.l.b16 %v3279
    %v3449 = vunpack.c.h.b16 %v3279
    %v3450 = vunpack.c.l.b16 %v3280
    %v3451 = vunpack.c.l.b16 %v3281
    %v3452 = vunpack.c.h.b16 %v3281
    %v3453 = vunpack.c.l.b16 %v3282
    %v3454 = vunpack.c.l.b16 %v3283
    %v3455 = vunpack.c.h.b16 %v3283
    %v3456 = vunpack.c.l.b16 %v3284
    %v3457 = vunpack.c.l.b16 %v3285
    %v3458 = vunpack.c.h.b16 %v3285
    %v3459 = vunpack.c.l.b16 %v3286
    %v3460 = vunpack.c.l.b16 %v3287
    %v3461 = vunpack.c.h.b16 %v3287
    %v3462 = vunpack.c.l.b16 %v3288
    %v3463 = vunpack.c.l.b16 %v3289
    %v3464 = vunpack.c.h.b16 %v3289
    %v3465 = vunpack.c.l.b16 %v3290
    %v3466 = vunpack.c.l.b16 %v3291
    %v3467 = vunpack.c.h.b16 %v3291
    %v3468 = vunpack.c.l.b16 %v3292
    %v3469 = vunpack.c.l.b16 %v3293
    %v3470 = vunpack.c.h.b16 %v3293
    %v3471 = vunpack.c.l.b16 %v3294
    %v3472 = vunpack.c.l.b16 %v3295
    %v3473 = vunpack.c.h.b16 %v3295
    %v3474 = vunpack.c.l.b16 %v3296
    %v3475 = vpack.c.b16 %v3382, %v3379
    %v3476 = vpack.c.b16 %v3383, %v3380
    %v3477 = vpack.c.b16 %v3384, %v3381
    %v3478 = vpack.c.b16 %v3388, %v3385
    %v3479 = vpack.c.b16 %v3389, %v3386
    %v3480 = vpack.c.b16 %v3390, %v3387
    %v3481 = vpack.c.b16 %v3394, %v3391
    %v3482 = vpack.c.b16 %v3395, %v3392
    %v3483 = vpack.c.b16 %v3396, %v3393
    %v3484 = vpack.c.b16 %v3400, %v3397
    %v3485 = vpack.c.b16 %v3401, %v3398
    %v3486 = vpack.c.b16 %v3402, %v3399
    %v3487 = vpack.c.b16 %v3406, %v3403
    %v3488 = vpack.c.b16 %v3407, %v3404
    %v3489 = vpack.c.b16 %v3408, %v3405
    %v3490 = vpack.c.b16 %v3412, %v3409
    %v3491 = vpack.c.b16 %v3413, %v3410
    %v3492 = vpack.c.b16 %v3414, %v3411
    %v3493 = vpack.c.b16 %v3418, %v3415
    %v3494 = vpack.c.b16 %v3419, %v3416
    %v3495 = vpack.c.b16 %v3420, %v3417
    %v3496 = vpack.c.b16 %v3424, %v3421
    %v3497 = vpack.c.b16 %v3425, %v3422
    %v3498 = vpack.c.b16 %v3426, %v3423
    %v3499 = vpack.c.b16 %v3430, %v3427
    %v3500 = vpack.c.b16 %v3431, %v3428
    %v3501 = vpack.c.b16 %v3432, %v3429
    %v3502 = vpack.c.b16 %v3436, %v3433
    %v3503 = vpack.c.b16 %v3437, %v3434
    %v3504 = vpack.c.b16 %v3438, %v3435
    %v3505 = vpack.c.b16 %v3442, %v3439
    %v3506 = vpack.c.b16 %v3443, %v3440
    %v3507 = vpack.c.b16 %v3444, %v3441
    %v3508 = vpack.c.b16 %v3448, %v3445
    %v3509 = vpack.c.b16 %v3449, %v3446
    %v3510 = vpack.c.b16 %v3450, %v3447
    %v3511 = vpack.c.b16 %v3454, %v3451
    %v3512 = vpack.c.b16 %v3455, %v3452
    %v3513 = vpack.c.b16 %v3456, %v3453
    %v3514 = vpack.c.b16 %v3460, %v3457
    %v3515 = vpack.c.b16 %v3461, %v3458
    %v3516 = vpack.c.b16 %v3462, %v3459
    %v3517 = vpack.c.b16 %v3466, %v3463
    %v3518 = vpack.c.b16 %v3467, %v3464
    %v3519 = vpack.c.b16 %v3468, %v3465
    %v3520 = vpack.c.b16 %v3472, %v3469
    %v3521 = vpack.c.b16 %v3473, %v3470
    %v3522 = vpack.c.b16 %v3474, %v3471
    %3571 = vmatprep.subr.bf16.mxu0 %v3476
    %3572 = vmatpush1.bf16.msra.mxu0 %v3475
    %3573 = vmatprep.subr.bf16.mxu0 %v3479
    %3574 = vmatpush1.bf16.msra.mxu0 %v3478
    %3575 = vmatprep.subr.bf16.mxu0 %v3482
    %3576 = vmatpush1.bf16.msra.mxu0 %v3481
    %3577 = vmatprep.subr.bf16.mxu0 %v3485
    %3578 = vmatpush1.bf16.msra.mxu0 %v3484
    %3579 = vmatprep.subr.bf16.mxu0 %v3488
    %3580 = vmatpush1.bf16.msra.mxu0 %v3487
    %3581 = vmatprep.subr.bf16.mxu0 %v3491
    %3582 = vmatpush1.bf16.msra.mxu0 %v3490
    %3583 = vmatprep.subr.bf16.mxu0 %v3494
    %3584 = vmatpush1.bf16.msra.mxu0 %v3493
    %3585 = vmatprep.subr.bf16.mxu0 %v3497
    %3586 = vmatpush1.bf16.msra.mxu0 %v3496
    %3587 = vmatprep.subr.bf16.mxu0 %v3500
    %3588 = vmatpush1.bf16.msra.mxu0 %v3499
    %3589 = vmatprep.subr.bf16.mxu0 %v3503
    %3590 = vmatpush1.bf16.msra.mxu0 %v3502
    %3591 = vmatprep.subr.bf16.mxu0 %v3506
    %3592 = vmatpush1.bf16.msra.mxu0 %v3505
    %3593 = vmatprep.subr.bf16.mxu0 %v3509
    %3594 = vmatpush1.bf16.msra.mxu0 %v3508
    %3595 = vmatprep.subr.bf16.mxu0 %v3512
    %3596 = vmatpush1.bf16.msra.mxu0 %v3511
    %3597 = vmatprep.subr.bf16.mxu0 %v3515
    %3598 = vmatpush1.bf16.msra.mxu0 %v3514
    %3599 = vmatprep.subr.bf16.mxu0 %v3518
    %3600 = vmatpush1.bf16.msra.mxu0 %v3517
    %3601 = vmatprep.subr.bf16.mxu0 %v3521
    %3602 = vmatpush1.bf16.msra.mxu0 %v3520
    %3603 = vmatprep.mubr.bf16.mxu0 %v3218
    %3604 = vmatmul.mubr.bf16.gmra.mrb[0].mxu0 %v3217
    %v3605 = vpop.f32.mrb[0].mxu0
    %v3606 = vadd.f32 %v3303, %v3605
    %v3607 = vpop.f32.mrb[0].mxu0
    %v3608 = vadd.f32 %v3307, %v3607
    %v3609 = vpop.f32.mrb[0].mxu0
    %v3610 = vadd.f32 %v3303, %v3609
    %v3611 = vpop.f32.mrb[0].mxu0
    %v3612 = vadd.f32 %v3307, %v3611
    %3613 = vmatprep.mubr.bf16.mxu0 %v3220
    %3614 = vmatmul.mubr.bf16.gmra.mrb[0].mxu0 %v3219
    %v3615 = vpop.f32.mrb[0].mxu0
    %v3616 = vadd.f32 %v3303, %v3615
    %v3617 = vpop.f32.mrb[0].mxu0
    %v3618 = vadd.f32 %v3307, %v3617
    %v3619 = vpop.f32.mrb[0].mxu0
    %v3620 = vadd.f32 %v3303, %v3619
    %v3621 = vpop.f32.mrb[0].mxu0
    %v3622 = vadd.f32 %v3307, %v3621
    %3623 = vmatprep.mubr.bf16.mxu0 %v3222
    %3624 = vmatmul.mubr.bf16.gmra.mrb[0].mxu0 %v3221
    %v3625 = vpop.f32.mrb[0].mxu0
    %v3626 = vadd.f32 %v3303, %v3625
    %v3627 = vpop.f32.mrb[0].mxu0
    %v3628 = vadd.f32 %v3307, %v3627
    %v3629 = vpop.f32.mrb[0].mxu0
    %v3630 = vadd.f32 %v3303, %v3629
    %v3631 = vpop.f32.mrb[0].mxu0
    %v3632 = vadd.f32 %v3307, %v3631
    %3633 = vmatprep.mubr.bf16.mxu0 %v3224
    %3634 = vmatmul.mubr.bf16.gmra.mrb[0].mxu0 %v3223
    %v3635 = vpop.f32.mrb[0].mxu0
    %v3636 = vadd.f32 %v3303, %v3635
    %v3637 = vpop.f32.mrb[0].mxu0
    %v3638 = vadd.f32 %v3307, %v3637
    %v3639 = vpop.f32.mrb[0].mxu0
    %v3640 = vadd.f32 %v3303, %v3639
    %v3641 = vpop.f32.mrb[0].mxu0
    %v3642 = vadd.f32 %v3307, %v3641
    %3643 = vmatprep.mubr.bf16.mxu0 %v3226
    %3644 = vmatmul.mubr.bf16.gmra.mrb[0].mxu0 %v3225
    %v3645 = vpop.f32.mrb[0].mxu0
    %v3646 = vadd.f32 %v3303, %v3645
    %v3647 = vpop.f32.mrb[0].mxu0
    %v3648 = vadd.f32 %v3307, %v3647
    %v3649 = vpop.f32.mrb[0].mxu0
    %v3650 = vadd.f32 %v3303, %v3649
    %v3651 = vpop.f32.mrb[0].mxu0
    %v3652 = vadd.f32 %v3307, %v3651
    %3653 = vmatprep.mubr.bf16.mxu0 %v3228
    %3654 = vmatmul.mubr.bf16.gmra.mrb[0].mxu0 %v3227
    %v3655 = vpop.f32.mrb[0].mxu0
    %v3656 = vadd.f32 %v3303, %v3655
    %v3657 = vpop.f32.mrb[0].mxu0
    %v3658 = vadd.f32 %v3307, %v3657
    %v3659 = vpop.f32.mrb[0].mxu0
    %v3660 = vadd.f32 %v3303, %v3659
    %v3661 = vpop.f32.mrb[0].mxu0
    %v3662 = vadd.f32 %v3307, %v3661
    %3663 = vmatprep.mubr.bf16.mxu0 %v3230
    %3664 = vmatmul.mubr.bf16.gmra.mrb[0].mxu0 %v3229
    %v3665 = vpop.f32.mrb[0].mxu0
    %v3666 = vadd.f32 %v3303, %v3665
    %v3667 = vpop.f32.mrb[0].mxu0
    %v3668 = vadd.f32 %v3307, %v3667
    %v3669 = vpop.f32.mrb[0].mxu0
    %v3670 = vadd.f32 %v3303, %v3669
    %v3671 = vpop.f32.mrb[0].mxu0
    %v3672 = vadd.f32 %v3307, %v3671
    %3673 = vmatprep.mubr.bf16.mxu0 %v3232
    %3674 = vmatmul.mubr.bf16.gmra.mrb[0].mxu0 %v3231
    %v3675 = vpop.f32.mrb[0].mxu0
    %v3676 = vadd.f32 %v3303, %v3675
    %v3677 = vpop.f32.mrb[0].mxu0
    %v3678 = vadd.f32 %v3307, %v3677
    %v3679 = vpop.f32.mrb[0].mxu0
    %v3680 = vadd.f32 %v3303, %v3679
    %v3681 = vpop.f32.mrb[0].mxu0
    %v3682 = vadd.f32 %v3307, %v3681
    %3683 = vdwg.mxu0
    %3684 = vmatprep.subr.bf16.mxu0 0
    %3685 = vmatpush1.bf16.msra.mxu0 %v3477
    %3686 = vmatprep.subr.bf16.mxu0 0
    %3687 = vmatpush1.bf16.msra.mxu0 %v3480
    %3688 = vmatprep.subr.bf16.mxu0 0
    %3689 = vmatpush1.bf16.msra.mxu0 %v3483
    %3690 = vmatprep.subr.bf16.mxu0 0
    %3691 = vmatpush1.bf16.msra.mxu0 %v3486
    %3692 = vmatprep.subr.bf16.mxu0 0
    %3693 = vmatpush1.bf16.msra.mxu0 %v3489
    %3694 = vmatprep.subr.bf16.mxu0 0
    %3695 = vmatpush1.bf16.msra.mxu0 %v3492
    %3696 = vmatprep.subr.bf16.mxu0 0
    %3697 = vmatpush1.bf16.msra.mxu0 %v3495
    %3698 = vmatprep.subr.bf16.mxu0 0
    %3699 = vmatpush1.bf16.msra.mxu0 %v3498
    %3700 = vmatprep.subr.bf16.mxu0 0
    %3701 = vmatpush1.bf16.msra.mxu0 %v3501
    %3702 = vmatprep.subr.bf16.mxu0 0
    %3703 = vmatpush1.bf16.msra.mxu0 %v3504
    %3704 = vmatprep.subr.bf16.mxu0 0
    %3705 = vmatpush1.bf16.msra.mxu0 %v3507
    %3706 = vmatprep.subr.bf16.mxu0 0
    %3707 = vmatpush1.bf16.msra.mxu0 %v3510
    %3708 = vmatprep.subr.bf16.mxu0 0
    %3709 = vmatpush1.bf16.msra.mxu0 %v3513
    %3710 = vmatprep.subr.bf16.mxu0 0
    %3711 = vmatpush1.bf16.msra.mxu0 %v3516
    %3712 = vmatprep.subr.bf16.mxu0 0
    %3713 = vmatpush1.bf16.msra.mxu0 %v3519
    %3714 = vmatprep.subr.bf16.mxu0 0
    %3715 = vmatpush1.bf16.msra.mxu0 %v3522
    %3716 = vmatprep.mubr.bf16.mxu0 %v3218
    %3717 = vmatmul.mubr.bf16.gmra.mrb[0].mxu0 %v3217
    %v3718 = vpop.f32.mrb[0].mxu0
    %v3719 = vadd.f32 %v3311, %v3718
    %v3720 = vpop.f32.mrb[0].mxu0
    %v3721 = vpop.f32.mrb[0].mxu0
    %v3722 = vadd.f32 %v3311, %v3721
    %v3723 = vpop.f32.mrb[0].mxu0
    %3724 = vmatprep.mubr.bf16.mxu0 %v3220
    %3725 = vmatmul.mubr.bf16.gmra.mrb[0].mxu0 %v3219
    %v3726 = vpop.f32.mrb[0].mxu0
    %v3727 = vadd.f32 %v3311, %v3726
    %v3728 = vpop.f32.mrb[0].mxu0
    %v3729 = vpop.f32.mrb[0].mxu0
    %v3730 = vadd.f32 %v3311, %v3729
    %v3731 = vpop.f32.mrb[0].mxu0
    %3732 = vmatprep.mubr.bf16.mxu0 %v3222
    %3733 = vmatmul.mubr.bf16.gmra.mrb[0].mxu0 %v3221
    %v3734 = vpop.f32.mrb[0].mxu0
    %v3735 = vadd.f32 %v3311, %v3734
    %v3736 = vpop.f32.mrb[0].mxu0
    %v3737 = vpop.f32.mrb[0].mxu0
    %v3738 = vadd.f32 %v3311, %v3737
    %v3739 = vpop.f32.mrb[0].mxu0
    %3740 = vmatprep.mubr.bf16.mxu0 %v3224
    %3741 = vmatmul.mubr.bf16.gmra.mrb[0].mxu0 %v3223
    %v3742 = vpop.f32.mrb[0].mxu0
    %v3743 = vadd.f32 %v3311, %v3742
    %v3744 = vpop.f32.mrb[0].mxu0
    %v3745 = vpop.f32.mrb[0].mxu0
    %v3746 = vadd.f32 %v3311, %v3745
    %v3747 = vpop.f32.mrb[0].mxu0
    %3748 = vmatprep.mubr.bf16.mxu0 %v3226
    %3749 = vmatmul.mubr.bf16.gmra.mrb[0].mxu0 %v3225
    %v3750 = vpop.f32.mrb[0].mxu0
    %v3751 = vadd.f32 %v3311, %v3750
    %v3752 = vpop.f32.mrb[0].mxu0
    %v3753 = vpop.f32.mrb[0].mxu0
    %v3754 = vadd.f32 %v3311, %v3753
    %v3755 = vpop.f32.mrb[0].mxu0
    %3756 = vmatprep.mubr.bf16.mxu0 %v3228
    %3757 = vmatmul.mubr.bf16.gmra.mrb[0].mxu0 %v3227
    %v3758 = vpop.f32.mrb[0].mxu0
    %v3759 = vadd.f32 %v3311, %v3758
    %v3760 = vpop.f32.mrb[0].mxu0
    %v3761 = vpop.f32.mrb[0].mxu0
    %v3762 = vadd.f32 %v3311, %v3761
    %v3763 = vpop.f32.mrb[0].mxu0
    %3764 = vmatprep.mubr.bf16.mxu0 %v3230
    %3765 = vmatmul.mubr.bf16.gmra.mrb[0].mxu0 %v3229
    %v3766 = vpop.f32.mrb[0].mxu0
    %v3767 = vadd.f32 %v3311, %v3766
    %v3768 = vpop.f32.mrb[0].mxu0
    %v3769 = vpop.f32.mrb[0].mxu0
    %v3770 = vadd.f32 %v3311, %v3769
    %v3771 = vpop.f32.mrb[0].mxu0
    %3772 = vmatprep.mubr.bf16.mxu0 %v3232
    %3773 = vmatmul.mubr.bf16.gmra.mrb[0].mxu0 %v3231
    %v3774 = vpop.f32.mrb[0].mxu0
    %v3775 = vadd.f32 %v3311, %v3774
    %v3776 = vpop.f32.mrb[0].mxu0
    %v3777 = vpop.f32.mrb[0].mxu0
    %v3778 = vadd.f32 %v3311, %v3777
    %v3779 = vpop.f32.mrb[0].mxu0
    %3780 = vdwg.mxu0
    %v3781 = vmax.f32 %v3606, 0.0
    %v3782 = vmax.f32 %v3608, 0.0
    %v3783 = vmax.f32 %v3719, 0.0
    %v3784 = vmax.f32 %v3610, 0.0
    %v3785 = vmax.f32 %v3612, 0.0
    %v3786 = vmax.f32 %v3722, 0.0
    %v3787 = vmax.f32 %v3616, 0.0
    %v3788 = vmax.f32 %v3618, 0.0
    %v3789 = vmax.f32 %v3727, 0.0
    %v3790 = vmax.f32 %v3620, 0.0
    %v3791 = vmax.f32 %v3622, 0.0
    %v3792 = vmax.f32 %v3730, 0.0
    %v3793 = vmax.f32 %v3626, 0.0
    %v3794 = vmax.f32 %v3628, 0.0
    %v3795 = vmax.f32 %v3735, 0.0
    %v3796 = vmax.f32 %v3630, 0.0
    %v3797 = vmax.f32 %v3632, 0.0
    %v3798 = vmax.f32 %v3738, 0.0
    %v3799 = vmax.f32 %v3636, 0.0
    %v3800 = vmax.f32 %v3638, 0.0
    %v3801 = vmax.f32 %v3743, 0.0
    %v3802 = vmax.f32 %v3640, 0.0
    %v3803 = vmax.f32 %v3642, 0.0
    %v3804 = vmax.f32 %v3746, 0.0
    %v3805 = vmax.f32 %v3646, 0.0
    %v3806 = vmax.f32 %v3648, 0.0
    %v3807 = vmax.f32 %v3751, 0.0
    %v3808 = vmax.f32 %v3650, 0.0
    %v3809 = vmax.f32 %v3652, 0.0
    %v3810 = vmax.f32 %v3754, 0.0
    %v3811 = vmax.f32 %v3656, 0.0
    %v3812 = vmax.f32 %v3658, 0.0
    %v3813 = vmax.f32 %v3759, 0.0
    %v3814 = vmax.f32 %v3660, 0.0
    %v3815 = vmax.f32 %v3662, 0.0
    %v3816 = vmax.f32 %v3762, 0.0
    %v3817 = vmax.f32 %v3666, 0.0
    %v3818 = vmax.f32 %v3668, 0.0
    %v3819 = vmax.f32 %v3767, 0.0
    %v3820 = vmax.f32 %v3670, 0.0
    %v3821 = vmax.f32 %v3672, 0.0
    %v3822 = vmax.f32 %v3770, 0.0
    %v3823 = vmax.f32 %v3676, 0.0
    %v3824 = vmax.f32 %v3678, 0.0
    %v3825 = vmax.f32 %v3775, 0.0
    %v3826 = vmax.f32 %v3680, 0.0
    %v3827 = vmax.f32 %v3682, 0.0
    %v3828 = vmax.f32 %v3778, 0.0
    %v3829 = vpack.c.bf16 %v3784, %v3781
    %v3830 = vpack.c.bf16 %v3785, %v3782
    %v3831 = vpack.c.bf16 %v3786, %v3783
    %v3832 = vpack.c.bf16 %v3790, %v3787
    %v3833 = vpack.c.bf16 %v3791, %v3788
    %v3834 = vpack.c.bf16 %v3792, %v3789
    %v3835 = vpack.c.bf16 %v3796, %v3793
    %v3836 = vpack.c.bf16 %v3797, %v3794
    %v3837 = vpack.c.bf16 %v3798, %v3795
    %v3838 = vpack.c.bf16 %v3802, %v3799
    %v3839 = vpack.c.bf16 %v3803, %v3800
    %v3840 = vpack.c.bf16 %v3804, %v3801
    %v3841 = vpack.c.bf16 %v3808, %v3805
    %v3842 = vpack.c.bf16 %v3809, %v3806
    %v3843 = vpack.c.bf16 %v3810, %v3807
    %v3844 = vpack.c.bf16 %v3814, %v3811
    %v3845 = vpack.c.bf16 %v3815, %v3812
    %v3846 = vpack.c.bf16 %v3816, %v3813
    %v3847 = vpack.c.bf16 %v3820, %v3817
    %v3848 = vpack.c.bf16 %v3821, %v3818
    %v3849 = vpack.c.bf16 %v3822, %v3819
    %v3850 = vpack.c.bf16 %v3826, %v3823
    %v3851 = vpack.c.bf16 %v3827, %v3824
    %v3852 = vpack.c.bf16 %v3828, %v3825
    %v3853 = vld [vmem:[#allocation2 + $0xe20] sm:$0xff]
    %v3854 = vld [vmem:[#allocation2 + $0xe28] sm:$0xf]
    %v3855 = vld [vmem:[#allocation2 + $0xe30] sm:$0xff]
    %v3856 = vld [vmem:[#allocation2 + $0xe38] sm:$0xf]
    %v3857 = vld [vmem:[#allocation2 + $0xe40] sm:$0xff]
    %v3858 = vld [vmem:[#allocation2 + $0xe48] sm:$0xf]
    %v3859 = vld [vmem:[#allocation2 + $0xe50] sm:$0xff]
    %v3860 = vld [vmem:[#allocation2 + $0xe58] sm:$0xf]
    %v3861 = vld [vmem:[#allocation2 + $0xe60] sm:$0xff]
    %v3862 = vld [vmem:[#allocation2 + $0xe68] sm:$0xf]
    %v3863 = vld [vmem:[#allocation2 + $0xe70] sm:$0xff]
    %v3864 = vld [vmem:[#allocation2 + $0xe78] sm:$0xf]
    %v3865 = vld [vmem:[#allocation2 + $0xe80] sm:$0xff]
    %v3866 = vld [vmem:[#allocation2 + $0xe88] sm:$0xf]
    %v3867 = vld [vmem:[#allocation2 + $0xe90] sm:$0xff]
    %v3868 = vld [vmem:[#allocation2 + $0xe98] sm:$0xf]
    %v3869 = vld [vmem:[#allocation2 + $0xea0] sm:$0xff]
    %v3870 = vld [vmem:[#allocation2 + $0xea8] sm:$0xf]
    %v3871 = vld [vmem:[#allocation2 + $0xeb0] sm:$0xff]
    %v3872 = vld [vmem:[#allocation2 + $0xeb8] sm:$0xf]
    %v3873 = vld [vmem:[#allocation2 + $0xec0] sm:$0xff]
    %v3874 = vld [vmem:[#allocation2 + $0xec8] sm:$0xf]
    %v3875 = vld [vmem:[#allocation2 + $0xed0] sm:$0xff]
    %v3876 = vld [vmem:[#allocation2 + $0xed8] sm:$0xf]
    %v3877 = vld [vmem:[#allocation2 + $0xee0] sm:$0xff]
    %v3878 = vld [vmem:[#allocation2 + $0xee8] sm:$0xf]
    %v3879 = vld [vmem:[#allocation2 + $0xef0] sm:$0xff]
    %v3880 = vld [vmem:[#allocation2 + $0xef8] sm:$0xf]
    %v3881 = vld [vmem:[#allocation2 + $0xf00] sm:$0xff]
    %v3882 = vld [vmem:[#allocation2 + $0xf08] sm:$0xf]
    %v3883 = vld [vmem:[#allocation2 + $0xf10] sm:$0xff]
    %v3884 = vld [vmem:[#allocation2 + $0xf18] sm:$0xf]
    %v3885 = vld [vmem:[#allocation2 + $0xf20] sm:$0xff]
    %v3886 = vld [vmem:[#allocation2 + $0xf28] sm:$0xf]
    %v3887 = vld [vmem:[#allocation2 + $0xf30] sm:$0xff]
    %v3888 = vld [vmem:[#allocation2 + $0xf38] sm:$0xf]
    %v3889 = vld [vmem:[#allocation2 + $0xf40] sm:$0xff]
    %v3890 = vld [vmem:[#allocation2 + $0xf48] sm:$0xf]
    %v3891 = vld [vmem:[#allocation2 + $0xf50] sm:$0xff]
    %v3892 = vld [vmem:[#allocation2 + $0xf58] sm:$0xf]
    %v3893 = vld [vmem:[#allocation2 + $0xf60] sm:$0xff]
    %v3894 = vld [vmem:[#allocation2 + $0xf68] sm:$0xf]
    %v3895 = vld [vmem:[#allocation2 + $0xf70] sm:$0xff]
    %v3896 = vld [vmem:[#allocation2 + $0xf78] sm:$0xf]
    %v3897 = vld [vmem:[#allocation2 + $0xf80] sm:$0xff]
    %v3898 = vld [vmem:[#allocation2 + $0xf88] sm:$0xf]
    %v3899 = vld [vmem:[#allocation2 + $0xf90] sm:$0xff]
    %v3900 = vld [vmem:[#allocation2 + $0xf98] sm:$0xf]
    %v3901 = vld [vmem:[#allocation2 + $0xfa0] sm:$0xff]
    %v3902 = vld [vmem:[#allocation2 + $0xfa8] sm:$0xf]
    %v3903 = vld [vmem:[#allocation2 + $0xfb0] sm:$0xff]
    %v3904 = vld [vmem:[#allocation2 + $0xfb8] sm:$0xf]
    %v3905 = vld [vmem:[#allocation2 + $0xfc0] sm:$0xff]
    %v3906 = vld [vmem:[#allocation2 + $0xfc8] sm:$0xf]
    %v3907 = vld [vmem:[#allocation2 + $0xfd0] sm:$0xff]
    %v3908 = vld [vmem:[#allocation2 + $0xfd8] sm:$0xf]
    %v3909 = vld [vmem:[#allocation2 + $0xfe0] sm:$0xff]
    %v3910 = vld [vmem:[#allocation2 + $0xfe8] sm:$0xf]
    %v3911 = vld [vmem:[#allocation2 + $0xff0] sm:$0xff]
    %v3912 = vld [vmem:[#allocation2 + $0xff8] sm:$0xf]
    %v3913 = vld [vmem:[#allocation2 + $0x1000] sm:$0xff]
    %v3914 = vld [vmem:[#allocation2 + $0x1008] sm:$0xf]
    %v3915 = vld [vmem:[#allocation2 + $0x1010] sm:$0xff]
    %v3916 = vld [vmem:[#allocation2 + $0x1018] sm:$0xf]
    %v3917 = vld [vmem:[#allocation2 + $0x1020] sm:$0xff]
    %v3918 = vld [vmem:[#allocation2 + $0x1028] sm:$0xf]
    %v3919 = vld [vmem:[#allocation2 + $0x1030] sm:$0xff]
    %v3920 = vld [vmem:[#allocation2 + $0x1038] sm:$0xf]
    %v3921 = vld [vmem:[#allocation2 + $0x1040] sm:$0xff]
    %v3922 = vld [vmem:[#allocation2 + $0x1048] sm:$0xf]
    %v3923 = vld [vmem:[#allocation2 + $0x1050] sm:$0xff]
    %v3924 = vld [vmem:[#allocation2 + $0x1058] sm:$0xf]
    %v3925 = vld [vmem:[#allocation2 + $0x1060] sm:$0xff]
    %v3926 = vld [vmem:[#allocation2 + $0x1068] sm:$0xf]
    %v3927 = vld [vmem:[#allocation2 + $0x1070] sm:$0xff]
    %v3928 = vld [vmem:[#allocation2 + $0x1078] sm:$0xf]
    %v3929 = vld [vmem:[#allocation2 + $0x1080] sm:$0xff]
    %v3930 = vld [vmem:[#allocation2 + $0x1088] sm:$0xf]
    %v3931 = vld [vmem:[#allocation2 + $0x1090] sm:$0xff]
    %v3932 = vld [vmem:[#allocation2 + $0x1098] sm:$0xf]
    %v3933 = vld [vmem:[#allocation2 + $0x10a0] sm:$0xff]
    %v3934 = vld [vmem:[#allocation2 + $0x10a8] sm:$0xf]
    %v3935 = vld [vmem:[#allocation2 + $0x10b0] sm:$0xff]
    %v3936 = vld [vmem:[#allocation2 + $0x10b8] sm:$0xf]
    %v3937 = vld [vmem:[#allocation2 + $0x10c0] sm:$0xff]
    %v3938 = vld [vmem:[#allocation2 + $0x10c8] sm:$0xf]
    %v3939 = vld [vmem:[#allocation2 + $0x10d0] sm:$0xff]
    %v3940 = vld [vmem:[#allocation2 + $0x10d8] sm:$0xf]
    %v3941 = vld [vmem:[#allocation2 + $0x10e0] sm:$0xff]
    %v3942 = vld [vmem:[#allocation2 + $0x10e8] sm:$0xf]
    %v3943 = vld [vmem:[#allocation2 + $0x10f0] sm:$0xff]
    %v3944 = vld [vmem:[#allocation2 + $0x10f8] sm:$0xf]
    %v3945 = vld [vmem:[#allocation2 + $0x1100] sm:$0xff]
    %v3946 = vld [vmem:[#allocation2 + $0x1108] sm:$0xf]
    %v3947 = vld [vmem:[#allocation2 + $0x1110] sm:$0xff]
    %v3948 = vld [vmem:[#allocation2 + $0x1118] sm:$0xf]
    %s3949 = scalar_lea.vmem [#allocation5], 6
    %v3950 = vld [vmem:[%s3949] ss:$8 sm:$0x7]
    %v3952 = vlaneseq
    %v3953 = vshrl.u32 %v3952, 7
    %v3954 = vsub.s32 0, %v3953
    %v3955 = vrot.slane %v3950, %v3954
    %v3956 = vlaneseq
    %v3957 = vshrl.u32 %v3956, 7
    %v3958 = vsub.s32 1, %v3957
    %v3959 = vrot.slane %v3950, %v3958
    %v3960 = vlaneseq
    %v3961 = vshrl.u32 %v3960, 7
    %v3962 = vsub.s32 2, %v3961
    %v3963 = vrot.slane %v3950, %v3962
    %v4063 = vunpack.c.l.b16 %v3853
    %v4064 = vunpack.c.h.b16 %v3853
    %v4065 = vunpack.c.l.b16 %v3854
    %v4066 = vunpack.c.l.b16 %v3855
    %v4067 = vunpack.c.h.b16 %v3855
    %v4068 = vunpack.c.l.b16 %v3856
    %v4069 = vunpack.c.l.b16 %v3857
    %v4070 = vunpack.c.h.b16 %v3857
    %v4071 = vunpack.c.l.b16 %v3858
    %v4072 = vunpack.c.l.b16 %v3859
    %v4073 = vunpack.c.h.b16 %v3859
    %v4074 = vunpack.c.l.b16 %v3860
    %v4075 = vunpack.c.l.b16 %v3861
    %v4076 = vunpack.c.h.b16 %v3861
    %v4077 = vunpack.c.l.b16 %v3862
    %v4078 = vunpack.c.l.b16 %v3863
    %v4079 = vunpack.c.h.b16 %v3863
    %v4080 = vunpack.c.l.b16 %v3864
    %v4081 = vunpack.c.l.b16 %v3865
    %v4082 = vunpack.c.h.b16 %v3865
    %v4083 = vunpack.c.l.b16 %v3866
    %v4084 = vunpack.c.l.b16 %v3867
    %v4085 = vunpack.c.h.b16 %v3867
    %v4086 = vunpack.c.l.b16 %v3868
    %v4087 = vunpack.c.l.b16 %v3869
    %v4088 = vunpack.c.h.b16 %v3869
    %v4089 = vunpack.c.l.b16 %v3870
    %v4090 = vunpack.c.l.b16 %v3871
    %v4091 = vunpack.c.h.b16 %v3871
    %v4092 = vunpack.c.l.b16 %v3872
    %v4093 = vunpack.c.l.b16 %v3873
    %v4094 = vunpack.c.h.b16 %v3873
    %v4095 = vunpack.c.l.b16 %v3874
    %v4096 = vunpack.c.l.b16 %v3875
    %v4097 = vunpack.c.h.b16 %v3875
    %v4098 = vunpack.c.l.b16 %v3876
    %v4099 = vunpack.c.l.b16 %v3877
    %v4100 = vunpack.c.h.b16 %v3877
    %v4101 = vunpack.c.l.b16 %v3878
    %v4102 = vunpack.c.l.b16 %v3879
    %v4103 = vunpack.c.h.b16 %v3879
    %v4104 = vunpack.c.l.b16 %v3880
    %v4105 = vunpack.c.l.b16 %v3881
    %v4106 = vunpack.c.h.b16 %v3881
    %v4107 = vunpack.c.l.b16 %v3882
    %v4108 = vunpack.c.l.b16 %v3883
    %v4109 = vunpack.c.h.b16 %v3883
    %v4110 = vunpack.c.l.b16 %v3884
    %v4111 = vunpack.c.l.b16 %v3885
    %v4112 = vunpack.c.h.b16 %v3885
    %v4113 = vunpack.c.l.b16 %v3886
    %v4114 = vunpack.c.l.b16 %v3887
    %v4115 = vunpack.c.h.b16 %v3887
    %v4116 = vunpack.c.l.b16 %v3888
    %v4117 = vunpack.c.l.b16 %v3889
    %v4118 = vunpack.c.h.b16 %v3889
    %v4119 = vunpack.c.l.b16 %v3890
    %v4120 = vunpack.c.l.b16 %v3891
    %v4121 = vunpack.c.h.b16 %v3891
    %v4122 = vunpack.c.l.b16 %v3892
    %v4123 = vunpack.c.l.b16 %v3893
    %v4124 = vunpack.c.h.b16 %v3893
    %v4125 = vunpack.c.l.b16 %v3894
    %v4126 = vunpack.c.l.b16 %v3895
    %v4127 = vunpack.c.h.b16 %v3895
    %v4128 = vunpack.c.l.b16 %v3896
    %v4129 = vunpack.c.l.b16 %v3897
    %v4130 = vunpack.c.h.b16 %v3897
    %v4131 = vunpack.c.l.b16 %v3898
    %v4132 = vunpack.c.l.b16 %v3899
    %v4133 = vunpack.c.h.b16 %v3899
    %v4134 = vunpack.c.l.b16 %v3900
    %v4135 = vunpack.c.l.b16 %v3901
    %v4136 = vunpack.c.h.b16 %v3901
    %v4137 = vunpack.c.l.b16 %v3902
    %v4138 = vunpack.c.l.b16 %v3903
    %v4139 = vunpack.c.h.b16 %v3903
    %v4140 = vunpack.c.l.b16 %v3904
    %v4141 = vunpack.c.l.b16 %v3905
    %v4142 = vunpack.c.h.b16 %v3905
    %v4143 = vunpack.c.l.b16 %v3906
    %v4144 = vunpack.c.l.b16 %v3907
    %v4145 = vunpack.c.h.b16 %v3907
    %v4146 = vunpack.c.l.b16 %v3908
    %v4147 = vunpack.c.l.b16 %v3909
    %v4148 = vunpack.c.h.b16 %v3909
    %v4149 = vunpack.c.l.b16 %v3910
    %v4150 = vunpack.c.l.b16 %v3911
    %v4151 = vunpack.c.h.b16 %v3911
    %v4152 = vunpack.c.l.b16 %v3912
    %v4153 = vunpack.c.l.b16 %v3913
    %v4154 = vunpack.c.h.b16 %v3913
    %v4155 = vunpack.c.l.b16 %v3914
    %v4156 = vunpack.c.l.b16 %v3915
    %v4157 = vunpack.c.h.b16 %v3915
    %v4158 = vunpack.c.l.b16 %v3916
    %v4159 = vunpack.c.l.b16 %v3917
    %v4160 = vunpack.c.h.b16 %v3917
    %v4161 = vunpack.c.l.b16 %v3918
    %v4162 = vunpack.c.l.b16 %v3919
    %v4163 = vunpack.c.h.b16 %v3919
    %v4164 = vunpack.c.l.b16 %v3920
    %v4165 = vunpack.c.l.b16 %v3921
    %v4166 = vunpack.c.h.b16 %v3921
    %v4167 = vunpack.c.l.b16 %v3922
    %v4168 = vunpack.c.l.b16 %v3923
    %v4169 = vunpack.c.h.b16 %v3923
    %v4170 = vunpack.c.l.b16 %v3924
    %v4171 = vunpack.c.l.b16 %v3925
    %v4172 = vunpack.c.h.b16 %v3925
    %v4173 = vunpack.c.l.b16 %v3926
    %v4174 = vunpack.c.l.b16 %v3927
    %v4175 = vunpack.c.h.b16 %v3927
    %v4176 = vunpack.c.l.b16 %v3928
    %v4177 = vunpack.c.l.b16 %v3929
    %v4178 = vunpack.c.h.b16 %v3929
    %v4179 = vunpack.c.l.b16 %v3930
    %v4180 = vunpack.c.l.b16 %v3931
    %v4181 = vunpack.c.h.b16 %v3931
    %v4182 = vunpack.c.l.b16 %v3932
    %v4183 = vunpack.c.l.b16 %v3933
    %v4184 = vunpack.c.h.b16 %v3933
    %v4185 = vunpack.c.l.b16 %v3934
    %v4186 = vunpack.c.l.b16 %v3935
    %v4187 = vunpack.c.h.b16 %v3935
    %v4188 = vunpack.c.l.b16 %v3936
    %v4189 = vunpack.c.l.b16 %v3937
    %v4190 = vunpack.c.h.b16 %v3937
    %v4191 = vunpack.c.l.b16 %v3938
    %v4192 = vunpack.c.l.b16 %v3939
    %v4193 = vunpack.c.h.b16 %v3939
    %v4194 = vunpack.c.l.b16 %v3940
    %v4195 = vunpack.c.l.b16 %v3941
    %v4196 = vunpack.c.h.b16 %v3941
    %v4197 = vunpack.c.l.b16 %v3942
    %v4198 = vunpack.c.l.b16 %v3943
    %v4199 = vunpack.c.h.b16 %v3943
    %v4200 = vunpack.c.l.b16 %v3944
    %v4201 = vunpack.c.l.b16 %v3945
    %v4202 = vunpack.c.h.b16 %v3945
    %v4203 = vunpack.c.l.b16 %v3946
    %v4204 = vunpack.c.l.b16 %v3947
    %v4205 = vunpack.c.h.b16 %v3947
    %v4206 = vunpack.c.l.b16 %v3948
    %v4207 = vpack.c.b16 %v4066, %v4063
    %v4208 = vpack.c.b16 %v4067, %v4064
    %v4209 = vpack.c.b16 %v4068, %v4065
    %v4210 = vpack.c.b16 %v4072, %v4069
    %v4211 = vpack.c.b16 %v4073, %v4070
    %v4212 = vpack.c.b16 %v4074, %v4071
    %v4213 = vpack.c.b16 %v4078, %v4075
    %v4214 = vpack.c.b16 %v4079, %v4076
    %v4215 = vpack.c.b16 %v4080, %v4077
    %v4216 = vpack.c.b16 %v4084, %v4081
    %v4217 = vpack.c.b16 %v4085, %v4082
    %v4218 = vpack.c.b16 %v4086, %v4083
    %v4219 = vpack.c.b16 %v4090, %v4087
    %v4220 = vpack.c.b16 %v4091, %v4088
    %v4221 = vpack.c.b16 %v4092, %v4089
    %v4222 = vpack.c.b16 %v4096, %v4093
    %v4223 = vpack.c.b16 %v4097, %v4094
    %v4224 = vpack.c.b16 %v4098, %v4095
    %v4225 = vpack.c.b16 %v4102, %v4099
    %v4226 = vpack.c.b16 %v4103, %v4100
    %v4227 = vpack.c.b16 %v4104, %v4101
    %v4228 = vpack.c.b16 %v4108, %v4105
    %v4229 = vpack.c.b16 %v4109, %v4106
    %v4230 = vpack.c.b16 %v4110, %v4107
    %v4231 = vpack.c.b16 %v4114, %v4111
    %v4232 = vpack.c.b16 %v4115, %v4112
    %v4233 = vpack.c.b16 %v4116, %v4113
    %v4234 = vpack.c.b16 %v4120, %v4117
    %v4235 = vpack.c.b16 %v4121, %v4118
    %v4236 = vpack.c.b16 %v4122, %v4119
    %v4237 = vpack.c.b16 %v4126, %v4123
    %v4238 = vpack.c.b16 %v4127, %v4124
    %v4239 = vpack.c.b16 %v4128, %v4125
    %v4240 = vpack.c.b16 %v4132, %v4129
    %v4241 = vpack.c.b16 %v4133, %v4130
    %v4242 = vpack.c.b16 %v4134, %v4131
    %v4243 = vpack.c.b16 %v4138, %v4135
    %v4244 = vpack.c.b16 %v4139, %v4136
    %v4245 = vpack.c.b16 %v4140, %v4137
    %v4246 = vpack.c.b16 %v4144, %v4141
    %v4247 = vpack.c.b16 %v4145, %v4142
    %v4248 = vpack.c.b16 %v4146, %v4143
    %v4249 = vpack.c.b16 %v4150, %v4147
    %v4250 = vpack.c.b16 %v4151, %v4148
    %v4251 = vpack.c.b16 %v4152, %v4149
    %v4252 = vpack.c.b16 %v4156, %v4153
    %v4253 = vpack.c.b16 %v4157, %v4154
    %v4254 = vpack.c.b16 %v4158, %v4155
    %v4255 = vpack.c.b16 %v4162, %v4159
    %v4256 = vpack.c.b16 %v4163, %v4160
    %v4257 = vpack.c.b16 %v4164, %v4161
    %v4258 = vpack.c.b16 %v4168, %v4165
    %v4259 = vpack.c.b16 %v4169, %v4166
    %v4260 = vpack.c.b16 %v4170, %v4167
    %v4261 = vpack.c.b16 %v4174, %v4171
    %v4262 = vpack.c.b16 %v4175, %v4172
    %v4263 = vpack.c.b16 %v4176, %v4173
    %v4264 = vpack.c.b16 %v4180, %v4177
    %v4265 = vpack.c.b16 %v4181, %v4178
    %v4266 = vpack.c.b16 %v4182, %v4179
    %v4267 = vpack.c.b16 %v4186, %v4183
    %v4268 = vpack.c.b16 %v4187, %v4184
    %v4269 = vpack.c.b16 %v4188, %v4185
    %v4270 = vpack.c.b16 %v4192, %v4189
    %v4271 = vpack.c.b16 %v4193, %v4190
    %v4272 = vpack.c.b16 %v4194, %v4191
    %v4273 = vpack.c.b16 %v4198, %v4195
    %v4274 = vpack.c.b16 %v4199, %v4196
    %v4275 = vpack.c.b16 %v4200, %v4197
    %v4276 = vpack.c.b16 %v4204, %v4201
    %v4277 = vpack.c.b16 %v4205, %v4202
    %v4278 = vpack.c.b16 %v4206, %v4203
    %4351 = vmatprep.subr.bf16.mxu0 %v4208
    %4352 = vmatpush1.bf16.msra.mxu0 %v4207
    %4353 = vmatprep.subr.bf16.mxu0 %v4211
    %4354 = vmatpush1.bf16.msra.mxu0 %v4210
    %4355 = vmatprep.subr.bf16.mxu0 %v4214
    %4356 = vmatpush1.bf16.msra.mxu0 %v4213
    %4357 = vmatprep.subr.bf16.mxu0 %v4217
    %4358 = vmatpush1.bf16.msra.mxu0 %v4216
    %4359 = vmatprep.subr.bf16.mxu0 %v4220
    %4360 = vmatpush1.bf16.msra.mxu0 %v4219
    %4361 = vmatprep.subr.bf16.mxu0 %v4223
    %4362 = vmatpush1.bf16.msra.mxu0 %v4222
    %4363 = vmatprep.subr.bf16.mxu0 %v4226
    %4364 = vmatpush1.bf16.msra.mxu0 %v4225
    %4365 = vmatprep.subr.bf16.mxu0 %v4229
    %4366 = vmatpush1.bf16.msra.mxu0 %v4228
    %4367 = vmatprep.subr.bf16.mxu0 %v4232
    %4368 = vmatpush1.bf16.msra.mxu0 %v4231
    %4369 = vmatprep.subr.bf16.mxu0 %v4235
    %4370 = vmatpush1.bf16.msra.mxu0 %v4234
    %4371 = vmatprep.subr.bf16.mxu0 %v4238
    %4372 = vmatpush1.bf16.msra.mxu0 %v4237
    %4373 = vmatprep.subr.bf16.mxu0 %v4241
    %4374 = vmatpush1.bf16.msra.mxu0 %v4240
    %4375 = vmatprep.subr.bf16.mxu0 %v4244
    %4376 = vmatpush1.bf16.msra.mxu0 %v4243
    %4377 = vmatprep.subr.bf16.mxu0 %v4247
    %4378 = vmatpush1.bf16.msra.mxu0 %v4246
    %4379 = vmatprep.subr.bf16.mxu0 %v4250
    %4380 = vmatpush1.bf16.msra.mxu0 %v4249
    %4381 = vmatprep.subr.bf16.mxu0 %v4253
    %4382 = vmatpush1.bf16.msra.mxu0 %v4252
    %4383 = vmatprep.mubr.bf16.mxu0 %v3830
    %4384 = vmatmul.mubr.bf16.gmra.mrb[0].mxu0 %v3829
    %v4385 = vpop.f32.mrb[0].mxu0
    %v4386 = vadd.f32 %v3955, %v4385
    %v4387 = vpop.f32.mrb[0].mxu0
    %v4388 = vadd.f32 %v3959, %v4387
    %v4389 = vpop.f32.mrb[0].mxu0
    %v4390 = vadd.f32 %v3955, %v4389
    %v4391 = vpop.f32.mrb[0].mxu0
    %v4392 = vadd.f32 %v3959, %v4391
    %4393 = vmatprep.mubr.bf16.mxu0 %v3833
    %4394 = vmatmul.mubr.bf16.gmra.mrb[0].mxu0 %v3832
    %v4395 = vpop.f32.mrb[0].mxu0
    %v4396 = vadd.f32 %v3955, %v4395
    %v4397 = vpop.f32.mrb[0].mxu0
    %v4398 = vadd.f32 %v3959, %v4397
    %v4399 = vpop.f32.mrb[0].mxu0
    %v4400 = vadd.f32 %v3955, %v4399
    %v4401 = vpop.f32.mrb[0].mxu0
    %v4402 = vadd.f32 %v3959, %v4401
    %4403 = vmatprep.mubr.bf16.mxu0 %v3836
    %4404 = vmatmul.mubr.bf16.gmra.mrb[0].mxu0 %v3835
    %v4405 = vpop.f32.mrb[0].mxu0
    %v4406 = vadd.f32 %v3955, %v4405
    %v4407 = vpop.f32.mrb[0].mxu0
    %v4408 = vadd.f32 %v3959, %v4407
    %v4409 = vpop.f32.mrb[0].mxu0
    %v4410 = vadd.f32 %v3955, %v4409
    %v4411 = vpop.f32.mrb[0].mxu0
    %v4412 = vadd.f32 %v3959, %v4411
    %4413 = vmatprep.mubr.bf16.mxu0 %v3839
    %4414 = vmatmul.mubr.bf16.gmra.mrb[0].mxu0 %v3838
    %v4415 = vpop.f32.mrb[0].mxu0
    %v4416 = vadd.f32 %v3955, %v4415
    %v4417 = vpop.f32.mrb[0].mxu0
    %v4418 = vadd.f32 %v3959, %v4417
    %v4419 = vpop.f32.mrb[0].mxu0
    %v4420 = vadd.f32 %v3955, %v4419
    %v4421 = vpop.f32.mrb[0].mxu0
    %v4422 = vadd.f32 %v3959, %v4421
    %4423 = vmatprep.mubr.bf16.mxu0 %v3842
    %4424 = vmatmul.mubr.bf16.gmra.mrb[0].mxu0 %v3841
    %v4425 = vpop.f32.mrb[0].mxu0
    %v4426 = vadd.f32 %v3955, %v4425
    %v4427 = vpop.f32.mrb[0].mxu0
    %v4428 = vadd.f32 %v3959, %v4427
    %v4429 = vpop.f32.mrb[0].mxu0
    %v4430 = vadd.f32 %v3955, %v4429
    %v4431 = vpop.f32.mrb[0].mxu0
    %v4432 = vadd.f32 %v3959, %v4431
    %4433 = vmatprep.mubr.bf16.mxu0 %v3845
    %4434 = vmatmul.mubr.bf16.gmra.mrb[0].mxu0 %v3844
    %v4435 = vpop.f32.mrb[0].mxu0
    %v4436 = vadd.f32 %v3955, %v4435
    %v4437 = vpop.f32.mrb[0].mxu0
    %v4438 = vadd.f32 %v3959, %v4437
    %v4439 = vpop.f32.mrb[0].mxu0
    %v4440 = vadd.f32 %v3955, %v4439
    %v4441 = vpop.f32.mrb[0].mxu0
    %v4442 = vadd.f32 %v3959, %v4441
    %4443 = vmatprep.mubr.bf16.mxu0 %v3848
    %4444 = vmatmul.mubr.bf16.gmra.mrb[0].mxu0 %v3847
    %v4445 = vpop.f32.mrb[0].mxu0
    %v4446 = vadd.f32 %v3955, %v4445
    %v4447 = vpop.f32.mrb[0].mxu0
    %v4448 = vadd.f32 %v3959, %v4447
    %v4449 = vpop.f32.mrb[0].mxu0
    %v4450 = vadd.f32 %v3955, %v4449
    %v4451 = vpop.f32.mrb[0].mxu0
    %v4452 = vadd.f32 %v3959, %v4451
    %4453 = vmatprep.mubr.bf16.mxu0 %v3851
    %4454 = vmatmul.mubr.bf16.gmra.mrb[0].mxu0 %v3850
    %v4455 = vpop.f32.mrb[0].mxu0
    %v4456 = vadd.f32 %v3955, %v4455
    %v4457 = vpop.f32.mrb[0].mxu0
    %v4458 = vadd.f32 %v3959, %v4457
    %v4459 = vpop.f32.mrb[0].mxu0
    %v4460 = vadd.f32 %v3955, %v4459
    %v4461 = vpop.f32.mrb[0].mxu0
    %v4462 = vadd.f32 %v3959, %v4461
    %4463 = vdwg.mxu0
    %4464 = vmatprep.subr.bf16.mxu0 %v4256
    %4465 = vmatpush1.bf16.msra.mxu0 %v4255
    %4466 = vmatprep.subr.bf16.mxu0 %v4259
    %4467 = vmatpush1.bf16.msra.mxu0 %v4258
    %4468 = vmatprep.subr.bf16.mxu0 %v4262
    %4469 = vmatpush1.bf16.msra.mxu0 %v4261
    %4470 = vmatprep.subr.bf16.mxu0 %v4265
    %4471 = vmatpush1.bf16.msra.mxu0 %v4264
    %4472 = vmatprep.subr.bf16.mxu0 %v4268
    %4473 = vmatpush1.bf16.msra.mxu0 %v4267
    %4474 = vmatprep.subr.bf16.mxu0 %v4271
    %4475 = vmatpush1.bf16.msra.mxu0 %v4270
    %4476 = vmatprep.subr.bf16.mxu0 %v4274
    %4477 = vmatpush1.bf16.msra.mxu0 %v4273
    %4478 = vmatprep.subr.bf16.mxu0 %v4277
    %4479 = vmatpush1.bf16.msra.mxu0 %v4276
    %4480 = vmatprep.subr.bf16.mxu0 0
    %4481 = vmatpush1.bf16.msra.mxu0 0
    %4482 = vmatprep.subr.bf16.mxu0 0
    %4483 = vmatpush1.bf16.msra.mxu0 0
    %4484 = vmatprep.subr.bf16.mxu0 0
    %4485 = vmatpush1.bf16.msra.mxu0 0
    %4486 = vmatprep.subr.bf16.mxu0 0
    %4487 = vmatpush1.bf16.msra.mxu0 0
    %4488 = vmatprep.subr.bf16.mxu0 0
    %4489 = vmatpush1.bf16.msra.mxu0 0
    %4490 = vmatprep.subr.bf16.mxu0 0
    %4491 = vmatpush1.bf16.msra.mxu0 0
    %4492 = vmatprep.subr.bf16.mxu0 0
    %4493 = vmatpush1.bf16.msra.mxu0 0
    %4494 = vmatprep.subr.bf16.mxu0 0
    %4495 = vmatpush1.bf16.msra.mxu0 0
    %4496 = vmatprep.mubr.bf16.mxu0 0
    %4497 = vmatmul.mubr.bf16.gmra.mrb[0].mxu0 %v3831
    %v4498 = vpop.f32.mrb[0].mxu0
    %v4499 = vadd.f32 %v4386, %v4498
    %v4500 = vpop.f32.mrb[0].mxu0
    %v4501 = vadd.f32 %v4388, %v4500
    %v4502 = vpop.f32.mrb[0].mxu0
    %v4503 = vadd.f32 %v4390, %v4502
    %v4504 = vpop.f32.mrb[0].mxu0
    %v4505 = vadd.f32 %v4392, %v4504
    %4506 = vmatprep.mubr.bf16.mxu0 0
    %4507 = vmatmul.mubr.bf16.gmra.mrb[0].mxu0 %v3834
    %v4508 = vpop.f32.mrb[0].mxu0
    %v4509 = vadd.f32 %v4396, %v4508
    %v4510 = vpop.f32.mrb[0].mxu0
    %v4511 = vadd.f32 %v4398, %v4510
    %v4512 = vpop.f32.mrb[0].mxu0
    %v4513 = vadd.f32 %v4400, %v4512
    %v4514 = vpop.f32.mrb[0].mxu0
    %v4515 = vadd.f32 %v4402, %v4514
    %4516 = vmatprep.mubr.bf16.mxu0 0
    %4517 = vmatmul.mubr.bf16.gmra.mrb[0].mxu0 %v3837
    %v4518 = vpop.f32.mrb[0].mxu0
    %v4519 = vadd.f32 %v4406, %v4518
    %v4520 = vpop.f32.mrb[0].mxu0
    %v4521 = vadd.f32 %v4408, %v4520
    %v4522 = vpop.f32.mrb[0].mxu0
    %v4523 = vadd.f32 %v4410, %v4522
    %v4524 = vpop.f32.mrb[0].mxu0
    %v4525 = vadd.f32 %v4412, %v4524
    %4526 = vmatprep.mubr.bf16.mxu0 0
    %4527 = vmatmul.mubr.bf16.gmra.mrb[0].mxu0 %v3840
    %v4528 = vpop.f32.mrb[0].mxu0
    %v4529 = vadd.f32 %v4416, %v4528
    %v4530 = vpop.f32.mrb[0].mxu0
    %v4531 = vadd.f32 %v4418, %v4530
    %v4532 = vpop.f32.mrb[0].mxu0
    %v4533 = vadd.f32 %v4420, %v4532
    %v4534 = vpop.f32.mrb[0].mxu0
    %v4535 = vadd.f32 %v4422, %v4534
    %4536 = vmatprep.mubr.bf16.mxu0 0
    %4537 = vmatmul.mubr.bf16.gmra.mrb[0].mxu0 %v3843
    %v4538 = vpop.f32.mrb[0].mxu0
    %v4539 = vadd.f32 %v4426, %v4538
    %v4540 = vpop.f32.mrb[0].mxu0
    %v4541 = vadd.f32 %v4428, %v4540
    %v4542 = vpop.f32.mrb[0].mxu0
    %v4543 = vadd.f32 %v4430, %v4542
    %v4544 = vpop.f32.mrb[0].mxu0
    %v4545 = vadd.f32 %v4432, %v4544
    %4546 = vmatprep.mubr.bf16.mxu0 0
    %4547 = vmatmul.mubr.bf16.gmra.mrb[0].mxu0 %v3846
    %v4548 = vpop.f32.mrb[0].mxu0
    %v4549 = vadd.f32 %v4436, %v4548
    %v4550 = vpop.f32.mrb[0].mxu0
    %v4551 = vadd.f32 %v4438, %v4550
    %v4552 = vpop.f32.mrb[0].mxu0
    %v4553 = vadd.f32 %v4440, %v4552
    %v4554 = vpop.f32.mrb[0].mxu0
    %v4555 = vadd.f32 %v4442, %v4554
    %4556 = vmatprep.mubr.bf16.mxu0 0
    %4557 = vmatmul.mubr.bf16.gmra.mrb[0].mxu0 %v3849
    %v4558 = vpop.f32.mrb[0].mxu0
    %v4559 = vadd.f32 %v4446, %v4558
    %v4560 = vpop.f32.mrb[0].mxu0
    %v4561 = vadd.f32 %v4448, %v4560
    %v4562 = vpop.f32.mrb[0].mxu0
    %v4563 = vadd.f32 %v4450, %v4562
    %v4564 = vpop.f32.mrb[0].mxu0
    %v4565 = vadd.f32 %v4452, %v4564
    %4566 = vmatprep.mubr.bf16.mxu0 0
    %4567 = vmatmul.mubr.bf16.gmra.mrb[0].mxu0 %v3852
    %v4568 = vpop.f32.mrb[0].mxu0
    %v4569 = vadd.f32 %v4456, %v4568
    %v4570 = vpop.f32.mrb[0].mxu0
    %v4571 = vadd.f32 %v4458, %v4570
    %v4572 = vpop.f32.mrb[0].mxu0
    %v4573 = vadd.f32 %v4460, %v4572
    %v4574 = vpop.f32.mrb[0].mxu0
    %v4575 = vadd.f32 %v4462, %v4574
    %4576 = vdwg.mxu0
    %4577 = vmatprep.subr.bf16.mxu0 0
    %4578 = vmatpush1.bf16.msra.mxu0 %v4209
    %4579 = vmatprep.subr.bf16.mxu0 0
    %4580 = vmatpush1.bf16.msra.mxu0 %v4212
    %4581 = vmatprep.subr.bf16.mxu0 0
    %4582 = vmatpush1.bf16.msra.mxu0 %v4215
    %4583 = vmatprep.subr.bf16.mxu0 0
    %4584 = vmatpush1.bf16.msra.mxu0 %v4218
    %4585 = vmatprep.subr.bf16.mxu0 0
    %4586 = vmatpush1.bf16.msra.mxu0 %v4221
    %4587 = vmatprep.subr.bf16.mxu0 0
    %4588 = vmatpush1.bf16.msra.mxu0 %v4224
    %4589 = vmatprep.subr.bf16.mxu0 0
    %4590 = vmatpush1.bf16.msra.mxu0 %v4227
    %4591 = vmatprep.subr.bf16.mxu0 0
    %4592 = vmatpush1.bf16.msra.mxu0 %v4230
    %4593 = vmatprep.subr.bf16.mxu0 0
    %4594 = vmatpush1.bf16.msra.mxu0 %v4233
    %4595 = vmatprep.subr.bf16.mxu0 0
    %4596 = vmatpush1.bf16.msra.mxu0 %v4236
    %4597 = vmatprep.subr.bf16.mxu0 0
    %4598 = vmatpush1.bf16.msra.mxu0 %v4239
    %4599 = vmatprep.subr.bf16.mxu0 0
    %4600 = vmatpush1.bf16.msra.mxu0 %v4242
    %4601 = vmatprep.subr.bf16.mxu0 0
    %4602 = vmatpush1.bf16.msra.mxu0 %v4245
    %4603 = vmatprep.subr.bf16.mxu0 0
    %4604 = vmatpush1.bf16.msra.mxu0 %v4248
    %4605 = vmatprep.subr.bf16.mxu0 0
    %4606 = vmatpush1.bf16.msra.mxu0 %v4251
    %4607 = vmatprep.subr.bf16.mxu0 0
    %4608 = vmatpush1.bf16.msra.mxu0 %v4254
    %4609 = vmatprep.mubr.bf16.mxu0 %v3830
    %4610 = vmatmul.mubr.bf16.gmra.mrb[0].mxu0 %v3829
    %v4611 = vpop.f32.mrb[0].mxu0
    %v4612 = vadd.f32 %v3963, %v4611
    %v4613 = vpop.f32.mrb[0].mxu0
    %v4614 = vpop.f32.mrb[0].mxu0
    %v4615 = vadd.f32 %v3963, %v4614
    %v4616 = vpop.f32.mrb[0].mxu0
    %4617 = vmatprep.mubr.bf16.mxu0 %v3833
    %4618 = vmatmul.mubr.bf16.gmra.mrb[0].mxu0 %v3832
    %v4619 = vpop.f32.mrb[0].mxu0
    %v4620 = vadd.f32 %v3963, %v4619
    %v4621 = vpop.f32.mrb[0].mxu0
    %v4622 = vpop.f32.mrb[0].mxu0
    %v4623 = vadd.f32 %v3963, %v4622
    %v4624 = vpop.f32.mrb[0].mxu0
    %4625 = vmatprep.mubr.bf16.mxu0 %v3836
    %4626 = vmatmul.mubr.bf16.gmra.mrb[0].mxu0 %v3835
    %v4627 = vpop.f32.mrb[0].mxu0
    %v4628 = vadd.f32 %v3963, %v4627
    %v4629 = vpop.f32.mrb[0].mxu0
    %v4630 = vpop.f32.mrb[0].mxu0
    %v4631 = vadd.f32 %v3963, %v4630
    %v4632 = vpop.f32.mrb[0].mxu0
    %4633 = vmatprep.mubr.bf16.mxu0 %v3839
    %4634 = vmatmul.mubr.bf16.gmra.mrb[0].mxu0 %v3838
    %v4635 = vpop.f32.mrb[0].mxu0
    %v4636 = vadd.f32 %v3963, %v4635
    %v4637 = vpop.f32.mrb[0].mxu0
    %v4638 = vpop.f32.mrb[0].mxu0
    %v4639 = vadd.f32 %v3963, %v4638
    %v4640 = vpop.f32.mrb[0].mxu0
    %4641 = vmatprep.mubr.bf16.mxu0 %v3842
    %4642 = vmatmul.mubr.bf16.gmra.mrb[0].mxu0 %v3841
    %v4643 = vpop.f32.mrb[0].mxu0
    %v4644 = vadd.f32 %v3963, %v4643
    %v4645 = vpop.f32.mrb[0].mxu0
    %v4646 = vpop.f32.mrb[0].mxu0
    %v4647 = vadd.f32 %v3963, %v4646
    %v4648 = vpop.f32.mrb[0].mxu0
    %4649 = vmatprep.mubr.bf16.mxu0 %v3845
    %4650 = vmatmul.mubr.bf16.gmra.mrb[0].mxu0 %v3844
    %v4651 = vpop.f32.mrb[0].mxu0
    %v4652 = vadd.f32 %v3963, %v4651
    %v4653 = vpop.f32.mrb[0].mxu0
    %v4654 = vpop.f32.mrb[0].mxu0
    %v4655 = vadd.f32 %v3963, %v4654
    %v4656 = vpop.f32.mrb[0].mxu0
    %4657 = vmatprep.mubr.bf16.mxu0 %v3848
    %4658 = vmatmul.mubr.bf16.gmra.mrb[0].mxu0 %v3847
    %v4659 = vpop.f32.mrb[0].mxu0
    %v4660 = vadd.f32 %v3963, %v4659
    %v4661 = vpop.f32.mrb[0].mxu0
    %v4662 = vpop.f32.mrb[0].mxu0
    %v4663 = vadd.f32 %v3963, %v4662
    %v4664 = vpop.f32.mrb[0].mxu0
    %4665 = vmatprep.mubr.bf16.mxu0 %v3851
    %4666 = vmatmul.mubr.bf16.gmra.mrb[0].mxu0 %v3850
    %v4667 = vpop.f32.mrb[0].mxu0
    %v4668 = vadd.f32 %v3963, %v4667
    %v4669 = vpop.f32.mrb[0].mxu0
    %v4670 = vpop.f32.mrb[0].mxu0
    %v4671 = vadd.f32 %v3963, %v4670
    %v4672 = vpop.f32.mrb[0].mxu0
    %4673 = vdwg.mxu0
    %4674 = vmatprep.subr.bf16.mxu0 0
    %4675 = vmatpush1.bf16.msra.mxu0 %v4257
    %4676 = vmatprep.subr.bf16.mxu0 0
    %4677 = vmatpush1.bf16.msra.mxu0 %v4260
    %4678 = vmatprep.subr.bf16.mxu0 0
    %4679 = vmatpush1.bf16.msra.mxu0 %v4263
    %4680 = vmatprep.subr.bf16.mxu0 0
    %4681 = vmatpush1.bf16.msra.mxu0 %v4266
    %4682 = vmatprep.subr.bf16.mxu0 0
    %4683 = vmatpush1.bf16.msra.mxu0 %v4269
    %4684 = vmatprep.subr.bf16.mxu0 0
    %4685 = vmatpush1.bf16.msra.mxu0 %v4272
    %4686 = vmatprep.subr.bf16.mxu0 0
    %4687 = vmatpush1.bf16.msra.mxu0 %v4275
    %4688 = vmatprep.subr.bf16.mxu0 0
    %4689 = vmatpush1.bf16.msra.mxu0 %v4278
    %4690 = vmatprep.subr.bf16.mxu0 0
    %4691 = vmatpush1.bf16.msra.mxu0 0
    %4692 = vmatprep.subr.bf16.mxu0 0
    %4693 = vmatpush1.bf16.msra.mxu0 0
    %4694 = vmatprep.subr.bf16.mxu0 0
    %4695 = vmatpush1.bf16.msra.mxu0 0
    %4696 = vmatprep.subr.bf16.mxu0 0
    %4697 = vmatpush1.bf16.msra.mxu0 0
    %4698 = vmatprep.subr.bf16.mxu0 0
    %4699 = vmatpush1.bf16.msra.mxu0 0
    %4700 = vmatprep.subr.bf16.mxu0 0
    %4701 = vmatpush1.bf16.msra.mxu0 0
    %4702 = vmatprep.subr.bf16.mxu0 0
    %4703 = vmatpush1.bf16.msra.mxu0 0
    %4704 = vmatprep.subr.bf16.mxu0 0
    %4705 = vmatpush1.bf16.msra.mxu0 0
    %4706 = vmatprep.mubr.bf16.mxu0 0
    %4707 = vmatmul.mubr.bf16.gmra.mrb[0].mxu0 %v3831
    %v4708 = vpop.f32.mrb[0].mxu0
    %v4709 = vadd.f32 %v4612, %v4708
    %v4710 = vpop.f32.mrb[0].mxu0
    %v4711 = vpop.f32.mrb[0].mxu0
    %v4712 = vadd.f32 %v4615, %v4711
    %v4713 = vpop.f32.mrb[0].mxu0
    %4714 = vmatprep.mubr.bf16.mxu0 0
    %4715 = vmatmul.mubr.bf16.gmra.mrb[0].mxu0 %v3834
    %v4716 = vpop.f32.mrb[0].mxu0
    %v4717 = vadd.f32 %v4620, %v4716
    %v4718 = vpop.f32.mrb[0].mxu0
    %v4719 = vpop.f32.mrb[0].mxu0
    %v4720 = vadd.f32 %v4623, %v4719
    %v4721 = vpop.f32.mrb[0].mxu0
    %4722 = vmatprep.mubr.bf16.mxu0 0
    %4723 = vmatmul.mubr.bf16.gmra.mrb[0].mxu0 %v3837
    %v4724 = vpop.f32.mrb[0].mxu0
    %v4725 = vadd.f32 %v4628, %v4724
    %v4726 = vpop.f32.mrb[0].mxu0
    %v4727 = vpop.f32.mrb[0].mxu0
    %v4728 = vadd.f32 %v4631, %v4727
    %v4729 = vpop.f32.mrb[0].mxu0
    %4730 = vmatprep.mubr.bf16.mxu0 0
    %4731 = vmatmul.mubr.bf16.gmra.mrb[0].mxu0 %v3840
    %v4732 = vpop.f32.mrb[0].mxu0
    %v4733 = vadd.f32 %v4636, %v4732
    %v4734 = vpop.f32.mrb[0].mxu0
    %v4735 = vpop.f32.mrb[0].mxu0
    %v4736 = vadd.f32 %v4639, %v4735
    %v4737 = vpop.f32.mrb[0].mxu0
    %4738 = vmatprep.mubr.bf16.mxu0 0
    %4739 = vmatmul.mubr.bf16.gmra.mrb[0].mxu0 %v3843
    %v4740 = vpop.f32.mrb[0].mxu0
    %v4741 = vadd.f32 %v4644, %v4740
    %v4742 = vpop.f32.mrb[0].mxu0
    %v4743 = vpop.f32.mrb[0].mxu0
    %v4744 = vadd.f32 %v4647, %v4743
    %v4745 = vpop.f32.mrb[0].mxu0
    %4746 = vmatprep.mubr.bf16.mxu0 0
    %4747 = vmatmul.mubr.bf16.gmra.mrb[0].mxu0 %v3846
    %v4748 = vpop.f32.mrb[0].mxu0
    %v4749 = vadd.f32 %v4652, %v4748
    %v4750 = vpop.f32.mrb[0].mxu0
    %v4751 = vpop.f32.mrb[0].mxu0
    %v4752 = vadd.f32 %v4655, %v4751
    %v4753 = vpop.f32.mrb[0].mxu0
    %4754 = vmatprep.mubr.bf16.mxu0 0
    %4755 = vmatmul.mubr.bf16.gmra.mrb[0].mxu0 %v3849
    %v4756 = vpop.f32.mrb[0].mxu0
    %v4757 = vadd.f32 %v4660, %v4756
    %v4758 = vpop.f32.mrb[0].mxu0
    %v4759 = vpop.f32.mrb[0].mxu0
    %v4760 = vadd.f32 %v4663, %v4759
    %v4761 = vpop.f32.mrb[0].mxu0
    %4762 = vmatprep.mubr.bf16.mxu0 0
    %4763 = vmatmul.mubr.bf16.gmra.mrb[0].mxu0 %v3852
    %v4764 = vpop.f32.mrb[0].mxu0
    %v4765 = vadd.f32 %v4668, %v4764
    %v4766 = vpop.f32.mrb[0].mxu0
    %v4767 = vpop.f32.mrb[0].mxu0
    %v4768 = vadd.f32 %v4671, %v4767
    %v4769 = vpop.f32.mrb[0].mxu0
    %4770 = vdwg.mxu0
    %v4771 = vmax.f32 %v4499, 0.0
    %v4772 = vmax.f32 %v4501, 0.0
    %v4773 = vmax.f32 %v4709, 0.0
    %v4774 = vmax.f32 %v4503, 0.0
    %v4775 = vmax.f32 %v4505, 0.0
    %v4776 = vmax.f32 %v4712, 0.0
    %v4777 = vmax.f32 %v4509, 0.0
    %v4778 = vmax.f32 %v4511, 0.0
    %v4779 = vmax.f32 %v4717, 0.0
    %v4780 = vmax.f32 %v4513, 0.0
    %v4781 = vmax.f32 %v4515, 0.0
    %v4782 = vmax.f32 %v4720, 0.0
    %v4783 = vmax.f32 %v4519, 0.0
    %v4784 = vmax.f32 %v4521, 0.0
    %v4785 = vmax.f32 %v4725, 0.0
    %v4786 = vmax.f32 %v4523, 0.0
    %v4787 = vmax.f32 %v4525, 0.0
    %v4788 = vmax.f32 %v4728, 0.0
    %v4789 = vmax.f32 %v4529, 0.0
    %v4790 = vmax.f32 %v4531, 0.0
    %v4791 = vmax.f32 %v4733, 0.0
    %v4792 = vmax.f32 %v4533, 0.0
    %v4793 = vmax.f32 %v4535, 0.0
    %v4794 = vmax.f32 %v4736, 0.0
    %v4795 = vmax.f32 %v4539, 0.0
    %v4796 = vmax.f32 %v4541, 0.0
    %v4797 = vmax.f32 %v4741, 0.0
    %v4798 = vmax.f32 %v4543, 0.0
    %v4799 = vmax.f32 %v4545, 0.0
    %v4800 = vmax.f32 %v4744, 0.0
    %v4801 = vmax.f32 %v4549, 0.0
    %v4802 = vmax.f32 %v4551, 0.0
    %v4803 = vmax.f32 %v4749, 0.0
    %v4804 = vmax.f32 %v4553, 0.0
    %v4805 = vmax.f32 %v4555, 0.0
    %v4806 = vmax.f32 %v4752, 0.0
    %v4807 = vmax.f32 %v4559, 0.0
    %v4808 = vmax.f32 %v4561, 0.0
    %v4809 = vmax.f32 %v4757, 0.0
    %v4810 = vmax.f32 %v4563, 0.0
    %v4811 = vmax.f32 %v4565, 0.0
    %v4812 = vmax.f32 %v4760, 0.0
    %v4813 = vmax.f32 %v4569, 0.0
    %v4814 = vmax.f32 %v4571, 0.0
    %v4815 = vmax.f32 %v4765, 0.0
    %v4816 = vmax.f32 %v4573, 0.0
    %v4817 = vmax.f32 %v4575, 0.0
    %v4818 = vmax.f32 %v4768, 0.0
    %v4819 = vpack.c.bf16 %v4774, %v4771
    %v4820 = vpack.c.bf16 %v4775, %v4772
    %v4821 = vpack.c.bf16 %v4776, %v4773
    %v4822 = vpack.c.bf16 %v4780, %v4777
    %v4823 = vpack.c.bf16 %v4781, %v4778
    %v4824 = vpack.c.bf16 %v4782, %v4779
    %v4825 = vpack.c.bf16 %v4786, %v4783
    %v4826 = vpack.c.bf16 %v4787, %v4784
    %v4827 = vpack.c.bf16 %v4788, %v4785
    %v4828 = vpack.c.bf16 %v4792, %v4789
    %v4829 = vpack.c.bf16 %v4793, %v4790
    %v4830 = vpack.c.bf16 %v4794, %v4791
    %v4831 = vpack.c.bf16 %v4798, %v4795
    %v4832 = vpack.c.bf16 %v4799, %v4796
    %v4833 = vpack.c.bf16 %v4800, %v4797
    %v4834 = vpack.c.bf16 %v4804, %v4801
    %v4835 = vpack.c.bf16 %v4805, %v4802
    %v4836 = vpack.c.bf16 %v4806, %v4803
    %v4837 = vpack.c.bf16 %v4810, %v4807
    %v4838 = vpack.c.bf16 %v4811, %v4808
    %v4839 = vpack.c.bf16 %v4812, %v4809
    %v4840 = vpack.c.bf16 %v4816, %v4813
    %v4841 = vpack.c.bf16 %v4817, %v4814
    %v4842 = vpack.c.bf16 %v4818, %v4815
    %v4843 = vld [vmem:[#allocation2 + $0x1120] sm:$0xf]
    %v4844 = vld [vmem:[#allocation2 + $0x1130] sm:$0xf]
    %v4845 = vld [vmem:[#allocation2 + $0x1140] sm:$0xf]
    %v4846 = vld [vmem:[#allocation2 + $0x1150] sm:$0xf]
    %v4847 = vld [vmem:[#allocation2 + $0x1160] sm:$0xf]
    %v4848 = vld [vmem:[#allocation2 + $0x1170] sm:$0xf]
    %v4849 = vld [vmem:[#allocation2 + $0x1180] sm:$0xf]
    %v4850 = vld [vmem:[#allocation2 + $0x1190] sm:$0xf]
    %v4851 = vld [vmem:[#allocation2 + $0x11a0] sm:$0xf]
    %v4852 = vld [vmem:[#allocation2 + $0x11b0] sm:$0xf]
    %v4853 = vld [vmem:[#allocation2 + $0x11c0] sm:$0xf]
    %v4854 = vld [vmem:[#allocation2 + $0x11d0] sm:$0xf]
    %v4855 = vld [vmem:[#allocation2 + $0x11e0] sm:$0xf]
    %v4856 = vld [vmem:[#allocation2 + $0x11f0] sm:$0xf]
    %v4857 = vld [vmem:[#allocation2 + $0x1200] sm:$0xf]
    %v4858 = vld [vmem:[#allocation2 + $0x1210] sm:$0xf]
    %v4859 = vld [vmem:[#allocation2 + $0x1220] sm:$0xf]
    %v4860 = vld [vmem:[#allocation2 + $0x1230] sm:$0xf]
    %v4861 = vld [vmem:[#allocation2 + $0x1240] sm:$0xf]
    %v4862 = vld [vmem:[#allocation2 + $0x1250] sm:$0xf]
    %v4863 = vld [vmem:[#allocation2 + $0x1260] sm:$0xf]
    %v4864 = vld [vmem:[#allocation2 + $0x1270] sm:$0xf]
    %v4865 = vld [vmem:[#allocation2 + $0x1280] sm:$0xf]
    %v4866 = vld [vmem:[#allocation2 + $0x1290] sm:$0xf]
    %v4867 = vld [vmem:[#allocation2 + $0x12a0] sm:$0xf]
    %v4868 = vld [vmem:[#allocation2 + $0x12b0] sm:$0xf]
    %v4869 = vld [vmem:[#allocation2 + $0x12c0] sm:$0xf]
    %v4870 = vld [vmem:[#allocation2 + $0x12d0] sm:$0xf]
    %v4871 = vld [vmem:[#allocation2 + $0x12e0] sm:$0xf]
    %v4872 = vld [vmem:[#allocation2 + $0x12f0] sm:$0xf]
    %v4873 = vld [vmem:[#allocation2 + $0x1300] sm:$0xf]
    %v4874 = vld [vmem:[#allocation2 + $0x1310] sm:$0xf]
    %v4875 = vld [vmem:[#allocation2 + $0x1320] sm:$0xf]
    %v4876 = vld [vmem:[#allocation2 + $0x1330] sm:$0xf]
    %v4877 = vld [vmem:[#allocation2 + $0x1340] sm:$0xf]
    %v4878 = vld [vmem:[#allocation2 + $0x1350] sm:$0xf]
    %v4879 = vld [vmem:[#allocation2 + $0x1360] sm:$0xf]
    %v4880 = vld [vmem:[#allocation2 + $0x1370] sm:$0xf]
    %v4881 = vld [vmem:[#allocation2 + $0x1380] sm:$0xf]
    %v4882 = vld [vmem:[#allocation2 + $0x1390] sm:$0xf]
    %v4883 = vld [vmem:[#allocation2 + $0x13a0] sm:$0xf]
    %v4884 = vld [vmem:[#allocation2 + $0x13b0] sm:$0xf]
    %v4885 = vld [vmem:[#allocation2 + $0x13c0] sm:$0xf]
    %v4886 = vld [vmem:[#allocation2 + $0x13d0] sm:$0xf]
    %v4887 = vld [vmem:[#allocation2 + $0x13e0] sm:$0xf]
    %v4888 = vld [vmem:[#allocation2 + $0x13f0] sm:$0xf]
    %v4889 = vld [vmem:[#allocation2 + $0x1400] sm:$0xf]
    %v4890 = vld [vmem:[#allocation2 + $0x1410] sm:$0xf]
    %v4891 = vld [vmem:[#allocation5 + $0x7] ss:$0 sm:$0xff]
    %v4940 = vunpack.c.l.b16 %v4843
    %v4941 = vunpack.c.l.b16 %v4844
    %v4942 = vunpack.c.l.b16 %v4845
    %v4943 = vunpack.c.l.b16 %v4846
    %v4944 = vunpack.c.l.b16 %v4847
    %v4945 = vunpack.c.l.b16 %v4848
    %v4946 = vunpack.c.l.b16 %v4849
    %v4947 = vunpack.c.l.b16 %v4850
    %v4948 = vunpack.c.l.b16 %v4851
    %v4949 = vunpack.c.l.b16 %v4852
    %v4950 = vunpack.c.l.b16 %v4853
    %v4951 = vunpack.c.l.b16 %v4854
    %v4952 = vunpack.c.l.b16 %v4855
    %v4953 = vunpack.c.l.b16 %v4856
    %v4954 = vunpack.c.l.b16 %v4857
    %v4955 = vunpack.c.l.b16 %v4858
    %v4956 = vunpack.c.l.b16 %v4859
    %v4957 = vunpack.c.l.b16 %v4860
    %v4958 = vunpack.c.l.b16 %v4861
    %v4959 = vunpack.c.l.b16 %v4862
    %v4960 = vunpack.c.l.b16 %v4863
    %v4961 = vunpack.c.l.b16 %v4864
    %v4962 = vunpack.c.l.b16 %v4865
    %v4963 = vunpack.c.l.b16 %v4866
    %v4964 = vunpack.c.l.b16 %v4867
    %v4965 = vunpack.c.l.b16 %v4868
    %v4966 = vunpack.c.l.b16 %v4869
    %v4967 = vunpack.c.l.b16 %v4870
    %v4968 = vunpack.c.l.b16 %v4871
    %v4969 = vunpack.c.l.b16 %v4872
    %v4970 = vunpack.c.l.b16 %v4873
    %v4971 = vunpack.c.l.b16 %v4874
    %v4972 = vunpack.c.l.b16 %v4875
    %v4973 = vunpack.c.l.b16 %v4876
    %v4974 = vunpack.c.l.b16 %v4877
    %v4975 = vunpack.c.l.b16 %v4878
    %v4976 = vunpack.c.l.b16 %v4879
    %v4977 = vunpack.c.l.b16 %v4880
    %v4978 = vunpack.c.l.b16 %v4881
    %v4979 = vunpack.c.l.b16 %v4882
    %v4980 = vunpack.c.l.b16 %v4883
    %v4981 = vunpack.c.l.b16 %v4884
    %v4982 = vunpack.c.l.b16 %v4885
    %v4983 = vunpack.c.l.b16 %v4886
    %v4984 = vunpack.c.l.b16 %v4887
    %v4985 = vunpack.c.l.b16 %v4888
    %v4986 = vunpack.c.l.b16 %v4889
    %v4987 = vunpack.c.l.b16 %v4890
    %v4988 = vpack.c.b16 %v4941, %v4940
    %v4989 = vpack.c.b16 %v4943, %v4942
    %v4990 = vpack.c.b16 %v4945, %v4944
    %v4991 = vpack.c.b16 %v4947, %v4946
    %v4992 = vpack.c.b16 %v4949, %v4948
    %v4993 = vpack.c.b16 %v4951, %v4950
    %v4994 = vpack.c.b16 %v4953, %v4952
    %v4995 = vpack.c.b16 %v4955, %v4954
    %v4996 = vpack.c.b16 %v4957, %v4956
    %v4997 = vpack.c.b16 %v4959, %v4958
    %v4998 = vpack.c.b16 %v4961, %v4960
    %v4999 = vpack.c.b16 %v4963, %v4962
    %v5000 = vpack.c.b16 %v4965, %v4964
    %v5001 = vpack.c.b16 %v4967, %v4966
    %v5002 = vpack.c.b16 %v4969, %v4968
    %v5003 = vpack.c.b16 %v4971, %v4970
    %v5004 = vpack.c.b16 %v4973, %v4972
    %v5005 = vpack.c.b16 %v4975, %v4974
    %v5006 = vpack.c.b16 %v4977, %v4976
    %v5007 = vpack.c.b16 %v4979, %v4978
    %v5008 = vpack.c.b16 %v4981, %v4980
    %v5009 = vpack.c.b16 %v4983, %v4982
    %v5010 = vpack.c.b16 %v4985, %v4984
    %v5011 = vpack.c.b16 %v4987, %v4986
    %5036 = vmatprep.subr.bf16.mxu0 0
    %5037 = vmatpush1.bf16.msra.mxu0 %v4988
    %5038 = vmatprep.subr.bf16.mxu0 0
    %5039 = vmatpush1.bf16.msra.mxu0 %v4989
    %5040 = vmatprep.subr.bf16.mxu0 0
    %5041 = vmatpush1.bf16.msra.mxu0 %v4990
    %5042 = vmatprep.subr.bf16.mxu0 0
    %5043 = vmatpush1.bf16.msra.mxu0 %v4991
    %5044 = vmatprep.subr.bf16.mxu0 0
    %5045 = vmatpush1.bf16.msra.mxu0 %v4992
    %5046 = vmatprep.subr.bf16.mxu0 0
    %5047 = vmatpush1.bf16.msra.mxu0 %v4993
    %5048 = vmatprep.subr.bf16.mxu0 0
    %5049 = vmatpush1.bf16.msra.mxu0 %v4994
    %5050 = vmatprep.subr.bf16.mxu0 0
    %5051 = vmatpush1.bf16.msra.mxu0 %v4995
    %5052 = vmatprep.subr.bf16.mxu0 0
    %5053 = vmatpush1.bf16.msra.mxu0 %v4996
    %5054 = vmatprep.subr.bf16.mxu0 0
    %5055 = vmatpush1.bf16.msra.mxu0 %v4997
    %5056 = vmatprep.subr.bf16.mxu0 0
    %5057 = vmatpush1.bf16.msra.mxu0 %v4998
    %5058 = vmatprep.subr.bf16.mxu0 0
    %5059 = vmatpush1.bf16.msra.mxu0 %v4999
    %5060 = vmatprep.subr.bf16.mxu0 0
    %5061 = vmatpush1.bf16.msra.mxu0 %v5000
    %5062 = vmatprep.subr.bf16.mxu0 0
    %5063 = vmatpush1.bf16.msra.mxu0 %v5001
    %5064 = vmatprep.subr.bf16.mxu0 0
    %5065 = vmatpush1.bf16.msra.mxu0 %v5002
    %5066 = vmatprep.subr.bf16.mxu0 0
    %5067 = vmatpush1.bf16.msra.mxu0 %v5003
    %5068 = vmatprep.mubr.bf16.mxu0 %v4820
    %5069 = vmatmul.mubr.bf16.gmra.mrb[0].mxu0 %v4819
    %v5070 = vpop.f32.mrb[0].mxu0
    %v5071 = vadd.f32 %v4891, %v5070
    %v5072 = vpop.f32.mrb[0].mxu0
    %v5073 = vpop.f32.mrb[0].mxu0
    %v5074 = vadd.f32 %v4891, %v5073
    %v5075 = vpop.f32.mrb[0].mxu0
    %5076 = vmatprep.mubr.bf16.mxu0 %v4823
    %5077 = vmatmul.mubr.bf16.gmra.mrb[0].mxu0 %v4822
    %v5078 = vpop.f32.mrb[0].mxu0
    %v5079 = vadd.f32 %v4891, %v5078
    %v5080 = vpop.f32.mrb[0].mxu0
    %v5081 = vpop.f32.mrb[0].mxu0
    %v5082 = vadd.f32 %v4891, %v5081
    %v5083 = vpop.f32.mrb[0].mxu0
    %5084 = vmatprep.mubr.bf16.mxu0 %v4826
    %5085 = vmatmul.mubr.bf16.gmra.mrb[0].mxu0 %v4825
    %v5086 = vpop.f32.mrb[0].mxu0
    %v5087 = vadd.f32 %v4891, %v5086
    %v5088 = vpop.f32.mrb[0].mxu0
    %v5089 = vpop.f32.mrb[0].mxu0
    %v5090 = vadd.f32 %v4891, %v5089
    %v5091 = vpop.f32.mrb[0].mxu0
    %5092 = vmatprep.mubr.bf16.mxu0 %v4829
    %5093 = vmatmul.mubr.bf16.gmra.mrb[0].mxu0 %v4828
    %v5094 = vpop.f32.mrb[0].mxu0
    %v5095 = vadd.f32 %v4891, %v5094
    %v5096 = vpop.f32.mrb[0].mxu0
    %v5097 = vpop.f32.mrb[0].mxu0
    %v5098 = vadd.f32 %v4891, %v5097
    %v5099 = vpop.f32.mrb[0].mxu0
    %5100 = vmatprep.mubr.bf16.mxu0 %v4832
    %5101 = vmatmul.mubr.bf16.gmra.mrb[0].mxu0 %v4831
    %v5102 = vpop.f32.mrb[0].mxu0
    %v5103 = vadd.f32 %v4891, %v5102
    %v5104 = vpop.f32.mrb[0].mxu0
    %v5105 = vpop.f32.mrb[0].mxu0
    %v5106 = vadd.f32 %v4891, %v5105
    %v5107 = vpop.f32.mrb[0].mxu0
    %5108 = vmatprep.mubr.bf16.mxu0 %v4835
    %5109 = vmatmul.mubr.bf16.gmra.mrb[0].mxu0 %v4834
    %v5110 = vpop.f32.mrb[0].mxu0
    %v5111 = vadd.f32 %v4891, %v5110
    %v5112 = vpop.f32.mrb[0].mxu0
    %v5113 = vpop.f32.mrb[0].mxu0
    %v5114 = vadd.f32 %v4891, %v5113
    %v5115 = vpop.f32.mrb[0].mxu0
    %5116 = vmatprep.mubr.bf16.mxu0 %v4838
    %5117 = vmatmul.mubr.bf16.gmra.mrb[0].mxu0 %v4837
    %v5118 = vpop.f32.mrb[0].mxu0
    %v5119 = vadd.f32 %v4891, %v5118
    %v5120 = vpop.f32.mrb[0].mxu0
    %v5121 = vpop.f32.mrb[0].mxu0
    %v5122 = vadd.f32 %v4891, %v5121
    %v5123 = vpop.f32.mrb[0].mxu0
    %5124 = vmatprep.mubr.bf16.mxu0 %v4841
    %5125 = vmatmul.mubr.bf16.gmra.mrb[0].mxu0 %v4840
    %v5126 = vpop.f32.mrb[0].mxu0
    %v5127 = vadd.f32 %v4891, %v5126
    %v5128 = vpop.f32.mrb[0].mxu0
    %v5129 = vpop.f32.mrb[0].mxu0
    %v5130 = vadd.f32 %v4891, %v5129
    %v5131 = vpop.f32.mrb[0].mxu0
    %5132 = vdwg.mxu0
    %5133 = vmatprep.subr.bf16.mxu0 0
    %5134 = vmatpush1.bf16.msra.mxu0 %v5004
    %5135 = vmatprep.subr.bf16.mxu0 0
    %5136 = vmatpush1.bf16.msra.mxu0 %v5005
    %5137 = vmatprep.subr.bf16.mxu0 0
    %5138 = vmatpush1.bf16.msra.mxu0 %v5006
    %5139 = vmatprep.subr.bf16.mxu0 0
    %5140 = vmatpush1.bf16.msra.mxu0 %v5007
    %5141 = vmatprep.subr.bf16.mxu0 0
    %5142 = vmatpush1.bf16.msra.mxu0 %v5008
    %5143 = vmatprep.subr.bf16.mxu0 0
    %5144 = vmatpush1.bf16.msra.mxu0 %v5009
    %5145 = vmatprep.subr.bf16.mxu0 0
    %5146 = vmatpush1.bf16.msra.mxu0 %v5010
    %5147 = vmatprep.subr.bf16.mxu0 0
    %5148 = vmatpush1.bf16.msra.mxu0 %v5011
    %5149 = vmatprep.subr.bf16.mxu0 0
    %5150 = vmatpush1.bf16.msra.mxu0 0
    %5151 = vmatprep.subr.bf16.mxu0 0
    %5152 = vmatpush1.bf16.msra.mxu0 0
    %5153 = vmatprep.subr.bf16.mxu0 0
    %5154 = vmatpush1.bf16.msra.mxu0 0
    %5155 = vmatprep.subr.bf16.mxu0 0
    %5156 = vmatpush1.bf16.msra.mxu0 0
    %5157 = vmatprep.subr.bf16.mxu0 0
    %5158 = vmatpush1.bf16.msra.mxu0 0
    %5159 = vmatprep.subr.bf16.mxu0 0
    %5160 = vmatpush1.bf16.msra.mxu0 0
    %5161 = vmatprep.subr.bf16.mxu0 0
    %5162 = vmatpush1.bf16.msra.mxu0 0
    %5163 = vmatprep.subr.bf16.mxu0 0
    %5164 = vmatpush1.bf16.msra.mxu0 0
    %5165 = vmatprep.mubr.bf16.mxu0 0
    %5166 = vmatmul.mubr.bf16.gmra.mrb[0].mxu0 %v4821
    %v5167 = vpop.f32.mrb[0].mxu0
    %v5168 = vadd.f32 %v5071, %v5167
    %v5169 = vpop.f32.mrb[0].mxu0
    %v5170 = vpop.f32.mrb[0].mxu0
    %v5171 = vadd.f32 %v5074, %v5170
    %v5172 = vpop.f32.mrb[0].mxu0
    %5173 = vmatprep.mubr.bf16.mxu0 0
    %5174 = vmatmul.mubr.bf16.gmra.mrb[0].mxu0 %v4824
    %v5175 = vpop.f32.mrb[0].mxu0
    %v5176 = vadd.f32 %v5079, %v5175
    %v5177 = vpop.f32.mrb[0].mxu0
    %v5178 = vpop.f32.mrb[0].mxu0
    %v5179 = vadd.f32 %v5082, %v5178
    %v5180 = vpop.f32.mrb[0].mxu0
    %5181 = vmatprep.mubr.bf16.mxu0 0
    %5182 = vmatmul.mubr.bf16.gmra.mrb[0].mxu0 %v4827
    %v5183 = vpop.f32.mrb[0].mxu0
    %v5184 = vadd.f32 %v5087, %v5183
    %v5185 = vpop.f32.mrb[0].mxu0
    %v5186 = vpop.f32.mrb[0].mxu0
    %v5187 = vadd.f32 %v5090, %v5186
    %v5188 = vpop.f32.mrb[0].mxu0
    %5189 = vmatprep.mubr.bf16.mxu0 0
    %5190 = vmatmul.mubr.bf16.gmra.mrb[0].mxu0 %v4830
    %v5191 = vpop.f32.mrb[0].mxu0
    %v5192 = vadd.f32 %v5095, %v5191
    %v5193 = vpop.f32.mrb[0].mxu0
    %v5194 = vpop.f32.mrb[0].mxu0
    %v5195 = vadd.f32 %v5098, %v5194
    %v5196 = vpop.f32.mrb[0].mxu0
    %5197 = vmatprep.mubr.bf16.mxu0 0
    %5198 = vmatmul.mubr.bf16.gmra.mrb[0].mxu0 %v4833
    %v5199 = vpop.f32.mrb[0].mxu0
    %v5200 = vadd.f32 %v5103, %v5199
    %v5201 = vpop.f32.mrb[0].mxu0
    %v5202 = vpop.f32.mrb[0].mxu0
    %v5203 = vadd.f32 %v5106, %v5202
    %v5204 = vpop.f32.mrb[0].mxu0
    %5205 = vmatprep.mubr.bf16.mxu0 0
    %5206 = vmatmul.mubr.bf16.gmra.mrb[0].mxu0 %v4836
    %v5207 = vpop.f32.mrb[0].mxu0
    %v5208 = vadd.f32 %v5111, %v5207
    %v5209 = vpop.f32.mrb[0].mxu0
    %v5210 = vpop.f32.mrb[0].mxu0
    %v5211 = vadd.f32 %v5114, %v5210
    %v5212 = vpop.f32.mrb[0].mxu0
    %5213 = vmatprep.mubr.bf16.mxu0 0
    %5214 = vmatmul.mubr.bf16.gmra.mrb[0].mxu0 %v4839
    %v5215 = vpop.f32.mrb[0].mxu0
    %v5216 = vadd.f32 %v5119, %v5215
    %v5217 = vpop.f32.mrb[0].mxu0
    %v5218 = vpop.f32.mrb[0].mxu0
    %v5219 = vadd.f32 %v5122, %v5218
    %v5220 = vpop.f32.mrb[0].mxu0
    %5221 = vmatprep.mubr.bf16.mxu0 0
    %5222 = vmatmul.mubr.bf16.gmra.mrb[0].mxu0 %v4842
    %v5223 = vpop.f32.mrb[0].mxu0
    %v5224 = vadd.f32 %v5127, %v5223
    %v5225 = vpop.f32.mrb[0].mxu0
    %v5226 = vpop.f32.mrb[0].mxu0
    %v5227 = vadd.f32 %v5130, %v5226
    %v5228 = vpop.f32.mrb[0].mxu0
    %5229 = vdwg.mxu0
    %v5230 = vpack.c.bf16 %v5171, %v5168
    %v5231 = vpack.c.bf16 %v5179, %v5176
    %v5232 = vpack.c.bf16 %v5187, %v5184
    %v5233 = vpack.c.bf16 %v5195, %v5192
    %v5234 = vpack.c.bf16 %v5203, %v5200
    %v5235 = vpack.c.bf16 %v5211, %v5208
    %v5236 = vpack.c.bf16 %v5219, %v5216
    %v5237 = vpack.c.bf16 %v5227, %v5224
    %v5246 = vunpack.c.l.b16 %v5230
    %v5247 = vunpack.c.h.b16 %v5230
    %v5248 = vunpack.c.l.b16 %v5231
    %v5249 = vunpack.c.h.b16 %v5231
    %v5250 = vunpack.c.l.b16 %v5232
    %v5251 = vunpack.c.h.b16 %v5232
    %v5252 = vunpack.c.l.b16 %v5233
    %v5253 = vunpack.c.h.b16 %v5233
    %v5254 = vunpack.c.l.b16 %v5234
    %v5255 = vunpack.c.h.b16 %v5234
    %v5256 = vunpack.c.l.b16 %v5235
    %v5257 = vunpack.c.h.b16 %v5235
    %v5258 = vunpack.c.l.b16 %v5236
    %v5259 = vunpack.c.h.b16 %v5236
    %v5260 = vunpack.c.l.b16 %v5237
    %v5261 = vunpack.c.h.b16 %v5237
    %v5262 = vpack.c.b16 %v5246, %v5246
    %v5263 = vpack.c.b16 %v5247, %v5247
    %v5264 = vpack.c.b16 %v5248, %v5248
    %v5265 = vpack.c.b16 %v5249, %v5249
    %v5266 = vpack.c.b16 %v5250, %v5250
    %v5267 = vpack.c.b16 %v5251, %v5251
    %v5268 = vpack.c.b16 %v5252, %v5252
    %v5269 = vpack.c.b16 %v5253, %v5253
    %v5270 = vpack.c.b16 %v5254, %v5254
    %v5271 = vpack.c.b16 %v5255, %v5255
    %v5272 = vpack.c.b16 %v5256, %v5256
    %v5273 = vpack.c.b16 %v5257, %v5257
    %v5274 = vpack.c.b16 %v5258, %v5258
    %v5275 = vpack.c.b16 %v5259, %v5259
    %v5276 = vpack.c.b16 %v5260, %v5260
    %v5277 = vpack.c.b16 %v5261, %v5261
    %5294 = vst [vmem:[#allocation7] sm:$0xf] %v5262
    %5295 = vst [vmem:[#allocation7 + $0x4] sm:$0xf] %v5263
    %5296 = vst [vmem:[#allocation7 + $0x8] sm:$0xf] %v5264
    %5297 = vst [vmem:[#allocation7 + $0xc] sm:$0xf] %v5265
    %5298 = vst [vmem:[#allocation7 + $0x10] sm:$0xf] %v5266
    %5299 = vst [vmem:[#allocation7 + $0x14] sm:$0xf] %v5267
    %5300 = vst [vmem:[#allocation7 + $0x18] sm:$0xf] %v5268
    %5301 = vst [vmem:[#allocation7 + $0x1c] sm:$0xf] %v5269
    %5302 = vst [vmem:[#allocation7 + $0x20] sm:$0xf] %v5270
    %5303 = vst [vmem:[#allocation7 + $0x24] sm:$0xf] %v5271
    %5304 = vst [vmem:[#allocation7 + $0x28] sm:$0xf] %v5272
    %5305 = vst [vmem:[#allocation7 + $0x2c] sm:$0xf] %v5273
    %5306 = vst [vmem:[#allocation7 + $0x30] sm:$0xf] %v5274
    %5307 = vst [vmem:[#allocation7 + $0x34] sm:$0xf] %v5275
    %5308 = vst [vmem:[#allocation7 + $0x38] sm:$0xf] %v5276
    %5309 = vst [vmem:[#allocation7 + $0x3c] sm:$0xf] %v5277
    // Predicated region
    $region22: #{tpu_custom_call.1} parent=1 // pred_check
      _
    $region23: #{tpu_custom_call.1} parent=1 // pred_check_branch
      %5311 = sbr.rel (0) target = $region25
    $region24: #{tpu_custom_call.1} parent=1 // pred_region
      %s5313 = ssub.s32 1024, 1024
      %5314 = vsyncadd [#allocation4], %s5313
      %s5315 = sshll.u32 [#allocation7], 4
      %s5316 = int_to_ptr.vmem [resolvable:$true] %s5315
      %5321 = dma.vmem_to_hbm [thread:$0]  %s5316, 1024, %s3, [#allocation4], 64, 64, 4
    $region25: #{tpu_custom_call.1} parent=1 // pred_fallthru
      _
    // Predicated region
    $region26: #{tpu_custom_call.1} parent=1 // pred_check
      _
    $region27: #{tpu_custom_call.1} parent=1 // pred_check_branch
      %5323 = sbr.rel (0) target = $region29
    $region28: #{tpu_custom_call.1} parent=1 // pred_region
      %5324 = dma.done [#allocation4], 1024
    $region29: #{tpu_custom_call.1} parent=1 // pred_fallthru
      _
    %5325 = vsyncpa [#allocation3], 1
    %5326 = vsyncpa [#allocation6], 1
    %5327 = vsyncpa [#allocation4], 1

</llo_original>
